<compile_context>
chip_gen: v7x
topology: tpu7x:2x2x1
jax: 0.10.0
libtpu: 0.0.40
codegen_flags: <defaults>
</compile_context>

<pallas_src>
import jax
import jax.numpy as jnp
from jax.experimental import pallas as pl
from jax.experimental.pallas import tpu as pltpu

_EPS = 1e-5
_VMEM_LIMIT = 48 * 1024 * 1024   # well above actual use (~5 MiB/block), below v7x 64 MiB


def _round_up(x, m):
    return ((x + m - 1) // m) * m


# ---------------------------------------------------------------------------
# Pallas kernels
# ---------------------------------------------------------------------------

def _conv_stats_kernel(p_ref, w_ref, y_ref, sum_ref, sq_ref):
    """Pass A: matmul (bf16 x bf16 -> f32) + per-channel sum / sum-of-squares.

    sum_ref / sq_ref are (1, Cout) output blocks mapped to a constant block index, so they
    stay resident in VMEM across the row-block axis and act as accumulators (P3 pattern).
    Zero-padded patch rows yield exactly-zero matmul rows (there is no bias), so padding
    contributes nothing to the statistics -> no masking required.
    """
    rb = pl.program_id(0)
    y = jnp.dot(p_ref[...], w_ref[...], preferred_element_type=jnp.float32)

    @pl.when(rb == 0)
    def _init():
        sum_ref[...] = jnp.zeros_like(sum_ref)
        sq_ref[...] = jnp.zeros_like(sq_ref)

    sum_ref[...] += jnp.sum(y, axis=0, keepdims=True)
    sq_ref[...] += jnp.sum(y * y, axis=0, keepdims=True)
    y_ref[...] = y.astype(y_ref.dtype)


def _bn_relu_kernel(y_ref, scale_ref, shift_ref, o_ref):
    """Pass B: y * scale + shift, ReLU.  scale/shift precomputed -> one FMA per element."""
    z = y_ref[...].astype(jnp.float32) * scale_ref[...] + shift_ref[...]
    o_ref[...] = jnp.maximum(z, 0.0).astype(o_ref.dtype)


def _bn_fc_relu_kernel(y_ref, td_ref, scale_ref, shift_ref, w_ref, wtd_ref, b_ref, o_ref):
    """Fused conv3 BN+ReLU epilogue + FC (K=1024 on the MXU) + timedelta rank-1 + ReLU."""
    xn = jnp.maximum(y_ref[...].astype(jnp.float32) * scale_ref[...] + shift_ref[...], 0.0)
    y = jnp.dot(xn.astype(jnp.bfloat16), w_ref[...], preferred_element_type=jnp.float32)
    y = y + td_ref[...] * wtd_ref[...] + b_ref[...]
    o_ref[...] = jnp.maximum(y, 0.0)


# ---------------------------------------------------------------------------
# Wrappers
# ---------------------------------------------------------------------------

def _im2col(x, kh, kw, stride):
    """NHWC im2col via strided slices; columns in (kh, kw, cin) order (matches weights)."""
    B, H, W, C = x.shape
    oh = (H - kh) // stride + 1
    ow = (W - kw) // stride + 1
    cols = []
    for i in range(kh):
        for j in range(kw):
            cols.append(x[:, i:i + stride * oh:stride, j:j + stride * ow:stride, :])
    patches = jnp.stack(cols, axis=3).reshape(B * oh * ow, kh * kw * C)
    return patches, oh, ow


def _conv_pre_bn(x, w_mat, *, kh, kw, stride, max_block_rows=2048):
    """Pass A wrapper: pre-BN activations (padded rows) + per-channel sum / sumsq."""
    B, H, W, C = x.shape
    patches, oh, ow = _im2col(x, kh, kw, stride)
    R = B * oh * ow
    K, Cout = w_mat.shape

    tr = min(max_block_rows, _round_up(R, 8))
    r_pad = _round_up(R, tr)
    if r_pad != R:
        patches = jnp.pad(patches, ((0, r_pad - R), (0, 0)))   # zero rows -> zero y rows
    n_rb = r_pad // tr

    y, s, sq = pl.pallas_call(
        _conv_stats_kernel,
        out_shape=(jax.ShapeDtypeStruct((r_pad, Cout), jnp.bfloat16),
                   jax.ShapeDtypeStruct((1, Cout), jnp.float32),
                   jax.ShapeDtypeStruct((1, Cout), jnp.float32)),
        grid=(n_rb,),
        in_specs=[
            pl.BlockSpec((tr, K), lambda r: (r, 0)),
            pl.BlockSpec((K, Cout), lambda r: (0, 0)),
        ],
        out_specs=(
            pl.BlockSpec((tr, Cout), lambda r: (r, 0)),
            pl.BlockSpec((1, Cout), lambda r: (0, 0)),   # resident accumulator
            pl.BlockSpec((1, Cout), lambda r: (0, 0)),   # resident accumulator
        ),
        compiler_params=pltpu.CompilerParams(
            dimension_semantics=("arbitrary",),          # stats carried across row blocks
            vmem_limit_bytes=_VMEM_LIMIT),
    )(patches, w_mat)
    return y, s, sq, R, oh, ow, tr


def _bn_scale_shift(s, sq, gamma, beta, n_valid):
    """Hoisted BN affine: scale = gamma*rsqrt(var+eps), shift = beta - mean*scale (f32)."""
    inv_n = 1.0 / float(n_valid)
    mean = s * inv_n
    var = jnp.maximum(sq * inv_n - mean * mean, 0.0)     # biased variance (train mode)
    scale = gamma.reshape(1, -1) * jax.lax.rsqrt(var + _EPS)
    shift = beta.reshape(1, -1) - mean * scale
    return scale, shift


def _bn_relu(y_pad, scale, shift, tr):
    """Pass B wrapper: per-channel affine + ReLU, row blocks fully parallel."""
    r_pad, Cout = y_pad.shape
    n_rb = r_pad // tr
    return pl.pallas_call(
        _bn_relu_kernel,
        out_shape=jax.ShapeDtypeStruct((r_pad, Cout), jnp.bfloat16),
        grid=(n_rb,),
        in_specs=[
            pl.BlockSpec((tr, Cout), lambda r: (r, 0)),
            pl.BlockSpec((1, Cout), lambda r: (0, 0)),
            pl.BlockSpec((1, Cout), lambda r: (0, 0)),
        ],
        out_specs=pl.BlockSpec((tr, Cout), lambda r: (r, 0)),
        compiler_params=pltpu.CompilerParams(
            dimension_semantics=("parallel",),           # no cross-block state
            vmem_limit_bytes=_VMEM_LIMIT),
    )(y_pad, scale, shift)


def conv_bn_relu(x, w_mat, gamma, beta, *, kh, kw, stride, max_block_rows=2048):
    """x: (B,H,W,C) NHWC bf16 -> (B,OH,OW,Cout) bf16, conv + BatchNorm(train) + ReLU."""
    B = x.shape[0]
    Cout = w_mat.shape[1]
    y, s, sq, R, oh, ow, tr = _conv_pre_bn(x, w_mat, kh=kh, kw=kw, stride=stride,
                                           max_block_rows=max_block_rows)
    scale, shift = _bn_scale_shift(s, sq, gamma, beta, R)
    act = _bn_relu(y, scale, shift, tr)
    return act[:R].reshape(B, oh, ow, Cout)


def bn_fc_relu(y, td, scale, shift, w, w_td, bias, *, max_block_rows=2048):
    """Fused conv3-BN+ReLU + FC + ReLU.
    y: (B, Din) bf16 pre-BN conv3 feature (NHWC flatten); scale/shift: (1, Din) f32;
    w: (Din, Dout) bf16; w_td, bias: (1, Dout) f32.  Returns (B, Dout) f32."""
    B, Din = y.shape
    Dout = w.shape[1]

    tb = min(max_block_rows, _round_up(B, 8))
    b_pad = _round_up(B, tb)
    if b_pad != B:
        y = jnp.pad(y, ((0, b_pad - B), (0, 0)))
        td = jnp.pad(td, ((0, b_pad - B), (0, 0)))
    n_rb = b_pad // tb

    out = pl.pallas_call(
        _bn_fc_relu_kernel,
        out_shape=jax.ShapeDtypeStruct((b_pad, Dout), jnp.float32),
        grid=(n_rb,),
        in_specs=[
            pl.BlockSpec((tb, Din), lambda r: (r, 0)),
            pl.BlockSpec((tb, 1), lambda r: (r, 0)),
            pl.BlockSpec((1, Din), lambda r: (0, 0)),
            pl.BlockSpec((1, Din), lambda r: (0, 0)),
            pl.BlockSpec((Din, Dout), lambda r: (0, 0)),
            pl.BlockSpec((1, Dout), lambda r: (0, 0)),
            pl.BlockSpec((1, Dout), lambda r: (0, 0)),
        ],
        out_specs=pl.BlockSpec((tb, Dout), lambda r: (r, 0)),
        compiler_params=pltpu.CompilerParams(
            dimension_semantics=("parallel",),
            vmem_limit_bytes=_VMEM_LIMIT),
    )(y, td, scale, shift, w, w_td, bias)
    return out[:B]


# ---------------------------------------------------------------------------
# Parameters (torch layout -> kernel layout, one-time conversion)
# ---------------------------------------------------------------------------

def _conv_size_out(size, kernel_size, stride):
    return (size - (kernel_size - 1) - 1) // stride + 1


def prepare_params(raw, convh, convw):
    """Convert torch-layout weights into the layout the kernels consume (done once).

    Conv biases (b1..b3) are intentionally dropped: a per-channel bias before train-mode
    BatchNorm cancels exactly in (y - mean), so it has no effect on the output.
    """
    def conv_w(w):  # (Cout, Cin, KH, KW) -> (KH*KW*Cin, Cout), (kh, kw, cin) row order, bf16
        cout, cin, kh, kw = w.shape
        return w.transpose(2, 3, 1, 0).reshape(kh * kw * cin, cout).astype(jnp.bfloat16)

    w_fc = raw["w_fc"]                           # (512, convh*convw*64 + 1)
    dout, din1 = w_fc.shape
    lin_in = din1 - 1
    # Re-order conv-feature columns from NCHW (c,h,w) flatten to NHWC (h,w,c) flatten.
    w_x = (w_fc[:, :lin_in].reshape(dout, 64, convh, convw)
           .transpose(0, 2, 3, 1).reshape(dout, lin_in))

    return {
        "w1": conv_w(raw["w1"]), "g1": raw["g1"], "be1": raw["be1"],
        "w2": conv_w(raw["w2"]), "g2": raw["g2"], "be2": raw["be2"],
        "w3": conv_w(raw["w3"]), "g3": raw["g3"], "be3": raw["be3"],
        "w_fc_x": w_x.T.astype(jnp.bfloat16),    # (lin_in, 512), pre-transposed
        "w_fc_td": w_fc[:, lin_in:].T,           # (1, 512) f32, timedelta column
        "b_fc": raw["b_fc"].reshape(1, dout),
    }


def init_params(key, C, H, W):
    convh = _conv_size_out(_conv_size_out(_conv_size_out(H, 8, 4), 4, 2), 3, 1)
    convw = _conv_size_out(_conv_size_out(_conv_size_out(W, 8, 4), 4, 2), 3, 1)
    lin_in = convh * convw * 64

    ks = jax.random.split(key, 8)
    f32 = jnp.float32
    raw = {
        "w1": 0.05 * jax.random.normal(ks[0], (32, C, 8, 8), f32),
        "g1": jnp.ones((32,), f32), "be1": jnp.zeros((32,), f32),
        "w2": 0.05 * jax.random.normal(ks[2], (64, 32, 4, 4), f32),
        "g2": jnp.ones((64,), f32), "be2": jnp.zeros((64,), f32),
        "w3": 0.05 * jax.random.normal(ks[4], (64, 64, 3, 3), f32),
        "g3": jnp.ones((64,), f32), "be3": jnp.zeros((64,), f32),
        "w_fc": 0.05 * jax.random.normal(ks[6], (512, lin_in + 1), f32),
        "b_fc": 0.01 * jax.random.normal(ks[7], (512,), f32),
    }
    return prepare_params(raw, convh, convw)


# ---------------------------------------------------------------------------
# PPO forward (matches PPO.forward: conv tower -> flatten -> concat(td) -> fc -> relu)
# ---------------------------------------------------------------------------

def ppo_forward(params, pixels, timedeltas):
    # Single NCHW -> NHWC layout change + bf16 cast; everything downstream is channels-last.
    x = jnp.transpose(pixels, (0, 2, 3, 1)).astype(jnp.bfloat16)
    x = conv_bn_relu(x, params["w1"], params["g1"], params["be1"], kh=8, kw=8, stride=4)
    x = conv_bn_relu(x, params["w2"], params["g2"], params["be2"], kh=4, kw=4, stride=2)

    # Conv layer 3: matmul + stats only; its BN + ReLU is fused into the FC kernel.
    y3, s3, sq3, R3, oh3, ow3, _ = _conv_pre_bn(x, params["w3"], kh=3, kw=3, stride=1)
    scale3, shift3 = _bn_scale_shift(s3, sq3, params["g3"], params["be3"], R3)

    B = pixels.shape[0]
    cout3 = y3.shape[1]
    feat = y3[:R3].reshape(B, oh3 * ow3 * cout3)          # NHWC flatten (channel fastest)
    scale_fc = jnp.tile(scale3, (1, oh3 * ow3))           # repeat 64-wide pattern -> 1024
    shift_fc = jnp.tile(shift3, (1, oh3 * ow3))

    # relu(concat(conv_feature, td) @ W^T + b) == relu(conv_feature @ W_x + td * w_td + b)
    return bn_fc_relu(feat, timedeltas, scale_fc, shift_fc,
                      params["w_fc_x"], params["w_fc_td"], params["b_fc"])


if __name__ == "__main__":
    key = jax.random.PRNGKey(0)
    B, C, H, W = 2, 4, 64, 64            # conv feature 64*4*4 = 1024, fc input 1024 + 1

    k_pix, k_td, k_par = jax.random.split(key, 3)
    pixels = jax.random.normal(k_pix, (B, C, H, W), jnp.float32)
    timedeltas = jax.random.normal(k_td, (B, 1), jnp.float32)
    params = init_params(k_par, C, H, W)

    feature = jax.jit(ppo_forward)(params, pixels, timedeltas)
    jax.block_until_ready(feature)

    assert feature.shape == (B, 512), feature.shape
    assert bool(jnp.all(jnp.isfinite(feature)))
    print("KERNEL_OK")
</pallas_src>

<mosaic_0001>
module attributes {stable_mosaic.version = 11 : i64} {
  func.func @_bn_relu_kernel(%arg0: i32, %arg1: memref<456x32xbf16, #tpu.memory_space<vmem>>, %arg2: memref<1x32xf32, #tpu.memory_space<vmem>>, %arg3: memref<1x32xf32, #tpu.memory_space<vmem>>, %arg4: memref<456x32xbf16, #tpu.memory_space<vmem>>) attributes {dimension_semantics = [#tpu.dimension_semantics<parallel>], iteration_bounds = array<i64: 1>, scalar_prefetch = 0 : i64, scratch_operands = 0 : i64, tpu.core_type = #tpu.core_type<tc>, window_params = [{transform_indices = @transform_0, window_bounds = array<i64: 456, 32>}, {pipeline_mode = #tpu.pipeline_mode<synchronous>, transform_indices = @transform_1, window_bounds = array<i64: 1, 32>}, {pipeline_mode = #tpu.pipeline_mode<synchronous>, transform_indices = @transform_2, window_bounds = array<i64: 1, 32>}, {transform_indices = @transform_3, window_bounds = array<i64: 456, 32>}]} {
    %c0 = arith.constant 0 : index
    %c0_0 = arith.constant 0 : index
    %0 = vector.load %arg1[%c0, %c0_0] : memref<456x32xbf16, #tpu.memory_space<vmem>>, vector<456x32xbf16>
    %1 = arith.extf %0 : vector<456x32xbf16> to vector<456x32xf32>
    %c0_1 = arith.constant 0 : index
    %c0_2 = arith.constant 0 : index
    %2 = vector.load %arg2[%c0_1, %c0_2] : memref<1x32xf32, #tpu.memory_space<vmem>>, vector<1x32xf32>
    %3 = vector.broadcast %2 : vector<1x32xf32> to vector<456x32xf32>
    %4 = arith.mulf %1, %3 : vector<456x32xf32>
    %c0_3 = arith.constant 0 : index
    %c0_4 = arith.constant 0 : index
    %5 = vector.load %arg3[%c0_3, %c0_4] : memref<1x32xf32, #tpu.memory_space<vmem>>, vector<1x32xf32>
    %6 = vector.broadcast %5 : vector<1x32xf32> to vector<456x32xf32>
    %7 = arith.addf %4, %6 : vector<456x32xf32>
    %cst = arith.constant 0.000000e+00 : f32
    %8 = vector.broadcast %cst : f32 to vector<456x32xf32>
    %9 = arith.maximumf %7, %8 : vector<456x32xf32>
    %10 = arith.truncf %9 : vector<456x32xf32> to vector<456x32xbf16>
    %c0_5 = arith.constant 0 : index
    %c0_6 = arith.constant 0 : index
    %11 = vector.load %arg4[%c0_5, %c0_6] : memref<456x32xbf16, #tpu.memory_space<vmem>>, vector<456x32xbf16>
    tpu.vector_store %arg4[%c0_5, %c0_6], %10 {strides = array<i32>} : memref<456x32xbf16, #tpu.memory_space<vmem>>, vector<456x32xbf16>,
    return
  }
  func.func @transform_0(%arg0: i32) -> (i32, i32) {
    %c0_i32 = arith.constant 0 : i32
    %c0_i32_0 = arith.constant 0 : i32
    return %arg0, %c0_i32 : i32, i32
  }
  func.func @transform_1(%arg0: i32) -> (i32, i32) {
    %c0_i32 = arith.constant 0 : i32
    %c0_i32_0 = arith.constant 0 : i32
    %c0_i32_1 = arith.constant 0 : i32
    return %c0_i32, %c0_i32_0 : i32, i32
  }
  func.func @transform_2(%arg0: i32) -> (i32, i32) {
    %c0_i32 = arith.constant 0 : i32
    %c0_i32_0 = arith.constant 0 : i32
    %c0_i32_1 = arith.constant 0 : i32
    return %c0_i32, %c0_i32_0 : i32, i32
  }
  func.func @transform_3(%arg0: i32) -> (i32, i32) {
    %c0_i32 = arith.constant 0 : i32
    %c0_i32_0 = arith.constant 0 : i32
    return %arg0, %c0_i32 : i32, i32
  }
}

module attributes {stable_mosaic.version = 11 : i64} {
  func.func @_conv_stats_kernel(%arg0: i32, %arg1: memref<456x256xbf16, #tpu.memory_space<vmem>>, %arg2: memref<256x32xbf16, #tpu.memory_space<vmem>>, %arg3: memref<456x32xbf16, #tpu.memory_space<vmem>>, %arg4: memref<1x32xf32, #tpu.memory_space<vmem>>, %arg5: memref<1x32xf32, #tpu.memory_space<vmem>>) attributes {dimension_semantics = [#tpu.dimension_semantics<arbitrary>], iteration_bounds = array<i64: 1>, scalar_prefetch = 0 : i64, scratch_operands = 0 : i64, tpu.core_type = #tpu.core_type<tc>, window_params = [{transform_indices = @transform_0, window_bounds = array<i64: 456, 256>}, {pipeline_mode = #tpu.pipeline_mode<synchronous>, transform_indices = @transform_1, window_bounds = array<i64: 256, 32>}, {transform_indices = @transform_2, window_bounds = array<i64: 456, 32>}, {pipeline_mode = #tpu.pipeline_mode<synchronous>, transform_indices = @transform_3, window_bounds = array<i64: 1, 32>}, {pipeline_mode = #tpu.pipeline_mode<synchronous>, transform_indices = @transform_4, window_bounds = array<i64: 1, 32>}]} {
    %c0 = arith.constant 0 : index
    %c0_0 = arith.constant 0 : index
    %0 = vector.load %arg1[%c0, %c0_0] : memref<456x256xbf16, #tpu.memory_space<vmem>>, vector<456x256xbf16>
    %c0_1 = arith.constant 0 : index
    %c0_2 = arith.constant 0 : index
    %1 = vector.load %arg2[%c0_1, %c0_2] : memref<256x32xbf16, #tpu.memory_space<vmem>>, vector<256x32xbf16>
    %cst = arith.constant dense<0.000000e+00> : vector<456x32xf32>
    %2 = tpu.matmul %0, %1, %cst {dimension_numbers = #tpu.dot_dimension_numbers<[1], [0], [0], [1], [0, 0, 1, 1], [], []>} : vector<456x256xbf16>, vector<256x32xbf16>, vector<456x32xf32> -> vector<456x32xf32>
    %c0_i32 = arith.constant 0 : i32
    %3 = arith.cmpi eq, %arg0, %c0_i32 : i32
    %4 = arith.extui %3 : i1 to i32
    %c0_i32_3 = arith.constant 0 : i32
    %5 = arith.cmpi ne, %4, %c0_i32_3 : i32
    scf.if %5 {
      %cst_16 = arith.constant 0.000000e+00 : f32
      %19 = vector.broadcast %cst_16 : f32 to vector<1x32xf32>
      %c0_17 = arith.constant 0 : index
      %c0_18 = arith.constant 0 : index
      %20 = vector.load %arg4[%c0_17, %c0_18] : memref<1x32xf32, #tpu.memory_space<vmem>>, vector<1x32xf32>
      tpu.vector_store %arg4[%c0_17, %c0_18], %19 {strides = array<i32>} : memref<1x32xf32, #tpu.memory_space<vmem>>, vector<1x32xf32>,
      %cst_19 = arith.constant 0.000000e+00 : f32
      %21 = vector.broadcast %cst_19 : f32 to vector<1x32xf32>
      %c0_20 = arith.constant 0 : index
      %c0_21 = arith.constant 0 : index
      %22 = vector.load %arg5[%c0_20, %c0_21] : memref<1x32xf32, #tpu.memory_space<vmem>>, vector<1x32xf32>
      tpu.vector_store %arg5[%c0_20, %c0_21], %21 {strides = array<i32>} : memref<1x32xf32, #tpu.memory_space<vmem>>, vector<1x32xf32>,
    } else {
    }
    %c0_4 = arith.constant 0 : index
    %c0_5 = arith.constant 0 : index
    %6 = vector.load %arg4[%c0_4, %c0_5] : memref<1x32xf32, #tpu.memory_space<vmem>>, vector<1x32xf32>
    %cst_6 = arith.constant dense<0.000000e+00> : vector<32xf32>
    %7 = vector.multi_reduction <add>, %2, %cst_6 [0] : vector<456x32xf32> to vector<32xf32>
    %8 = vector.shape_cast %7 : vector<32xf32> to vector<1x32xf32>
    %9 = arith.addf %6, %8 : vector<1x32xf32>
    %c0_7 = arith.constant 0 : index
    %c0_8 = arith.constant 0 : index
    %10 = vector.load %arg4[%c0_7, %c0_8] : memref<1x32xf32, #tpu.memory_space<vmem>>, vector<1x32xf32>
    tpu.vector_store %arg4[%c0_7, %c0_8], %9 {strides = array<i32>} : memref<1x32xf32, #tpu.memory_space<vmem>>, vector<1x32xf32>,
    %c0_9 = arith.constant 0 : index
    %c0_10 = arith.constant 0 : index
    %11 = vector.load %arg5[%c0_9, %c0_10] : memref<1x32xf32, #tpu.memory_space<vmem>>, vector<1x32xf32>
    %12 = arith.mulf %2, %2 : vector<456x32xf32>
    %cst_11 = arith.constant dense<0.000000e+00> : vector<32xf32>
    %13 = vector.multi_reduction <add>, %12, %cst_11 [0] : vector<456x32xf32> to vector<32xf32>
    %14 = vector.shape_cast %13 : vector<32xf32> to vector<1x32xf32>
    %15 = arith.addf %11, %14 : vector<1x32xf32>
    %c0_12 = arith.constant 0 : index
    %c0_13 = arith.constant 0 : index
    %16 = vector.load %arg5[%c0_12, %c0_13] : memref<1x32xf32, #tpu.memory_space<vmem>>, vector<1x32xf32>
    tpu.vector_store %arg5[%c0_12, %c0_13], %15 {strides = array<i32>} : memref<1x32xf32, #tpu.memory_space<vmem>>, vector<1x32xf32>,
    %17 = arith.truncf %2 : vector<456x32xf32> to vector<456x32xbf16>
    %c0_14 = arith.constant 0 : index
    %c0_15 = arith.constant 0 : index
    %18 = vector.load %arg3[%c0_14, %c0_15] : memref<456x32xbf16, #tpu.memory_space<vmem>>, vector<456x32xbf16>
    tpu.vector_store %arg3[%c0_14, %c0_15], %17 {strides = array<i32>} : memref<456x32xbf16, #tpu.memory_space<vmem>>, vector<456x32xbf16>,
    return
  }
  func.func @transform_0(%arg0: i32) -> (i32, i32) {
    %c0_i32 = arith.constant 0 : i32
    %c0_i32_0 = arith.constant 0 : i32
    return %arg0, %c0_i32 : i32, i32
  }
  func.func @transform_1(%arg0: i32) -> (i32, i32) {
    %c0_i32 = arith.constant 0 : i32
    %c0_i32_0 = arith.constant 0 : i32
    %c0_i32_1 = arith.constant 0 : i32
    return %c0_i32, %c0_i32_0 : i32, i32
  }
  func.func @transform_2(%arg0: i32) -> (i32, i32) {
    %c0_i32 = arith.constant 0 : i32
    %c0_i32_0 = arith.constant 0 : i32
    return %arg0, %c0_i32 : i32, i32
  }
  func.func @transform_3(%arg0: i32) -> (i32, i32) {
    %c0_i32 = arith.constant 0 : i32
    %c0_i32_0 = arith.constant 0 : i32
    %c0_i32_1 = arith.constant 0 : i32
    return %c0_i32, %c0_i32_0 : i32, i32
  }
  func.func @transform_4(%arg0: i32) -> (i32, i32) {
    %c0_i32 = arith.constant 0 : i32
    %c0_i32_0 = arith.constant 0 : i32
    %c0_i32_1 = arith.constant 0 : i32
    return %c0_i32, %c0_i32_0 : i32, i32
  }
}

module attributes {stable_mosaic.version = 11 : i64} {
  func.func @_conv_stats_kernel(%arg0: i32, %arg1: memref<72x512xbf16, #tpu.memory_space<vmem>>, %arg2: memref<512x64xbf16, #tpu.memory_space<vmem>>, %arg3: memref<72x64xbf16, #tpu.memory_space<vmem>>, %arg4: memref<1x64xf32, #tpu.memory_space<vmem>>, %arg5: memref<1x64xf32, #tpu.memory_space<vmem>>) attributes {dimension_semantics = [#tpu.dimension_semantics<arbitrary>], iteration_bounds = array<i64: 1>, scalar_prefetch = 0 : i64, scratch_operands = 0 : i64, tpu.core_type = #tpu.core_type<tc>, window_params = [{transform_indices = @transform_0, window_bounds = array<i64: 72, 512>}, {pipeline_mode = #tpu.pipeline_mode<synchronous>, transform_indices = @transform_1, window_bounds = array<i64: 512, 64>}, {transform_indices = @transform_2, window_bounds = array<i64: 72, 64>}, {pipeline_mode = #tpu.pipeline_mode<synchronous>, transform_indices = @transform_3, window_bounds = array<i64: 1, 64>}, {pipeline_mode = #tpu.pipeline_mode<synchronous>, transform_indices = @transform_4, window_bounds = array<i64: 1, 64>}]} {
    %c0 = arith.constant 0 : index
    %c0_0 = arith.constant 0 : index
    %0 = vector.load %arg1[%c0, %c0_0] : memref<72x512xbf16, #tpu.memory_space<vmem>>, vector<72x512xbf16>
    %c0_1 = arith.constant 0 : index
    %c0_2 = arith.constant 0 : index
    %1 = vector.load %arg2[%c0_1, %c0_2] : memref<512x64xbf16, #tpu.memory_space<vmem>>, vector<512x64xbf16>
    %cst = arith.constant dense<0.000000e+00> : vector<72x64xf32>
    %2 = tpu.matmul %0, %1, %cst {dimension_numbers = #tpu.dot_dimension_numbers<[1], [0], [0], [1], [0, 0, 1, 1], [], []>} : vector<72x512xbf16>, vector<512x64xbf16>, vector<72x64xf32> -> vector<72x64xf32>
    %c0_i32 = arith.constant 0 : i32
    %3 = arith.cmpi eq, %arg0, %c0_i32 : i32
    %4 = arith.extui %3 : i1 to i32
    %c0_i32_3 = arith.constant 0 : i32
    %5 = arith.cmpi ne, %4, %c0_i32_3 : i32
    scf.if %5 {
      %cst_16 = arith.constant 0.000000e+00 : f32
      %19 = vector.broadcast %cst_16 : f32 to vector<1x64xf32>
      %c0_17 = arith.constant 0 : index
      %c0_18 = arith.constant 0 : index
      %20 = vector.load %arg4[%c0_17, %c0_18] : memref<1x64xf32, #tpu.memory_space<vmem>>, vector<1x64xf32>
      tpu.vector_store %arg4[%c0_17, %c0_18], %19 {strides = array<i32>} : memref<1x64xf32, #tpu.memory_space<vmem>>, vector<1x64xf32>,
      %cst_19 = arith.constant 0.000000e+00 : f32
      %21 = vector.broadcast %cst_19 : f32 to vector<1x64xf32>
      %c0_20 = arith.constant 0 : index
      %c0_21 = arith.constant 0 : index
      %22 = vector.load %arg5[%c0_20, %c0_21] : memref<1x64xf32, #tpu.memory_space<vmem>>, vector<1x64xf32>
      tpu.vector_store %arg5[%c0_20, %c0_21], %21 {strides = array<i32>} : memref<1x64xf32, #tpu.memory_space<vmem>>, vector<1x64xf32>,
    } else {
    }
    %c0_4 = arith.constant 0 : index
    %c0_5 = arith.constant 0 : index
    %6 = vector.load %arg4[%c0_4, %c0_5] : memref<1x64xf32, #tpu.memory_space<vmem>>, vector<1x64xf32>
    %cst_6 = arith.constant dense<0.000000e+00> : vector<64xf32>
    %7 = vector.multi_reduction <add>, %2, %cst_6 [0] : vector<72x64xf32> to vector<64xf32>
    %8 = vector.shape_cast %7 : vector<64xf32> to vector<1x64xf32>
    %9 = arith.addf %6, %8 : vector<1x64xf32>
    %c0_7 = arith.constant 0 : index
    %c0_8 = arith.constant 0 : index
    %10 = vector.load %arg4[%c0_7, %c0_8] : memref<1x64xf32, #tpu.memory_space<vmem>>, vector<1x64xf32>
    tpu.vector_store %arg4[%c0_7, %c0_8], %9 {strides = array<i32>} : memref<1x64xf32, #tpu.memory_space<vmem>>, vector<1x64xf32>,
    %c0_9 = arith.constant 0 : index
    %c0_10 = arith.constant 0 : index
    %11 = vector.load %arg5[%c0_9, %c0_10] : memref<1x64xf32, #tpu.memory_space<vmem>>, vector<1x64xf32>
    %12 = arith.mulf %2, %2 : vector<72x64xf32>
    %cst_11 = arith.constant dense<0.000000e+00> : vector<64xf32>
    %13 = vector.multi_reduction <add>, %12, %cst_11 [0] : vector<72x64xf32> to vector<64xf32>
    %14 = vector.shape_cast %13 : vector<64xf32> to vector<1x64xf32>
    %15 = arith.addf %11, %14 : vector<1x64xf32>
    %c0_12 = arith.constant 0 : index
    %c0_13 = arith.constant 0 : index
    %16 = vector.load %arg5[%c0_12, %c0_13] : memref<1x64xf32, #tpu.memory_space<vmem>>, vector<1x64xf32>
    tpu.vector_store %arg5[%c0_12, %c0_13], %15 {strides = array<i32>} : memref<1x64xf32, #tpu.memory_space<vmem>>, vector<1x64xf32>,
    %17 = arith.truncf %2 : vector<72x64xf32> to vector<72x64xbf16>
    %c0_14 = arith.constant 0 : index
    %c0_15 = arith.constant 0 : index
    %18 = vector.load %arg3[%c0_14, %c0_15] : memref<72x64xbf16, #tpu.memory_space<vmem>>, vector<72x64xbf16>
    tpu.vector_store %arg3[%c0_14, %c0_15], %17 {strides = array<i32>} : memref<72x64xbf16, #tpu.memory_space<vmem>>, vector<72x64xbf16>,
    return
  }
  func.func @transform_0(%arg0: i32) -> (i32, i32) {
    %c0_i32 = arith.constant 0 : i32
    %c0_i32_0 = arith.constant 0 : i32
    return %arg0, %c0_i32 : i32, i32
  }
  func.func @transform_1(%arg0: i32) -> (i32, i32) {
    %c0_i32 = arith.constant 0 : i32
    %c0_i32_0 = arith.constant 0 : i32
    %c0_i32_1 = arith.constant 0 : i32
    return %c0_i32, %c0_i32_0 : i32, i32
  }
  func.func @transform_2(%arg0: i32) -> (i32, i32) {
    %c0_i32 = arith.constant 0 : i32
    %c0_i32_0 = arith.constant 0 : i32
    return %arg0, %c0_i32 : i32, i32
  }
  func.func @transform_3(%arg0: i32) -> (i32, i32) {
    %c0_i32 = arith.constant 0 : i32
    %c0_i32_0 = arith.constant 0 : i32
    %c0_i32_1 = arith.constant 0 : i32
    return %c0_i32, %c0_i32_0 : i32, i32
  }
  func.func @transform_4(%arg0: i32) -> (i32, i32) {
    %c0_i32 = arith.constant 0 : i32
    %c0_i32_0 = arith.constant 0 : i32
    %c0_i32_1 = arith.constant 0 : i32
    return %c0_i32, %c0_i32_0 : i32, i32
  }
}

module attributes {stable_mosaic.version = 11 : i64} {
  func.func @_bn_relu_kernel(%arg0: i32, %arg1: memref<72x64xbf16, #tpu.memory_space<vmem>>, %arg2: memref<1x64xf32, #tpu.memory_space<vmem>>, %arg3: memref<1x64xf32, #tpu.memory_space<vmem>>, %arg4: memref<72x64xbf16, #tpu.memory_space<vmem>>) attributes {dimension_semantics = [#tpu.dimension_semantics<parallel>], iteration_bounds = array<i64: 1>, scalar_prefetch = 0 : i64, scratch_operands = 0 : i64, tpu.core_type = #tpu.core_type<tc>, window_params = [{transform_indices = @transform_0, window_bounds = array<i64: 72, 64>}, {pipeline_mode = #tpu.pipeline_mode<synchronous>, transform_indices = @transform_1, window_bounds = array<i64: 1, 64>}, {pipeline_mode = #tpu.pipeline_mode<synchronous>, transform_indices = @transform_2, window_bounds = array<i64: 1, 64>}, {transform_indices = @transform_3, window_bounds = array<i64: 72, 64>}]} {
    %c0 = arith.constant 0 : index
    %c0_0 = arith.constant 0 : index
    %0 = vector.load %arg1[%c0, %c0_0] : memref<72x64xbf16, #tpu.memory_space<vmem>>, vector<72x64xbf16>
    %1 = arith.extf %0 : vector<72x64xbf16> to vector<72x64xf32>
    %c0_1 = arith.constant 0 : index
    %c0_2 = arith.constant 0 : index
    %2 = vector.load %arg2[%c0_1, %c0_2] : memref<1x64xf32, #tpu.memory_space<vmem>>, vector<1x64xf32>
    %3 = vector.broadcast %2 : vector<1x64xf32> to vector<72x64xf32>
    %4 = arith.mulf %1, %3 : vector<72x64xf32>
    %c0_3 = arith.constant 0 : index
    %c0_4 = arith.constant 0 : index
    %5 = vector.load %arg3[%c0_3, %c0_4] : memref<1x64xf32, #tpu.memory_space<vmem>>, vector<1x64xf32>
    %6 = vector.broadcast %5 : vector<1x64xf32> to vector<72x64xf32>
    %7 = arith.addf %4, %6 : vector<72x64xf32>
    %cst = arith.constant 0.000000e+00 : f32
    %8 = vector.broadcast %cst : f32 to vector<72x64xf32>
    %9 = arith.maximumf %7, %8 : vector<72x64xf32>
    %10 = arith.truncf %9 : vector<72x64xf32> to vector<72x64xbf16>
    %c0_5 = arith.constant 0 : index
    %c0_6 = arith.constant 0 : index
    %11 = vector.load %arg4[%c0_5, %c0_6] : memref<72x64xbf16, #tpu.memory_space<vmem>>, vector<72x64xbf16>
    tpu.vector_store %arg4[%c0_5, %c0_6], %10 {strides = array<i32>} : memref<72x64xbf16, #tpu.memory_space<vmem>>, vector<72x64xbf16>,
    return
  }
  func.func @transform_0(%arg0: i32) -> (i32, i32) {
    %c0_i32 = arith.constant 0 : i32
    %c0_i32_0 = arith.constant 0 : i32
    return %arg0, %c0_i32 : i32, i32
  }
  func.func @transform_1(%arg0: i32) -> (i32, i32) {
    %c0_i32 = arith.constant 0 : i32
    %c0_i32_0 = arith.constant 0 : i32
    %c0_i32_1 = arith.constant 0 : i32
    return %c0_i32, %c0_i32_0 : i32, i32
  }
  func.func @transform_2(%arg0: i32) -> (i32, i32) {
    %c0_i32 = arith.constant 0 : i32
    %c0_i32_0 = arith.constant 0 : i32
    %c0_i32_1 = arith.constant 0 : i32
    return %c0_i32, %c0_i32_0 : i32, i32
  }
  func.func @transform_3(%arg0: i32) -> (i32, i32) {
    %c0_i32 = arith.constant 0 : i32
    %c0_i32_0 = arith.constant 0 : i32
    return %arg0, %c0_i32 : i32, i32
  }
}

module attributes {stable_mosaic.version = 11 : i64} {
  func.func @_conv_stats_kernel(%arg0: i32, %arg1: memref<32x576xbf16, #tpu.memory_space<vmem>>, %arg2: memref<576x64xbf16, #tpu.memory_space<vmem>>, %arg3: memref<32x64xbf16, #tpu.memory_space<vmem>>, %arg4: memref<1x64xf32, #tpu.memory_space<vmem>>, %arg5: memref<1x64xf32, #tpu.memory_space<vmem>>) attributes {dimension_semantics = [#tpu.dimension_semantics<arbitrary>], iteration_bounds = array<i64: 1>, scalar_prefetch = 0 : i64, scratch_operands = 0 : i64, tpu.core_type = #tpu.core_type<tc>, window_params = [{transform_indices = @transform_0, window_bounds = array<i64: 32, 576>}, {pipeline_mode = #tpu.pipeline_mode<synchronous>, transform_indices = @transform_1, window_bounds = array<i64: 576, 64>}, {transform_indices = @transform_2, window_bounds = array<i64: 32, 64>}, {pipeline_mode = #tpu.pipeline_mode<synchronous>, transform_indices = @transform_3, window_bounds = array<i64: 1, 64>}, {pipeline_mode = #tpu.pipeline_mode<synchronous>, transform_indices = @transform_4, window_bounds = array<i64: 1, 64>}]} {
    %c0 = arith.constant 0 : index
    %c0_0 = arith.constant 0 : index
    %0 = vector.load %arg1[%c0, %c0_0] : memref<32x576xbf16, #tpu.memory_space<vmem>>, vector<32x576xbf16>
    %c0_1 = arith.constant 0 : index
    %c0_2 = arith.constant 0 : index
    %1 = vector.load %arg2[%c0_1, %c0_2] : memref<576x64xbf16, #tpu.memory_space<vmem>>, vector<576x64xbf16>
    %cst = arith.constant dense<0.000000e+00> : vector<32x64xf32>
    %2 = tpu.matmul %0, %1, %cst {dimension_numbers = #tpu.dot_dimension_numbers<[1], [0], [0], [1], [0, 0, 1, 1], [], []>} : vector<32x576xbf16>, vector<576x64xbf16>, vector<32x64xf32> -> vector<32x64xf32>
    %c0_i32 = arith.constant 0 : i32
    %3 = arith.cmpi eq, %arg0, %c0_i32 : i32
    %4 = arith.extui %3 : i1 to i32
    %c0_i32_3 = arith.constant 0 : i32
    %5 = arith.cmpi ne, %4, %c0_i32_3 : i32
    scf.if %5 {
      %cst_16 = arith.constant 0.000000e+00 : f32
      %19 = vector.broadcast %cst_16 : f32 to vector<1x64xf32>
      %c0_17 = arith.constant 0 : index
      %c0_18 = arith.constant 0 : index
      %20 = vector.load %arg4[%c0_17, %c0_18] : memref<1x64xf32, #tpu.memory_space<vmem>>, vector<1x64xf32>
      tpu.vector_store %arg4[%c0_17, %c0_18], %19 {strides = array<i32>} : memref<1x64xf32, #tpu.memory_space<vmem>>, vector<1x64xf32>,
      %cst_19 = arith.constant 0.000000e+00 : f32
      %21 = vector.broadcast %cst_19 : f32 to vector<1x64xf32>
      %c0_20 = arith.constant 0 : index
      %c0_21 = arith.constant 0 : index
      %22 = vector.load %arg5[%c0_20, %c0_21] : memref<1x64xf32, #tpu.memory_space<vmem>>, vector<1x64xf32>
      tpu.vector_store %arg5[%c0_20, %c0_21], %21 {strides = array<i32>} : memref<1x64xf32, #tpu.memory_space<vmem>>, vector<1x64xf32>,
    } else {
    }
    %c0_4 = arith.constant 0 : index
    %c0_5 = arith.constant 0 : index
    %6 = vector.load %arg4[%c0_4, %c0_5] : memref<1x64xf32, #tpu.memory_space<vmem>>, vector<1x64xf32>
    %cst_6 = arith.constant dense<0.000000e+00> : vector<64xf32>
    %7 = vector.multi_reduction <add>, %2, %cst_6 [0] : vector<32x64xf32> to vector<64xf32>
    %8 = vector.shape_cast %7 : vector<64xf32> to vector<1x64xf32>
    %9 = arith.addf %6, %8 : vector<1x64xf32>
    %c0_7 = arith.constant 0 : index
    %c0_8 = arith.constant 0 : index
    %10 = vector.load %arg4[%c0_7, %c0_8] : memref<1x64xf32, #tpu.memory_space<vmem>>, vector<1x64xf32>
    tpu.vector_store %arg4[%c0_7, %c0_8], %9 {strides = array<i32>} : memref<1x64xf32, #tpu.memory_space<vmem>>, vector<1x64xf32>,
    %c0_9 = arith.constant 0 : index
    %c0_10 = arith.constant 0 : index
    %11 = vector.load %arg5[%c0_9, %c0_10] : memref<1x64xf32, #tpu.memory_space<vmem>>, vector<1x64xf32>
    %12 = arith.mulf %2, %2 : vector<32x64xf32>
    %cst_11 = arith.constant dense<0.000000e+00> : vector<64xf32>
    %13 = vector.multi_reduction <add>, %12, %cst_11 [0] : vector<32x64xf32> to vector<64xf32>
    %14 = vector.shape_cast %13 : vector<64xf32> to vector<1x64xf32>
    %15 = arith.addf %11, %14 : vector<1x64xf32>
    %c0_12 = arith.constant 0 : index
    %c0_13 = arith.constant 0 : index
    %16 = vector.load %arg5[%c0_12, %c0_13] : memref<1x64xf32, #tpu.memory_space<vmem>>, vector<1x64xf32>
    tpu.vector_store %arg5[%c0_12, %c0_13], %15 {strides = array<i32>} : memref<1x64xf32, #tpu.memory_space<vmem>>, vector<1x64xf32>,
    %17 = arith.truncf %2 : vector<32x64xf32> to vector<32x64xbf16>
    %c0_14 = arith.constant 0 : index
    %c0_15 = arith.constant 0 : index
    %18 = vector.load %arg3[%c0_14, %c0_15] : memref<32x64xbf16, #tpu.memory_space<vmem>>, vector<32x64xbf16>
    tpu.vector_store %arg3[%c0_14, %c0_15], %17 {strides = array<i32>} : memref<32x64xbf16, #tpu.memory_space<vmem>>, vector<32x64xbf16>,
    return
  }
  func.func @transform_0(%arg0: i32) -> (i32, i32) {
    %c0_i32 = arith.constant 0 : i32
    %c0_i32_0 = arith.constant 0 : i32
    return %arg0, %c0_i32 : i32, i32
  }
  func.func @transform_1(%arg0: i32) -> (i32, i32) {
    %c0_i32 = arith.constant 0 : i32
    %c0_i32_0 = arith.constant 0 : i32
    %c0_i32_1 = arith.constant 0 : i32
    return %c0_i32, %c0_i32_0 : i32, i32
  }
  func.func @transform_2(%arg0: i32) -> (i32, i32) {
    %c0_i32 = arith.constant 0 : i32
    %c0_i32_0 = arith.constant 0 : i32
    return %arg0, %c0_i32 : i32, i32
  }
  func.func @transform_3(%arg0: i32) -> (i32, i32) {
    %c0_i32 = arith.constant 0 : i32
    %c0_i32_0 = arith.constant 0 : i32
    %c0_i32_1 = arith.constant 0 : i32
    return %c0_i32, %c0_i32_0 : i32, i32
  }
  func.func @transform_4(%arg0: i32) -> (i32, i32) {
    %c0_i32 = arith.constant 0 : i32
    %c0_i32_0 = arith.constant 0 : i32
    %c0_i32_1 = arith.constant 0 : i32
    return %c0_i32, %c0_i32_0 : i32, i32
  }
}

module attributes {stable_mosaic.version = 11 : i64} {
  func.func @_bn_fc_relu_kernel(%arg0: i32, %arg1: memref<8x1024xbf16, #tpu.memory_space<vmem>>, %arg2: memref<8x1xf32, #tpu.memory_space<vmem>>, %arg3: memref<1x1024xf32, #tpu.memory_space<vmem>>, %arg4: memref<1x1024xf32, #tpu.memory_space<vmem>>, %arg5: memref<1024x512xbf16, #tpu.memory_space<vmem>>, %arg6: memref<1x512xf32, #tpu.memory_space<vmem>>, %arg7: memref<1x512xf32, #tpu.memory_space<vmem>>, %arg8: memref<8x512xf32, #tpu.memory_space<vmem>>) attributes {dimension_semantics = [#tpu.dimension_semantics<parallel>], iteration_bounds = array<i64: 1>, scalar_prefetch = 0 : i64, scratch_operands = 0 : i64, tpu.core_type = #tpu.core_type<tc>, window_params = [{transform_indices = @transform_0, window_bounds = array<i64: 8, 1024>}, {transform_indices = @transform_1, window_bounds = array<i64: 8, 1>}, {pipeline_mode = #tpu.pipeline_mode<synchronous>, transform_indices = @transform_2, window_bounds = array<i64: 1, 1024>}, {pipeline_mode = #tpu.pipeline_mode<synchronous>, transform_indices = @transform_3, window_bounds = array<i64: 1, 1024>}, {pipeline_mode = #tpu.pipeline_mode<synchronous>, transform_indices = @transform_4, window_bounds = array<i64: 1024, 512>}, {pipeline_mode = #tpu.pipeline_mode<synchronous>, transform_indices = @transform_5, window_bounds = array<i64: 1, 512>}, {pipeline_mode = #tpu.pipeline_mode<synchronous>, transform_indices = @transform_6, window_bounds = array<i64: 1, 512>}, {transform_indices = @transform_7, window_bounds = array<i64: 8, 512>}]} {
    %c0 = arith.constant 0 : index
    %c0_0 = arith.constant 0 : index
    %0 = vector.load %arg1[%c0, %c0_0] : memref<8x1024xbf16, #tpu.memory_space<vmem>>, vector<8x1024xbf16>
    %1 = arith.extf %0 : vector<8x1024xbf16> to vector<8x1024xf32>
    %c0_1 = arith.constant 0 : index
    %c0_2 = arith.constant 0 : index
    %2 = vector.load %arg3[%c0_1, %c0_2] : memref<1x1024xf32, #tpu.memory_space<vmem>>, vector<1x1024xf32>
    %3 = vector.broadcast %2 : vector<1x1024xf32> to vector<8x1024xf32>
    %4 = arith.mulf %1, %3 : vector<8x1024xf32>
    %c0_3 = arith.constant 0 : index
    %c0_4 = arith.constant 0 : index
    %5 = vector.load %arg4[%c0_3, %c0_4] : memref<1x1024xf32, #tpu.memory_space<vmem>>, vector<1x1024xf32>
    %6 = vector.broadcast %5 : vector<1x1024xf32> to vector<8x1024xf32>
    %7 = arith.addf %4, %6 : vector<8x1024xf32>
    %cst = arith.constant 0.000000e+00 : f32
    %8 = vector.broadcast %cst : f32 to vector<8x1024xf32>
    %9 = arith.maximumf %7, %8 : vector<8x1024xf32>
    %10 = arith.truncf %9 : vector<8x1024xf32> to vector<8x1024xbf16>
    %c0_5 = arith.constant 0 : index
    %c0_6 = arith.constant 0 : index
    %11 = vector.load %arg5[%c0_5, %c0_6] : memref<1024x512xbf16, #tpu.memory_space<vmem>>, vector<1024x512xbf16>
    %cst_7 = arith.constant dense<0.000000e+00> : vector<8x512xf32>
    %12 = tpu.matmul %10, %11, %cst_7 {dimension_numbers = #tpu.dot_dimension_numbers<[1], [0], [0], [1], [0, 0, 1, 1], [], []>} : vector<8x1024xbf16>, vector<1024x512xbf16>, vector<8x512xf32> -> vector<8x512xf32>
    %c0_8 = arith.constant 0 : index
    %c0_9 = arith.constant 0 : index
    %13 = vector.load %arg2[%c0_8, %c0_9] : memref<8x1xf32, #tpu.memory_space<vmem>>, vector<8x1xf32>
    %c0_10 = arith.constant 0 : index
    %c0_11 = arith.constant 0 : index
    %14 = vector.load %arg6[%c0_10, %c0_11] : memref<1x512xf32, #tpu.memory_space<vmem>>, vector<1x512xf32>
    %15 = vector.broadcast %13 : vector<8x1xf32> to vector<8x512xf32>
    %16 = vector.broadcast %14 : vector<1x512xf32> to vector<8x512xf32>
    %17 = arith.mulf %15, %16 : vector<8x512xf32>
    %18 = arith.addf %12, %17 : vector<8x512xf32>
    %c0_12 = arith.constant 0 : index
    %c0_13 = arith.constant 0 : index
    %19 = vector.load %arg7[%c0_12, %c0_13] : memref<1x512xf32, #tpu.memory_space<vmem>>, vector<1x512xf32>
    %20 = vector.broadcast %19 : vector<1x512xf32> to vector<8x512xf32>
    %21 = arith.addf %18, %20 : vector<8x512xf32>
    %cst_14 = arith.constant 0.000000e+00 : f32
    %22 = vector.broadcast %cst_14 : f32 to vector<8x512xf32>
    %23 = arith.maximumf %21, %22 : vector<8x512xf32>
    %c0_15 = arith.constant 0 : index
    %c0_16 = arith.constant 0 : index
    %24 = vector.load %arg8[%c0_15, %c0_16] : memref<8x512xf32, #tpu.memory_space<vmem>>, vector<8x512xf32>
    tpu.vector_store %arg8[%c0_15, %c0_16], %23 {strides = array<i32>} : memref<8x512xf32, #tpu.memory_space<vmem>>, vector<8x512xf32>,
    return
  }
  func.func @transform_0(%arg0: i32) -> (i32, i32) {
    %c0_i32 = arith.constant 0 : i32
    %c0_i32_0 = arith.constant 0 : i32
    return %arg0, %c0_i32 : i32, i32
  }
  func.func @transform_1(%arg0: i32) -> (i32, i32) {
    %c0_i32 = arith.constant 0 : i32
    %c0_i32_0 = arith.constant 0 : i32
    return %arg0, %c0_i32 : i32, i32
  }
  func.func @transform_2(%arg0: i32) -> (i32, i32) {
    %c0_i32 = arith.constant 0 : i32
    %c0_i32_0 = arith.constant 0 : i32
    %c0_i32_1 = arith.constant 0 : i32
    return %c0_i32, %c0_i32_0 : i32, i32
  }
  func.func @transform_3(%arg0: i32) -> (i32, i32) {
    %c0_i32 = arith.constant 0 : i32
    %c0_i32_0 = arith.constant 0 : i32
    %c0_i32_1 = arith.constant 0 : i32
    return %c0_i32, %c0_i32_0 : i32, i32
  }
  func.func @transform_4(%arg0: i32) -> (i32, i32) {
    %c0_i32 = arith.constant 0 : i32
    %c0_i32_0 = arith.constant 0 : i32
    %c0_i32_1 = arith.constant 0 : i32
    return %c0_i32, %c0_i32_0 : i32, i32
  }
  func.func @transform_5(%arg0: i32) -> (i32, i32) {
    %c0_i32 = arith.constant 0 : i32
    %c0_i32_0 = arith.constant 0 : i32
    %c0_i32_1 = arith.constant 0 : i32
    return %c0_i32, %c0_i32_0 : i32, i32
  }
  func.func @transform_6(%arg0: i32) -> (i32, i32) {
    %c0_i32 = arith.constant 0 : i32
    %c0_i32_0 = arith.constant 0 : i32
    %c0_i32_1 = arith.constant 0 : i32
    return %c0_i32, %c0_i32_0 : i32, i32
  }
  func.func @transform_7(%arg0: i32) -> (i32, i32) {
    %c0_i32 = arith.constant 0 : i32
    %c0_i32_0 = arith.constant 0 : i32
    return %arg0, %c0_i32 : i32, i32
  }
}

</mosaic_0001>

<llo_original>
// kernel: ppo_forward.7
$region0: #{ppo_forward.7}
  #allocation0 [shape = 'u32[]', space=smem, size = 0x4, offset = 0x4, fixed_abs, tag = 'smem constant byte address 0x4 - core index']
  #allocation1 [shape = 'u32[144,128]{1,0:T(1,128)}', space=vmem, size = 0x12000, scoped, tag = 'internal scratch']
  %s0 = inlined_call_operand.vmem [shape: bf16[456,32], index: 0, kind: input, shape index: {}]
  %s1 = inlined_call_operand.vmem [shape: f32[1,32], index: 1, kind: input, shape index: {}]
  %s2 = inlined_call_operand.vmem [shape: f32[1,32], index: 2, kind: input, shape index: {}]
  %s3 = inlined_call_operand.vmem [shape: bf16[456,32], index: 3, kind: output, shape index: {}]
  %s4 = sld [smem:[#allocation0]]
  $region22: #{ppo_forward.7} parent=0
    _
  %s6 = ssub.s32 1, %s4
  %s7 = scalar_select 0, %s6, %s4
  // Predicated region
  $region2: #{ppo_forward.7} parent=0 // pred_check
    _
  $region3: #{ppo_forward.7} parent=0 // pred_check_branch
    %9 = sbr.rel (0) target = $region5
  $region4: #{ppo_forward.7} parent=0 // pred_region
    _
  $region5: #{ppo_forward.7} parent=0 // pred_fallthru
    _
  // Predicated region
  $region6: #{ppo_forward.7} parent=0 // pred_check
    _
  $region7: #{ppo_forward.7} parent=0 // pred_check_branch
    %11 = sbr.rel (0) target = $region9
  $region8: #{ppo_forward.7} parent=0 // pred_region
    _
  $region9: #{ppo_forward.7} parent=0 // pred_fallthru
    _
  // Predicated region
  $region10: #{ppo_forward.7} parent=0 // pred_check
    _
  $region11: #{ppo_forward.7} parent=0 // pred_check_branch
    %13 = sbr.rel (0) target = $region13
  $region12: #{ppo_forward.7} parent=0 // pred_region
    _
  $region13: #{ppo_forward.7} parent=0 // pred_fallthru
    _
  %v14 = vld [vmem:[%s0] sm:$0xf]
  %v15 = vld [vmem:[%s0 + $0x4] sm:$0xf]
  %v16 = vld [vmem:[%s0 + $0x8] sm:$0xf]
  %v17 = vld [vmem:[%s0 + $0xc] sm:$0xf]
  %v18 = vld [vmem:[%s0 + $0x10] sm:$0xf]
  %v19 = vld [vmem:[%s0 + $0x14] sm:$0xf]
  %v20 = vld [vmem:[%s0 + $0x18] sm:$0xf]
  %v21 = vld [vmem:[%s0 + $0x1c] sm:$0xf]
  %v22 = vld [vmem:[%s0 + $0x20] sm:$0xf]
  %v23 = vld [vmem:[%s0 + $0x24] sm:$0xf]
  %v24 = vld [vmem:[%s0 + $0x28] sm:$0xf]
  %v25 = vld [vmem:[%s0 + $0x2c] sm:$0xf]
  %v26 = vld [vmem:[%s0 + $0x30] sm:$0xf]
  %v27 = vld [vmem:[%s0 + $0x34] sm:$0xf]
  %v28 = vld [vmem:[%s0 + $0x38] sm:$0xf]
  %v29 = vld [vmem:[%s0 + $0x3c] sm:$0xf]
  %v30 = vld [vmem:[%s0 + $0x40] sm:$0xf]
  %v31 = vld [vmem:[%s0 + $0x44] sm:$0xf]
  %v32 = vld [vmem:[%s0 + $0x48] sm:$0xf]
  %v33 = vld [vmem:[%s0 + $0x4c] sm:$0xf]
  %v34 = vld [vmem:[%s0 + $0x50] sm:$0xf]
  %v35 = vld [vmem:[%s0 + $0x54] sm:$0xf]
  %v36 = vld [vmem:[%s0 + $0x58] sm:$0xf]
  %v37 = vld [vmem:[%s0 + $0x5c] sm:$0xf]
  %v38 = vld [vmem:[%s0 + $0x60] sm:$0xf]
  %v39 = vld [vmem:[%s0 + $0x64] sm:$0xf]
  %v40 = vld [vmem:[%s0 + $0x68] sm:$0xf]
  %v41 = vld [vmem:[%s0 + $0x6c] sm:$0xf]
  %v42 = vld [vmem:[%s0 + $0x70] sm:$0xf]
  %v43 = vld [vmem:[%s0 + $0x74] sm:$0xf]
  %v44 = vld [vmem:[%s0 + $0x78] sm:$0xf]
  %v45 = vld [vmem:[%s0 + $0x7c] sm:$0xf]
  %v46 = vld [vmem:[%s0 + $0x80] sm:$0xf]
  %v47 = vld [vmem:[%s0 + $0x84] sm:$0xf]
  %v48 = vld [vmem:[%s0 + $0x88] sm:$0xf]
  %v49 = vld [vmem:[%s0 + $0x8c] sm:$0xf]
  %v50 = vld [vmem:[%s0 + $0x90] sm:$0xf]
  %v51 = vld [vmem:[%s0 + $0x94] sm:$0xf]
  %v52 = vld [vmem:[%s0 + $0x98] sm:$0xf]
  %v53 = vld [vmem:[%s0 + $0x9c] sm:$0xf]
  %v54 = vld [vmem:[%s0 + $0xa0] sm:$0xf]
  %v55 = vld [vmem:[%s0 + $0xa4] sm:$0xf]
  %v56 = vld [vmem:[%s0 + $0xa8] sm:$0xf]
  %v57 = vld [vmem:[%s0 + $0xac] sm:$0xf]
  %v58 = vld [vmem:[%s0 + $0xb0] sm:$0xf]
  %v59 = vld [vmem:[%s0 + $0xb4] sm:$0xf]
  %v60 = vld [vmem:[%s0 + $0xb8] sm:$0xf]
  %v61 = vld [vmem:[%s0 + $0xbc] sm:$0xf]
  %v62 = vld [vmem:[%s0 + $0xc0] sm:$0xf]
  %v63 = vld [vmem:[%s0 + $0xc4] sm:$0xf]
  %v64 = vld [vmem:[%s0 + $0xc8] sm:$0xf]
  %v65 = vld [vmem:[%s0 + $0xcc] sm:$0xf]
  %v66 = vld [vmem:[%s0 + $0xd0] sm:$0xf]
  %v67 = vld [vmem:[%s0 + $0xd4] sm:$0xf]
  %v68 = vld [vmem:[%s0 + $0xd8] sm:$0xf]
  %v69 = vld [vmem:[%s0 + $0xdc] sm:$0xf]
  %v70 = vld [vmem:[%s0 + $0xe0] sm:$0xf]
  %v71 = vunpack.c.l.bf16 %v14
  %v72 = vunpack.c.l.bf16 %v15
  %v73 = vunpack.c.l.bf16 %v16
  %v74 = vunpack.c.l.bf16 %v17
  %v75 = vunpack.c.l.bf16 %v18
  %v76 = vunpack.c.l.bf16 %v19
  %v77 = vunpack.c.l.bf16 %v20
  %v78 = vunpack.c.l.bf16 %v21
  %v79 = vunpack.c.l.bf16 %v22
  %v80 = vunpack.c.l.bf16 %v23
  %v81 = vunpack.c.l.bf16 %v24
  %v82 = vunpack.c.l.bf16 %v25
  %v83 = vunpack.c.l.bf16 %v26
  %v84 = vunpack.c.l.bf16 %v27
  %v85 = vunpack.c.l.bf16 %v28
  %v86 = vunpack.c.l.bf16 %v29
  %v87 = vunpack.c.l.bf16 %v30
  %v88 = vunpack.c.l.bf16 %v31
  %v89 = vunpack.c.l.bf16 %v32
  %v90 = vunpack.c.l.bf16 %v33
  %v91 = vunpack.c.l.bf16 %v34
  %v92 = vunpack.c.l.bf16 %v35
  %v93 = vunpack.c.l.bf16 %v36
  %v94 = vunpack.c.l.bf16 %v37
  %v95 = vunpack.c.l.bf16 %v38
  %v96 = vunpack.c.l.bf16 %v39
  %v97 = vunpack.c.l.bf16 %v40
  %v98 = vunpack.c.l.bf16 %v41
  %v99 = vunpack.c.l.bf16 %v42
  %v100 = vunpack.c.l.bf16 %v43
  %v101 = vunpack.c.l.bf16 %v44
  %v102 = vunpack.c.l.bf16 %v45
  %v103 = vunpack.c.l.bf16 %v46
  %v104 = vunpack.c.l.bf16 %v47
  %v105 = vunpack.c.l.bf16 %v48
  %v106 = vunpack.c.l.bf16 %v49
  %v107 = vunpack.c.l.bf16 %v50
  %v108 = vunpack.c.l.bf16 %v51
  %v109 = vunpack.c.l.bf16 %v52
  %v110 = vunpack.c.l.bf16 %v53
  %v111 = vunpack.c.l.bf16 %v54
  %v112 = vunpack.c.l.bf16 %v55
  %v113 = vunpack.c.l.bf16 %v56
  %v114 = vunpack.c.l.bf16 %v57
  %v115 = vunpack.c.l.bf16 %v58
  %v116 = vunpack.c.l.bf16 %v59
  %v117 = vunpack.c.l.bf16 %v60
  %v118 = vunpack.c.l.bf16 %v61
  %v119 = vunpack.c.l.bf16 %v62
  %v120 = vunpack.c.l.bf16 %v63
  %v121 = vunpack.c.l.bf16 %v64
  %v122 = vunpack.c.l.bf16 %v65
  %v123 = vunpack.c.l.bf16 %v66
  %v124 = vunpack.c.l.bf16 %v67
  %v125 = vunpack.c.l.bf16 %v68
  %v126 = vunpack.c.l.bf16 %v69
  %v127 = vunpack.c.l.bf16 %v70
  %v128 = vld [vmem:[%s1] sm:$0x1]
  %v130 = vlaneseq
  %v131 = vshrl.u32 %v130, 7
  %v132 = vsub.s32 0, %v131
  %v133 = vrot.slane %v128, %v132
  %v135 = vmul.f32 %v71, %v133
  %v136 = vmul.f32 %v72, %v133
  %v137 = vmul.f32 %v73, %v133
  %v138 = vmul.f32 %v74, %v133
  %v139 = vmul.f32 %v75, %v133
  %v140 = vmul.f32 %v76, %v133
  %v141 = vmul.f32 %v77, %v133
  %v142 = vmul.f32 %v78, %v133
  %v143 = vmul.f32 %v79, %v133
  %v144 = vmul.f32 %v80, %v133
  %v145 = vmul.f32 %v81, %v133
  %v146 = vmul.f32 %v82, %v133
  %v147 = vmul.f32 %v83, %v133
  %v148 = vmul.f32 %v84, %v133
  %v149 = vmul.f32 %v85, %v133
  %v150 = vmul.f32 %v86, %v133
  %v151 = vmul.f32 %v87, %v133
  %v152 = vmul.f32 %v88, %v133
  %v153 = vmul.f32 %v89, %v133
  %v154 = vmul.f32 %v90, %v133
  %v155 = vmul.f32 %v91, %v133
  %v156 = vmul.f32 %v92, %v133
  %v157 = vmul.f32 %v93, %v133
  %v158 = vmul.f32 %v94, %v133
  %v159 = vmul.f32 %v95, %v133
  %v160 = vmul.f32 %v96, %v133
  %v161 = vmul.f32 %v97, %v133
  %v162 = vmul.f32 %v98, %v133
  %v163 = vmul.f32 %v99, %v133
  %v164 = vmul.f32 %v100, %v133
  %v165 = vmul.f32 %v101, %v133
  %v166 = vmul.f32 %v102, %v133
  %v167 = vmul.f32 %v103, %v133
  %v168 = vmul.f32 %v104, %v133
  %v169 = vmul.f32 %v105, %v133
  %v170 = vmul.f32 %v106, %v133
  %v171 = vmul.f32 %v107, %v133
  %v172 = vmul.f32 %v108, %v133
  %v173 = vmul.f32 %v109, %v133
  %v174 = vmul.f32 %v110, %v133
  %v175 = vmul.f32 %v111, %v133
  %v176 = vmul.f32 %v112, %v133
  %v177 = vmul.f32 %v113, %v133
  %v178 = vmul.f32 %v114, %v133
  %v179 = vmul.f32 %v115, %v133
  %v180 = vmul.f32 %v116, %v133
  %v181 = vmul.f32 %v117, %v133
  %v182 = vmul.f32 %v118, %v133
  %v183 = vmul.f32 %v119, %v133
  %v184 = vmul.f32 %v120, %v133
  %v185 = vmul.f32 %v121, %v133
  %v186 = vmul.f32 %v122, %v133
  %v187 = vmul.f32 %v123, %v133
  %v188 = vmul.f32 %v124, %v133
  %v189 = vmul.f32 %v125, %v133
  %v190 = vmul.f32 %v126, %v133
  %v191 = vmul.f32 %v127, %v133
  %v192 = vld [vmem:[%s2] sm:$0x1]
  %v194 = vlaneseq
  %v195 = vshrl.u32 %v194, 7
  %v196 = vsub.s32 0, %v195
  %v197 = vrot.slane %v192, %v196
  %v199 = vadd.f32 %v135, %v197
  %v200 = vadd.f32 %v136, %v197
  %v201 = vadd.f32 %v137, %v197
  %v202 = vadd.f32 %v138, %v197
  %v203 = vadd.f32 %v139, %v197
  %v204 = vadd.f32 %v140, %v197
  %v205 = vadd.f32 %v141, %v197
  %v206 = vadd.f32 %v142, %v197
  %v207 = vadd.f32 %v143, %v197
  %v208 = vadd.f32 %v144, %v197
  %v209 = vadd.f32 %v145, %v197
  %v210 = vadd.f32 %v146, %v197
  %v211 = vadd.f32 %v147, %v197
  %v212 = vadd.f32 %v148, %v197
  %v213 = vadd.f32 %v149, %v197
  %v214 = vadd.f32 %v150, %v197
  %v215 = vadd.f32 %v151, %v197
  %v216 = vadd.f32 %v152, %v197
  %v217 = vadd.f32 %v153, %v197
  %v218 = vadd.f32 %v154, %v197
  %v219 = vadd.f32 %v155, %v197
  %v220 = vadd.f32 %v156, %v197
  %v221 = vadd.f32 %v157, %v197
  %v222 = vadd.f32 %v158, %v197
  %v223 = vadd.f32 %v159, %v197
  %v224 = vadd.f32 %v160, %v197
  %v225 = vadd.f32 %v161, %v197
  %v226 = vadd.f32 %v162, %v197
  %v227 = vadd.f32 %v163, %v197
  %v228 = vadd.f32 %v164, %v197
  %v229 = vadd.f32 %v165, %v197
  %v230 = vadd.f32 %v166, %v197
  %v231 = vadd.f32 %v167, %v197
  %v232 = vadd.f32 %v168, %v197
  %v233 = vadd.f32 %v169, %v197
  %v234 = vadd.f32 %v170, %v197
  %v235 = vadd.f32 %v171, %v197
  %v236 = vadd.f32 %v172, %v197
  %v237 = vadd.f32 %v173, %v197
  %v238 = vadd.f32 %v174, %v197
  %v239 = vadd.f32 %v175, %v197
  %v240 = vadd.f32 %v176, %v197
  %v241 = vadd.f32 %v177, %v197
  %v242 = vadd.f32 %v178, %v197
  %v243 = vadd.f32 %v179, %v197
  %v244 = vadd.f32 %v180, %v197
  %v245 = vadd.f32 %v181, %v197
  %v246 = vadd.f32 %v182, %v197
  %v247 = vadd.f32 %v183, %v197
  %v248 = vadd.f32 %v184, %v197
  %v249 = vadd.f32 %v185, %v197
  %v250 = vadd.f32 %v186, %v197
  %v251 = vadd.f32 %v187, %v197
  %v252 = vadd.f32 %v188, %v197
  %v253 = vadd.f32 %v189, %v197
  %v254 = vadd.f32 %v190, %v197
  %v255 = vadd.f32 %v191, %v197
  %v256 = vmax.f32 %v199, 0.0
  %v257 = vmax.f32 %v200, 0.0
  %v258 = vmax.f32 %v201, 0.0
  %v259 = vmax.f32 %v202, 0.0
  %v260 = vmax.f32 %v203, 0.0
  %v261 = vmax.f32 %v204, 0.0
  %v262 = vmax.f32 %v205, 0.0
  %v263 = vmax.f32 %v206, 0.0
  %v264 = vmax.f32 %v207, 0.0
  %v265 = vmax.f32 %v208, 0.0
  %v266 = vmax.f32 %v209, 0.0
  %v267 = vmax.f32 %v210, 0.0
  %v268 = vmax.f32 %v211, 0.0
  %v269 = vmax.f32 %v212, 0.0
  %v270 = vmax.f32 %v213, 0.0
  %v271 = vmax.f32 %v214, 0.0
  %v272 = vmax.f32 %v215, 0.0
  %v273 = vmax.f32 %v216, 0.0
  %v274 = vmax.f32 %v217, 0.0
  %v275 = vmax.f32 %v218, 0.0
  %v276 = vmax.f32 %v219, 0.0
  %v277 = vmax.f32 %v220, 0.0
  %v278 = vmax.f32 %v221, 0.0
  %v279 = vmax.f32 %v222, 0.0
  %v280 = vmax.f32 %v223, 0.0
  %v281 = vmax.f32 %v224, 0.0
  %v282 = vmax.f32 %v225, 0.0
  %v283 = vmax.f32 %v226, 0.0
  %v284 = vmax.f32 %v227, 0.0
  %v285 = vmax.f32 %v228, 0.0
  %v286 = vmax.f32 %v229, 0.0
  %v287 = vmax.f32 %v230, 0.0
  %v288 = vmax.f32 %v231, 0.0
  %v289 = vmax.f32 %v232, 0.0
  %v290 = vmax.f32 %v233, 0.0
  %v291 = vmax.f32 %v234, 0.0
  %v292 = vmax.f32 %v235, 0.0
  %v293 = vmax.f32 %v236, 0.0
  %v294 = vmax.f32 %v237, 0.0
  %v295 = vmax.f32 %v238, 0.0
  %v296 = vmax.f32 %v239, 0.0
  %v297 = vmax.f32 %v240, 0.0
  %v298 = vmax.f32 %v241, 0.0
  %v299 = vmax.f32 %v242, 0.0
  %v300 = vmax.f32 %v243, 0.0
  %v301 = vmax.f32 %v244, 0.0
  %v302 = vmax.f32 %v245, 0.0
  %v303 = vmax.f32 %v246, 0.0
  %v304 = vmax.f32 %v247, 0.0
  %v305 = vmax.f32 %v248, 0.0
  %v306 = vmax.f32 %v249, 0.0
  %v307 = vmax.f32 %v250, 0.0
  %v308 = vmax.f32 %v251, 0.0
  %v309 = vmax.f32 %v252, 0.0
  %v310 = vmax.f32 %v253, 0.0
  %v311 = vmax.f32 %v254, 0.0
  %v312 = vmax.f32 %v255, 0.0
  %v313 = vpack.c.bf16 %v257, %v256
  %v314 = vpack.c.bf16 %v259, %v258
  %v315 = vpack.c.bf16 %v261, %v260
  %v316 = vpack.c.bf16 %v263, %v262
  %v317 = vpack.c.bf16 %v265, %v264
  %v318 = vpack.c.bf16 %v267, %v266
  %v319 = vpack.c.bf16 %v269, %v268
  %v320 = vpack.c.bf16 %v271, %v270
  %v321 = vpack.c.bf16 %v273, %v272
  %v322 = vpack.c.bf16 %v275, %v274
  %v323 = vpack.c.bf16 %v277, %v276
  %v324 = vpack.c.bf16 %v279, %v278
  %v325 = vpack.c.bf16 %v281, %v280
  %v326 = vpack.c.bf16 %v283, %v282
  %v327 = vpack.c.bf16 %v285, %v284
  %v328 = vpack.c.bf16 %v287, %v286
  %v329 = vpack.c.bf16 %v289, %v288
  %v330 = vpack.c.bf16 %v291, %v290
  %v331 = vpack.c.bf16 %v293, %v292
  %v332 = vpack.c.bf16 %v295, %v294
  %v333 = vpack.c.bf16 %v297, %v296
  %v334 = vpack.c.bf16 %v299, %v298
  %v335 = vpack.c.bf16 %v301, %v300
  %v336 = vpack.c.bf16 %v303, %v302
  %v337 = vpack.c.bf16 %v305, %v304
  %v338 = vpack.c.bf16 %v307, %v306
  %v339 = vpack.c.bf16 %v309, %v308
  %v340 = vpack.c.bf16 %v311, %v310
  %v341 = vpack.c.bf16 %v312, %v312
  %v371 = vunpack.c.l.b16 %v313
  %v372 = vunpack.c.h.b16 %v313
  %v373 = vunpack.c.l.b16 %v314
  %v374 = vunpack.c.h.b16 %v314
  %v375 = vunpack.c.l.b16 %v315
  %v376 = vunpack.c.h.b16 %v315
  %v377 = vunpack.c.l.b16 %v316
  %v378 = vunpack.c.h.b16 %v316
  %v379 = vunpack.c.l.b16 %v317
  %v380 = vunpack.c.h.b16 %v317
  %v381 = vunpack.c.l.b16 %v318
  %v382 = vunpack.c.h.b16 %v318
  %v383 = vunpack.c.l.b16 %v319
  %v384 = vunpack.c.h.b16 %v319
  %v385 = vunpack.c.l.b16 %v320
  %v386 = vunpack.c.h.b16 %v320
  %v387 = vunpack.c.l.b16 %v321
  %v388 = vunpack.c.h.b16 %v321
  %v389 = vunpack.c.l.b16 %v322
  %v390 = vunpack.c.h.b16 %v322
  %v391 = vunpack.c.l.b16 %v323
  %v392 = vunpack.c.h.b16 %v323
  %v393 = vunpack.c.l.b16 %v324
  %v394 = vunpack.c.h.b16 %v324
  %v395 = vunpack.c.l.b16 %v325
  %v396 = vunpack.c.h.b16 %v325
  %v397 = vunpack.c.l.b16 %v326
  %v398 = vunpack.c.h.b16 %v326
  %v399 = vunpack.c.l.b16 %v327
  %v400 = vunpack.c.h.b16 %v327
  %v401 = vunpack.c.l.b16 %v328
  %v402 = vunpack.c.h.b16 %v328
  %v403 = vunpack.c.l.b16 %v329
  %v404 = vunpack.c.h.b16 %v329
  %v405 = vunpack.c.l.b16 %v330
  %v406 = vunpack.c.h.b16 %v330
  %v407 = vunpack.c.l.b16 %v331
  %v408 = vunpack.c.h.b16 %v331
  %v409 = vunpack.c.l.b16 %v332
  %v410 = vunpack.c.h.b16 %v332
  %v411 = vunpack.c.l.b16 %v333
  %v412 = vunpack.c.h.b16 %v333
  %v413 = vunpack.c.l.b16 %v334
  %v414 = vunpack.c.h.b16 %v334
  %v415 = vunpack.c.l.b16 %v335
  %v416 = vunpack.c.h.b16 %v335
  %v417 = vunpack.c.l.b16 %v336
  %v418 = vunpack.c.h.b16 %v336
  %v419 = vunpack.c.l.b16 %v337
  %v420 = vunpack.c.h.b16 %v337
  %v421 = vunpack.c.l.b16 %v338
  %v422 = vunpack.c.h.b16 %v338
  %v423 = vunpack.c.l.b16 %v339
  %v424 = vunpack.c.h.b16 %v339
  %v425 = vunpack.c.l.b16 %v340
  %v426 = vunpack.c.h.b16 %v340
  %v427 = vunpack.c.l.b16 %v341
  %v428 = vpack.c.b16 %v371, %v371
  %v429 = vpack.c.b16 %v372, %v372
  %v430 = vpack.c.b16 %v373, %v373
  %v431 = vpack.c.b16 %v374, %v374
  %v432 = vpack.c.b16 %v375, %v375
  %v433 = vpack.c.b16 %v376, %v376
  %v434 = vpack.c.b16 %v377, %v377
  %v435 = vpack.c.b16 %v378, %v378
  %v436 = vpack.c.b16 %v379, %v379
  %v437 = vpack.c.b16 %v380, %v380
  %v438 = vpack.c.b16 %v381, %v381
  %v439 = vpack.c.b16 %v382, %v382
  %v440 = vpack.c.b16 %v383, %v383
  %v441 = vpack.c.b16 %v384, %v384
  %v442 = vpack.c.b16 %v385, %v385
  %v443 = vpack.c.b16 %v386, %v386
  %v444 = vpack.c.b16 %v387, %v387
  %v445 = vpack.c.b16 %v388, %v388
  %v446 = vpack.c.b16 %v389, %v389
  %v447 = vpack.c.b16 %v390, %v390
  %v448 = vpack.c.b16 %v391, %v391
  %v449 = vpack.c.b16 %v392, %v392
  %v450 = vpack.c.b16 %v393, %v393
  %v451 = vpack.c.b16 %v394, %v394
  %v452 = vpack.c.b16 %v395, %v395
  %v453 = vpack.c.b16 %v396, %v396
  %v454 = vpack.c.b16 %v397, %v397
  %v455 = vpack.c.b16 %v398, %v398
  %v456 = vpack.c.b16 %v399, %v399
  %v457 = vpack.c.b16 %v400, %v400
  %v458 = vpack.c.b16 %v401, %v401
  %v459 = vpack.c.b16 %v402, %v402
  %v460 = vpack.c.b16 %v403, %v403
  %v461 = vpack.c.b16 %v404, %v404
  %v462 = vpack.c.b16 %v405, %v405
  %v463 = vpack.c.b16 %v406, %v406
  %v464 = vpack.c.b16 %v407, %v407
  %v465 = vpack.c.b16 %v408, %v408
  %v466 = vpack.c.b16 %v409, %v409
  %v467 = vpack.c.b16 %v410, %v410
  %v468 = vpack.c.b16 %v411, %v411
  %v469 = vpack.c.b16 %v412, %v412
  %v470 = vpack.c.b16 %v413, %v413
  %v471 = vpack.c.b16 %v414, %v414
  %v472 = vpack.c.b16 %v415, %v415
  %v473 = vpack.c.b16 %v416, %v416
  %v474 = vpack.c.b16 %v417, %v417
  %v475 = vpack.c.b16 %v418, %v418
  %v476 = vpack.c.b16 %v419, %v419
  %v477 = vpack.c.b16 %v420, %v420
  %v478 = vpack.c.b16 %v421, %v421
  %v479 = vpack.c.b16 %v422, %v422
  %v480 = vpack.c.b16 %v423, %v423
  %v481 = vpack.c.b16 %v424, %v424
  %v482 = vpack.c.b16 %v425, %v425
  %v483 = vpack.c.b16 %v426, %v426
  %v484 = vpack.c.b16 %v427, %v427
  %vm542 = vcmask 257024
  %543 = vst.msk [vmem:[%s3] sm:$0xf] %vm542, %v428
  %544 = vst.msk [vmem:[%s3 + $0x4] sm:$0xf] %vm542, %v429
  %545 = vst.msk [vmem:[%s3 + $0x8] sm:$0xf] %vm542, %v430
  %546 = vst.msk [vmem:[%s3 + $0xc] sm:$0xf] %vm542, %v431
  %547 = vst.msk [vmem:[%s3 + $0x10] sm:$0xf] %vm542, %v432
  %548 = vst.msk [vmem:[%s3 + $0x14] sm:$0xf] %vm542, %v433
  %549 = vst.msk [vmem:[%s3 + $0x18] sm:$0xf] %vm542, %v434
  %550 = vst.msk [vmem:[%s3 + $0x1c] sm:$0xf] %vm542, %v435
  %551 = vst.msk [vmem:[%s3 + $0x20] sm:$0xf] %vm542, %v436
  %552 = vst.msk [vmem:[%s3 + $0x24] sm:$0xf] %vm542, %v437
  %553 = vst.msk [vmem:[%s3 + $0x28] sm:$0xf] %vm542, %v438
  %554 = vst.msk [vmem:[%s3 + $0x2c] sm:$0xf] %vm542, %v439
  %555 = vst.msk [vmem:[%s3 + $0x30] sm:$0xf] %vm542, %v440
  %556 = vst.msk [vmem:[%s3 + $0x34] sm:$0xf] %vm542, %v441
  %557 = vst.msk [vmem:[%s3 + $0x38] sm:$0xf] %vm542, %v442
  %558 = vst.msk [vmem:[%s3 + $0x3c] sm:$0xf] %vm542, %v443
  %559 = vst.msk [vmem:[%s3 + $0x40] sm:$0xf] %vm542, %v444
  %560 = vst.msk [vmem:[%s3 + $0x44] sm:$0xf] %vm542, %v445
  %561 = vst.msk [vmem:[%s3 + $0x48] sm:$0xf] %vm542, %v446
  %562 = vst.msk [vmem:[%s3 + $0x4c] sm:$0xf] %vm542, %v447
  %563 = vst.msk [vmem:[%s3 + $0x50] sm:$0xf] %vm542, %v448
  %564 = vst.msk [vmem:[%s3 + $0x54] sm:$0xf] %vm542, %v449
  %565 = vst.msk [vmem:[%s3 + $0x58] sm:$0xf] %vm542, %v450
  %566 = vst.msk [vmem:[%s3 + $0x5c] sm:$0xf] %vm542, %v451
  %567 = vst.msk [vmem:[%s3 + $0x60] sm:$0xf] %vm542, %v452
  %568 = vst.msk [vmem:[%s3 + $0x64] sm:$0xf] %vm542, %v453
  %569 = vst.msk [vmem:[%s3 + $0x68] sm:$0xf] %vm542, %v454
  %570 = vst.msk [vmem:[%s3 + $0x6c] sm:$0xf] %vm542, %v455
  %571 = vst.msk [vmem:[%s3 + $0x70] sm:$0xf] %vm542, %v456
  %572 = vst.msk [vmem:[%s3 + $0x74] sm:$0xf] %vm542, %v457
  %573 = vst.msk [vmem:[%s3 + $0x78] sm:$0xf] %vm542, %v458
  %574 = vst.msk [vmem:[%s3 + $0x7c] sm:$0xf] %vm542, %v459
  %575 = vst.msk [vmem:[%s3 + $0x80] sm:$0xf] %vm542, %v460
  %576 = vst.msk [vmem:[%s3 + $0x84] sm:$0xf] %vm542, %v461
  %577 = vst.msk [vmem:[%s3 + $0x88] sm:$0xf] %vm542, %v462
  %578 = vst.msk [vmem:[%s3 + $0x8c] sm:$0xf] %vm542, %v463
  %579 = vst.msk [vmem:[%s3 + $0x90] sm:$0xf] %vm542, %v464
  %580 = vst.msk [vmem:[%s3 + $0x94] sm:$0xf] %vm542, %v465
  %581 = vst.msk [vmem:[%s3 + $0x98] sm:$0xf] %vm542, %v466
  %582 = vst.msk [vmem:[%s3 + $0x9c] sm:$0xf] %vm542, %v467
  %583 = vst.msk [vmem:[%s3 + $0xa0] sm:$0xf] %vm542, %v468
  %584 = vst.msk [vmem:[%s3 + $0xa4] sm:$0xf] %vm542, %v469
  %585 = vst.msk [vmem:[%s3 + $0xa8] sm:$0xf] %vm542, %v470
  %586 = vst.msk [vmem:[%s3 + $0xac] sm:$0xf] %vm542, %v471
  %587 = vst.msk [vmem:[%s3 + $0xb0] sm:$0xf] %vm542, %v472
  %588 = vst.msk [vmem:[%s3 + $0xb4] sm:$0xf] %vm542, %v473
  %589 = vst.msk [vmem:[%s3 + $0xb8] sm:$0xf] %vm542, %v474
  %590 = vst.msk [vmem:[%s3 + $0xbc] sm:$0xf] %vm542, %v475
  %591 = vst.msk [vmem:[%s3 + $0xc0] sm:$0xf] %vm542, %v476
  %592 = vst.msk [vmem:[%s3 + $0xc4] sm:$0xf] %vm542, %v477
  %593 = vst.msk [vmem:[%s3 + $0xc8] sm:$0xf] %vm542, %v478
  %594 = vst.msk [vmem:[%s3 + $0xcc] sm:$0xf] %vm542, %v479
  %595 = vst.msk [vmem:[%s3 + $0xd0] sm:$0xf] %vm542, %v480
  %596 = vst.msk [vmem:[%s3 + $0xd4] sm:$0xf] %vm542, %v481
  %597 = vst.msk [vmem:[%s3 + $0xd8] sm:$0xf] %vm542, %v482
  %598 = vst.msk [vmem:[%s3 + $0xdc] sm:$0xf] %vm542, %v483
  %599 = vst.msk [vmem:[%s3 + $0xe0] sm:$0xf] %vm542, %v484
  // Predicated region
  $region14: #{ppo_forward.7} parent=0 // pred_check
    _
  $region15: #{ppo_forward.7} parent=0 // pred_check_branch
    %601 = sbr.rel (0) target = $region17
  $region16: #{ppo_forward.7} parent=0 // pred_region
    _
  $region17: #{ppo_forward.7} parent=0 // pred_fallthru
    _
  // Predicated region
  $region18: #{ppo_forward.7} parent=0 // pred_check
    _
  $region19: #{ppo_forward.7} parent=0 // pred_check_branch
    %603 = sbr.rel (0) target = $region21
  $region20: #{ppo_forward.7} parent=0 // pred_region
    _
  $region21: #{ppo_forward.7} parent=0 // pred_fallthru
    _

// kernel: ppo_forward.6
$region0: #{ppo_forward.6}
  #allocation0 [shape = 'u32[]', space=smem, size = 0x4, offset = 0x4, fixed_abs, tag = 'smem constant byte address 0x4 - core index']
  #allocation1 [shape = 'u32[144,128]{1,0:T(1,128)}', space=vmem, size = 0x12000, scoped, tag = 'internal scratch']
  %s0 = inlined_call_operand.vmem [shape: bf16[456,256], index: 0, kind: input, shape index: {}]
  %s1 = inlined_call_operand.vmem [shape: bf16[256,32], index: 1, kind: input, shape index: {}]
  %s2 = inlined_call_operand.vmem [shape: bf16[456,32], index: 2, kind: output, shape index: {0}]
  %s3 = inlined_call_operand.vmem [shape: f32[1,32], index: 3, kind: output, shape index: {1}]
  %s4 = inlined_call_operand.vmem [shape: f32[1,32], index: 4, kind: output, shape index: {2}]
  %5 = xla_tuple %s2, %s3, %s4
  %s6 = sld [smem:[#allocation0]]
  $region38: #{ppo_forward.6} parent=0
    _
  %s8 = ssub.s32 1, %s6
  %s9 = scalar_select 0, %s8, %s6
  // Predicated region
  $region2: #{ppo_forward.6} parent=0 // pred_check
    _
  $region3: #{ppo_forward.6} parent=0 // pred_check_branch
    %11 = sbr.rel (0) target = $region5
  $region4: #{ppo_forward.6} parent=0 // pred_region
    _
  $region5: #{ppo_forward.6} parent=0 // pred_fallthru
    _
  // Predicated region
  $region6: #{ppo_forward.6} parent=0 // pred_check
    _
  $region7: #{ppo_forward.6} parent=0 // pred_check_branch
    %13 = sbr.rel (0) target = $region9
  $region8: #{ppo_forward.6} parent=0 // pred_region
    _
  $region9: #{ppo_forward.6} parent=0 // pred_fallthru
    _
  %v15 = vld [vmem:[%s0] sm:$0xff]
  %v16 = vld [vmem:[%s0 + $0x8] sm:$0xff]
  %v17 = vld [vmem:[%s0 + $0x10] sm:$0xff]
  %v18 = vld [vmem:[%s0 + $0x18] sm:$0xff]
  %v19 = vld [vmem:[%s0 + $0x20] sm:$0xff]
  %v20 = vld [vmem:[%s0 + $0x28] sm:$0xff]
  %v21 = vld [vmem:[%s0 + $0x30] sm:$0xff]
  %v22 = vld [vmem:[%s0 + $0x38] sm:$0xff]
  %v23 = vld [vmem:[%s0 + $0x40] sm:$0xff]
  %v24 = vld [vmem:[%s0 + $0x48] sm:$0xff]
  %v25 = vld [vmem:[%s0 + $0x50] sm:$0xff]
  %v26 = vld [vmem:[%s0 + $0x58] sm:$0xff]
  %v27 = vld [vmem:[%s0 + $0x60] sm:$0xff]
  %v28 = vld [vmem:[%s0 + $0x68] sm:$0xff]
  %v29 = vld [vmem:[%s0 + $0x70] sm:$0xff]
  %v30 = vld [vmem:[%s0 + $0x78] sm:$0xff]
  %v31 = vld [vmem:[%s0 + $0x80] sm:$0xff]
  %v32 = vld [vmem:[%s0 + $0x88] sm:$0xff]
  %v33 = vld [vmem:[%s0 + $0x90] sm:$0xff]
  %v34 = vld [vmem:[%s0 + $0x98] sm:$0xff]
  %v35 = vld [vmem:[%s0 + $0xa0] sm:$0xff]
  %v36 = vld [vmem:[%s0 + $0xa8] sm:$0xff]
  %v37 = vld [vmem:[%s0 + $0xb0] sm:$0xff]
  %v38 = vld [vmem:[%s0 + $0xb8] sm:$0xff]
  %v39 = vld [vmem:[%s0 + $0xc0] sm:$0xff]
  %v40 = vld [vmem:[%s0 + $0xc8] sm:$0xff]
  %v41 = vld [vmem:[%s0 + $0xd0] sm:$0xff]
  %v42 = vld [vmem:[%s0 + $0xd8] sm:$0xff]
  %v43 = vld [vmem:[%s0 + $0xe0] sm:$0xff]
  %v44 = vld [vmem:[%s0 + $0xe8] sm:$0xff]
  %v45 = vld [vmem:[%s0 + $0xf0] sm:$0xff]
  %v46 = vld [vmem:[%s0 + $0xf8] sm:$0xff]
  %v47 = vld [vmem:[%s0 + $0x100] sm:$0xff]
  %v48 = vld [vmem:[%s0 + $0x108] sm:$0xff]
  %v49 = vld [vmem:[%s0 + $0x110] sm:$0xff]
  %v50 = vld [vmem:[%s0 + $0x118] sm:$0xff]
  %v51 = vld [vmem:[%s0 + $0x120] sm:$0xff]
  %v52 = vld [vmem:[%s0 + $0x128] sm:$0xff]
  %v53 = vld [vmem:[%s0 + $0x130] sm:$0xff]
  %v54 = vld [vmem:[%s0 + $0x138] sm:$0xff]
  %v55 = vld [vmem:[%s0 + $0x140] sm:$0xff]
  %v56 = vld [vmem:[%s0 + $0x148] sm:$0xff]
  %v57 = vld [vmem:[%s0 + $0x150] sm:$0xff]
  %v58 = vld [vmem:[%s0 + $0x158] sm:$0xff]
  %v59 = vld [vmem:[%s0 + $0x160] sm:$0xff]
  %v60 = vld [vmem:[%s0 + $0x168] sm:$0xff]
  %v61 = vld [vmem:[%s0 + $0x170] sm:$0xff]
  %v62 = vld [vmem:[%s0 + $0x178] sm:$0xff]
  %v63 = vld [vmem:[%s0 + $0x180] sm:$0xff]
  %v64 = vld [vmem:[%s0 + $0x188] sm:$0xff]
  %v65 = vld [vmem:[%s0 + $0x190] sm:$0xff]
  %v66 = vld [vmem:[%s0 + $0x198] sm:$0xff]
  %v67 = vld [vmem:[%s0 + $0x1a0] sm:$0xff]
  %v68 = vld [vmem:[%s0 + $0x1a8] sm:$0xff]
  %v69 = vld [vmem:[%s0 + $0x1b0] sm:$0xff]
  %v70 = vld [vmem:[%s0 + $0x1b8] sm:$0xff]
  %v71 = vld [vmem:[%s0 + $0x1c0] sm:$0xff]
  %v72 = vld [vmem:[%s1] sm:$0xf]
  %v73 = vld [vmem:[%s1 + $0x4] sm:$0xf]
  %v74 = vld [vmem:[%s1 + $0x8] sm:$0xf]
  %v75 = vld [vmem:[%s1 + $0xc] sm:$0xf]
  %v76 = vld [vmem:[%s1 + $0x10] sm:$0xf]
  %v77 = vld [vmem:[%s1 + $0x14] sm:$0xf]
  %v78 = vld [vmem:[%s1 + $0x18] sm:$0xf]
  %v79 = vld [vmem:[%s1 + $0x1c] sm:$0xf]
  %v80 = vld [vmem:[%s1 + $0x20] sm:$0xf]
  %v81 = vld [vmem:[%s1 + $0x24] sm:$0xf]
  %v82 = vld [vmem:[%s1 + $0x28] sm:$0xf]
  %v83 = vld [vmem:[%s1 + $0x2c] sm:$0xf]
  %v84 = vld [vmem:[%s1 + $0x30] sm:$0xf]
  %v85 = vld [vmem:[%s1 + $0x34] sm:$0xf]
  %v86 = vld [vmem:[%s1 + $0x38] sm:$0xf]
  %v87 = vld [vmem:[%s1 + $0x3c] sm:$0xf]
  %v88 = vld [vmem:[%s1 + $0x40] sm:$0xf]
  %v89 = vld [vmem:[%s1 + $0x44] sm:$0xf]
  %v90 = vld [vmem:[%s1 + $0x48] sm:$0xf]
  %v91 = vld [vmem:[%s1 + $0x4c] sm:$0xf]
  %v92 = vld [vmem:[%s1 + $0x50] sm:$0xf]
  %v93 = vld [vmem:[%s1 + $0x54] sm:$0xf]
  %v94 = vld [vmem:[%s1 + $0x58] sm:$0xf]
  %v95 = vld [vmem:[%s1 + $0x5c] sm:$0xf]
  %v96 = vld [vmem:[%s1 + $0x60] sm:$0xf]
  %v97 = vld [vmem:[%s1 + $0x64] sm:$0xf]
  %v98 = vld [vmem:[%s1 + $0x68] sm:$0xf]
  %v99 = vld [vmem:[%s1 + $0x6c] sm:$0xf]
  %v100 = vld [vmem:[%s1 + $0x70] sm:$0xf]
  %v101 = vld [vmem:[%s1 + $0x74] sm:$0xf]
  %v102 = vld [vmem:[%s1 + $0x78] sm:$0xf]
  %v103 = vld [vmem:[%s1 + $0x7c] sm:$0xf]
  %v161 = vunpack.c.l.b16 %v15
  %v162 = vunpack.c.h.b16 %v15
  %v163 = vunpack.c.l.b16 %v16
  %v164 = vunpack.c.h.b16 %v16
  %v165 = vunpack.c.l.b16 %v17
  %v166 = vunpack.c.h.b16 %v17
  %v167 = vunpack.c.l.b16 %v18
  %v168 = vunpack.c.h.b16 %v18
  %v169 = vunpack.c.l.b16 %v19
  %v170 = vunpack.c.h.b16 %v19
  %v171 = vunpack.c.l.b16 %v20
  %v172 = vunpack.c.h.b16 %v20
  %v173 = vunpack.c.l.b16 %v21
  %v174 = vunpack.c.h.b16 %v21
  %v175 = vunpack.c.l.b16 %v22
  %v176 = vunpack.c.h.b16 %v22
  %v177 = vunpack.c.l.b16 %v23
  %v178 = vunpack.c.h.b16 %v23
  %v179 = vunpack.c.l.b16 %v24
  %v180 = vunpack.c.h.b16 %v24
  %v181 = vunpack.c.l.b16 %v25
  %v182 = vunpack.c.h.b16 %v25
  %v183 = vunpack.c.l.b16 %v26
  %v184 = vunpack.c.h.b16 %v26
  %v185 = vunpack.c.l.b16 %v27
  %v186 = vunpack.c.h.b16 %v27
  %v187 = vunpack.c.l.b16 %v28
  %v188 = vunpack.c.h.b16 %v28
  %v189 = vunpack.c.l.b16 %v29
  %v190 = vunpack.c.h.b16 %v29
  %v191 = vunpack.c.l.b16 %v30
  %v192 = vunpack.c.h.b16 %v30
  %v193 = vunpack.c.l.b16 %v31
  %v194 = vunpack.c.h.b16 %v31
  %v195 = vunpack.c.l.b16 %v32
  %v196 = vunpack.c.h.b16 %v32
  %v197 = vunpack.c.l.b16 %v33
  %v198 = vunpack.c.h.b16 %v33
  %v199 = vunpack.c.l.b16 %v34
  %v200 = vunpack.c.h.b16 %v34
  %v201 = vunpack.c.l.b16 %v35
  %v202 = vunpack.c.h.b16 %v35
  %v203 = vunpack.c.l.b16 %v36
  %v204 = vunpack.c.h.b16 %v36
  %v205 = vunpack.c.l.b16 %v37
  %v206 = vunpack.c.h.b16 %v37
  %v207 = vunpack.c.l.b16 %v38
  %v208 = vunpack.c.h.b16 %v38
  %v209 = vunpack.c.l.b16 %v39
  %v210 = vunpack.c.h.b16 %v39
  %v211 = vunpack.c.l.b16 %v40
  %v212 = vunpack.c.h.b16 %v40
  %v213 = vunpack.c.l.b16 %v41
  %v214 = vunpack.c.h.b16 %v41
  %v215 = vunpack.c.l.b16 %v42
  %v216 = vunpack.c.h.b16 %v42
  %v217 = vunpack.c.l.b16 %v43
  %v218 = vunpack.c.h.b16 %v43
  %v219 = vunpack.c.l.b16 %v44
  %v220 = vunpack.c.h.b16 %v44
  %v221 = vunpack.c.l.b16 %v45
  %v222 = vunpack.c.h.b16 %v45
  %v223 = vunpack.c.l.b16 %v46
  %v224 = vunpack.c.h.b16 %v46
  %v225 = vunpack.c.l.b16 %v47
  %v226 = vunpack.c.h.b16 %v47
  %v227 = vunpack.c.l.b16 %v48
  %v228 = vunpack.c.h.b16 %v48
  %v229 = vunpack.c.l.b16 %v49
  %v230 = vunpack.c.h.b16 %v49
  %v231 = vunpack.c.l.b16 %v50
  %v232 = vunpack.c.h.b16 %v50
  %v233 = vunpack.c.l.b16 %v51
  %v234 = vunpack.c.h.b16 %v51
  %v235 = vunpack.c.l.b16 %v52
  %v236 = vunpack.c.h.b16 %v52
  %v237 = vunpack.c.l.b16 %v53
  %v238 = vunpack.c.h.b16 %v53
  %v239 = vunpack.c.l.b16 %v54
  %v240 = vunpack.c.h.b16 %v54
  %v241 = vunpack.c.l.b16 %v55
  %v242 = vunpack.c.h.b16 %v55
  %v243 = vunpack.c.l.b16 %v56
  %v244 = vunpack.c.h.b16 %v56
  %v245 = vunpack.c.l.b16 %v57
  %v246 = vunpack.c.h.b16 %v57
  %v247 = vunpack.c.l.b16 %v58
  %v248 = vunpack.c.h.b16 %v58
  %v249 = vunpack.c.l.b16 %v59
  %v250 = vunpack.c.h.b16 %v59
  %v251 = vunpack.c.l.b16 %v60
  %v252 = vunpack.c.h.b16 %v60
  %v253 = vunpack.c.l.b16 %v61
  %v254 = vunpack.c.h.b16 %v61
  %v255 = vunpack.c.l.b16 %v62
  %v256 = vunpack.c.h.b16 %v62
  %v257 = vunpack.c.l.b16 %v63
  %v258 = vunpack.c.h.b16 %v63
  %v259 = vunpack.c.l.b16 %v64
  %v260 = vunpack.c.h.b16 %v64
  %v261 = vunpack.c.l.b16 %v65
  %v262 = vunpack.c.h.b16 %v65
  %v263 = vunpack.c.l.b16 %v66
  %v264 = vunpack.c.h.b16 %v66
  %v265 = vunpack.c.l.b16 %v67
  %v266 = vunpack.c.h.b16 %v67
  %v267 = vunpack.c.l.b16 %v68
  %v268 = vunpack.c.h.b16 %v68
  %v269 = vunpack.c.l.b16 %v69
  %v270 = vunpack.c.h.b16 %v69
  %v271 = vunpack.c.l.b16 %v70
  %v272 = vunpack.c.h.b16 %v70
  %v273 = vunpack.c.l.b16 %v71
  %v274 = vunpack.c.h.b16 %v71
  %v275 = vpack.c.b16 %v163, %v161
  %v276 = vpack.c.b16 %v164, %v162
  %v277 = vpack.c.b16 %v167, %v165
  %v278 = vpack.c.b16 %v168, %v166
  %v279 = vpack.c.b16 %v171, %v169
  %v280 = vpack.c.b16 %v172, %v170
  %v281 = vpack.c.b16 %v175, %v173
  %v282 = vpack.c.b16 %v176, %v174
  %v283 = vpack.c.b16 %v179, %v177
  %v284 = vpack.c.b16 %v180, %v178
  %v285 = vpack.c.b16 %v183, %v181
  %v286 = vpack.c.b16 %v184, %v182
  %v287 = vpack.c.b16 %v187, %v185
  %v288 = vpack.c.b16 %v188, %v186
  %v289 = vpack.c.b16 %v191, %v189
  %v290 = vpack.c.b16 %v192, %v190
  %v291 = vpack.c.b16 %v195, %v193
  %v292 = vpack.c.b16 %v196, %v194
  %v293 = vpack.c.b16 %v199, %v197
  %v294 = vpack.c.b16 %v200, %v198
  %v295 = vpack.c.b16 %v203, %v201
  %v296 = vpack.c.b16 %v204, %v202
  %v297 = vpack.c.b16 %v207, %v205
  %v298 = vpack.c.b16 %v208, %v206
  %v299 = vpack.c.b16 %v211, %v209
  %v300 = vpack.c.b16 %v212, %v210
  %v301 = vpack.c.b16 %v215, %v213
  %v302 = vpack.c.b16 %v216, %v214
  %v303 = vpack.c.b16 %v219, %v217
  %v304 = vpack.c.b16 %v220, %v218
  %v305 = vpack.c.b16 %v223, %v221
  %v306 = vpack.c.b16 %v224, %v222
  %v307 = vpack.c.b16 %v227, %v225
  %v308 = vpack.c.b16 %v228, %v226
  %v309 = vpack.c.b16 %v231, %v229
  %v310 = vpack.c.b16 %v232, %v230
  %v311 = vpack.c.b16 %v235, %v233
  %v312 = vpack.c.b16 %v236, %v234
  %v313 = vpack.c.b16 %v239, %v237
  %v314 = vpack.c.b16 %v240, %v238
  %v315 = vpack.c.b16 %v243, %v241
  %v316 = vpack.c.b16 %v244, %v242
  %v317 = vpack.c.b16 %v247, %v245
  %v318 = vpack.c.b16 %v248, %v246
  %v319 = vpack.c.b16 %v251, %v249
  %v320 = vpack.c.b16 %v252, %v250
  %v321 = vpack.c.b16 %v255, %v253
  %v322 = vpack.c.b16 %v256, %v254
  %v323 = vpack.c.b16 %v259, %v257
  %v324 = vpack.c.b16 %v260, %v258
  %v325 = vpack.c.b16 %v263, %v261
  %v326 = vpack.c.b16 %v264, %v262
  %v327 = vpack.c.b16 %v267, %v265
  %v328 = vpack.c.b16 %v268, %v266
  %v329 = vpack.c.b16 %v271, %v269
  %v330 = vpack.c.b16 %v272, %v270
  %v331 = vpack.c.b16 %v273, %v273
  %v332 = vpack.c.b16 %v274, %v274
  %v423 = vunpack.c.l.b16 %v72
  %v424 = vunpack.c.l.b16 %v73
  %v425 = vunpack.c.l.b16 %v74
  %v426 = vunpack.c.l.b16 %v75
  %v427 = vunpack.c.l.b16 %v76
  %v428 = vunpack.c.l.b16 %v77
  %v429 = vunpack.c.l.b16 %v78
  %v430 = vunpack.c.l.b16 %v79
  %v431 = vunpack.c.l.b16 %v80
  %v432 = vunpack.c.l.b16 %v81
  %v433 = vunpack.c.l.b16 %v82
  %v434 = vunpack.c.l.b16 %v83
  %v435 = vunpack.c.l.b16 %v84
  %v436 = vunpack.c.l.b16 %v85
  %v437 = vunpack.c.l.b16 %v86
  %v438 = vunpack.c.l.b16 %v87
  %v439 = vunpack.c.l.b16 %v88
  %v440 = vunpack.c.l.b16 %v89
  %v441 = vunpack.c.l.b16 %v90
  %v442 = vunpack.c.l.b16 %v91
  %v443 = vunpack.c.l.b16 %v92
  %v444 = vunpack.c.l.b16 %v93
  %v445 = vunpack.c.l.b16 %v94
  %v446 = vunpack.c.l.b16 %v95
  %v447 = vunpack.c.l.b16 %v96
  %v448 = vunpack.c.l.b16 %v97
  %v449 = vunpack.c.l.b16 %v98
  %v450 = vunpack.c.l.b16 %v99
  %v451 = vunpack.c.l.b16 %v100
  %v452 = vunpack.c.l.b16 %v101
  %v453 = vunpack.c.l.b16 %v102
  %v454 = vunpack.c.l.b16 %v103
  %v455 = vpack.c.b16 %v424, %v423
  %v456 = vpack.c.b16 %v426, %v425
  %v457 = vpack.c.b16 %v428, %v427
  %v458 = vpack.c.b16 %v430, %v429
  %v459 = vpack.c.b16 %v432, %v431
  %v460 = vpack.c.b16 %v434, %v433
  %v461 = vpack.c.b16 %v436, %v435
  %v462 = vpack.c.b16 %v438, %v437
  %v463 = vpack.c.b16 %v440, %v439
  %v464 = vpack.c.b16 %v442, %v441
  %v465 = vpack.c.b16 %v444, %v443
  %v466 = vpack.c.b16 %v446, %v445
  %v467 = vpack.c.b16 %v448, %v447
  %v468 = vpack.c.b16 %v450, %v449
  %v469 = vpack.c.b16 %v452, %v451
  %v470 = vpack.c.b16 %v454, %v453
  %487 = vmatprep.subr.bf16.mxu0 0
  %488 = vmatpush1.bf16.msra.mxu0 %v455
  %489 = vmatprep.subr.bf16.mxu0 0
  %490 = vmatpush1.bf16.msra.mxu0 %v456
  %491 = vmatprep.subr.bf16.mxu0 0
  %492 = vmatpush1.bf16.msra.mxu0 %v457
  %493 = vmatprep.subr.bf16.mxu0 0
  %494 = vmatpush1.bf16.msra.mxu0 %v458
  %495 = vmatprep.subr.bf16.mxu0 0
  %496 = vmatpush1.bf16.msra.mxu0 %v459
  %497 = vmatprep.subr.bf16.mxu0 0
  %498 = vmatpush1.bf16.msra.mxu0 %v460
  %499 = vmatprep.subr.bf16.mxu0 0
  %500 = vmatpush1.bf16.msra.mxu0 %v461
  %501 = vmatprep.subr.bf16.mxu0 0
  %502 = vmatpush1.bf16.msra.mxu0 %v462
  %503 = vmatprep.subr.bf16.mxu0 0
  %504 = vmatpush1.bf16.msra.mxu0 %v463
  %505 = vmatprep.subr.bf16.mxu0 0
  %506 = vmatpush1.bf16.msra.mxu0 %v464
  %507 = vmatprep.subr.bf16.mxu0 0
  %508 = vmatpush1.bf16.msra.mxu0 %v465
  %509 = vmatprep.subr.bf16.mxu0 0
  %510 = vmatpush1.bf16.msra.mxu0 %v466
  %511 = vmatprep.subr.bf16.mxu0 0
  %512 = vmatpush1.bf16.msra.mxu0 %v467
  %513 = vmatprep.subr.bf16.mxu0 0
  %514 = vmatpush1.bf16.msra.mxu0 %v468
  %515 = vmatprep.subr.bf16.mxu0 0
  %516 = vmatpush1.bf16.msra.mxu0 %v469
  %517 = vmatprep.subr.bf16.mxu0 0
  %518 = vmatpush1.bf16.msra.mxu0 %v470
  %519 = vmatprep.mubr.bf16.mxu0 %v276
  %520 = vmatmul.mubr.bf16.gmra.mrb[0].mxu0 %v275
  %v521 = vpop.f32.mrb[0].mxu0
  %v522 = vadd.f32 0.0, %v521
  %v523 = vpop.f32.mrb[0].mxu0
  %v524 = vpop.f32.mrb[0].mxu0
  %v525 = vadd.f32 0.0, %v524
  %v526 = vpop.f32.mrb[0].mxu0
  %527 = vmatprep.mubr.bf16.mxu0 %v278
  %528 = vmatmul.mubr.bf16.gmra.mrb[0].mxu0 %v277
  %v529 = vpop.f32.mrb[0].mxu0
  %v530 = vadd.f32 0.0, %v529
  %v531 = vpop.f32.mrb[0].mxu0
  %v532 = vpop.f32.mrb[0].mxu0
  %v533 = vadd.f32 0.0, %v532
  %v534 = vpop.f32.mrb[0].mxu0
  %535 = vmatprep.mubr.bf16.mxu0 %v280
  %536 = vmatmul.mubr.bf16.gmra.mrb[0].mxu0 %v279
  %v537 = vpop.f32.mrb[0].mxu0
  %v538 = vadd.f32 0.0, %v537
  %v539 = vpop.f32.mrb[0].mxu0
  %v540 = vpop.f32.mrb[0].mxu0
  %v541 = vadd.f32 0.0, %v540
  %v542 = vpop.f32.mrb[0].mxu0
  %543 = vmatprep.mubr.bf16.mxu0 %v282
  %544 = vmatmul.mubr.bf16.gmra.mrb[0].mxu0 %v281
  %v545 = vpop.f32.mrb[0].mxu0
  %v546 = vadd.f32 0.0, %v545
  %v547 = vpop.f32.mrb[0].mxu0
  %v548 = vpop.f32.mrb[0].mxu0
  %v549 = vadd.f32 0.0, %v548
  %v550 = vpop.f32.mrb[0].mxu0
  %551 = vmatprep.mubr.bf16.mxu0 %v284
  %552 = vmatmul.mubr.bf16.gmra.mrb[0].mxu0 %v283
  %v553 = vpop.f32.mrb[0].mxu0
  %v554 = vadd.f32 0.0, %v553
  %v555 = vpop.f32.mrb[0].mxu0
  %v556 = vpop.f32.mrb[0].mxu0
  %v557 = vadd.f32 0.0, %v556
  %v558 = vpop.f32.mrb[0].mxu0
  %559 = vmatprep.mubr.bf16.mxu0 %v286
  %560 = vmatmul.mubr.bf16.gmra.mrb[0].mxu0 %v285
  %v561 = vpop.f32.mrb[0].mxu0
  %v562 = vadd.f32 0.0, %v561
  %v563 = vpop.f32.mrb[0].mxu0
  %v564 = vpop.f32.mrb[0].mxu0
  %v565 = vadd.f32 0.0, %v564
  %v566 = vpop.f32.mrb[0].mxu0
  %567 = vmatprep.mubr.bf16.mxu0 %v288
  %568 = vmatmul.mubr.bf16.gmra.mrb[0].mxu0 %v287
  %v569 = vpop.f32.mrb[0].mxu0
  %v570 = vadd.f32 0.0, %v569
  %v571 = vpop.f32.mrb[0].mxu0
  %v572 = vpop.f32.mrb[0].mxu0
  %v573 = vadd.f32 0.0, %v572
  %v574 = vpop.f32.mrb[0].mxu0
  %575 = vmatprep.mubr.bf16.mxu0 %v290
  %576 = vmatmul.mubr.bf16.gmra.mrb[0].mxu0 %v289
  %v577 = vpop.f32.mrb[0].mxu0
  %v578 = vadd.f32 0.0, %v577
  %v579 = vpop.f32.mrb[0].mxu0
  %v580 = vpop.f32.mrb[0].mxu0
  %v581 = vadd.f32 0.0, %v580
  %v582 = vpop.f32.mrb[0].mxu0
  %583 = vmatprep.mubr.bf16.mxu0 %v292
  %584 = vmatmul.mubr.bf16.gmra.mrb[0].mxu0 %v291
  %v585 = vpop.f32.mrb[0].mxu0
  %v586 = vadd.f32 0.0, %v585
  %v587 = vpop.f32.mrb[0].mxu0
  %v588 = vpop.f32.mrb[0].mxu0
  %v589 = vadd.f32 0.0, %v588
  %v590 = vpop.f32.mrb[0].mxu0
  %591 = vmatprep.mubr.bf16.mxu0 %v294
  %592 = vmatmul.mubr.bf16.gmra.mrb[0].mxu0 %v293
  %v593 = vpop.f32.mrb[0].mxu0
  %v594 = vadd.f32 0.0, %v593
  %v595 = vpop.f32.mrb[0].mxu0
  %v596 = vpop.f32.mrb[0].mxu0
  %v597 = vadd.f32 0.0, %v596
  %v598 = vpop.f32.mrb[0].mxu0
  %599 = vmatprep.mubr.bf16.mxu0 %v296
  %600 = vmatmul.mubr.bf16.gmra.mrb[0].mxu0 %v295
  %v601 = vpop.f32.mrb[0].mxu0
  %v602 = vadd.f32 0.0, %v601
  %v603 = vpop.f32.mrb[0].mxu0
  %v604 = vpop.f32.mrb[0].mxu0
  %v605 = vadd.f32 0.0, %v604
  %v606 = vpop.f32.mrb[0].mxu0
  %607 = vmatprep.mubr.bf16.mxu0 %v298
  %608 = vmatmul.mubr.bf16.gmra.mrb[0].mxu0 %v297
  %v609 = vpop.f32.mrb[0].mxu0
  %v610 = vadd.f32 0.0, %v609
  %v611 = vpop.f32.mrb[0].mxu0
  %v612 = vpop.f32.mrb[0].mxu0
  %v613 = vadd.f32 0.0, %v612
  %v614 = vpop.f32.mrb[0].mxu0
  %615 = vmatprep.mubr.bf16.mxu0 %v300
  %616 = vmatmul.mubr.bf16.gmra.mrb[0].mxu0 %v299
  %v617 = vpop.f32.mrb[0].mxu0
  %v618 = vadd.f32 0.0, %v617
  %v619 = vpop.f32.mrb[0].mxu0
  %v620 = vpop.f32.mrb[0].mxu0
  %v621 = vadd.f32 0.0, %v620
  %v622 = vpop.f32.mrb[0].mxu0
  %623 = vmatprep.mubr.bf16.mxu0 %v302
  %624 = vmatmul.mubr.bf16.gmra.mrb[0].mxu0 %v301
  %v625 = vpop.f32.mrb[0].mxu0
  %v626 = vadd.f32 0.0, %v625
  %v627 = vpop.f32.mrb[0].mxu0
  %v628 = vpop.f32.mrb[0].mxu0
  %v629 = vadd.f32 0.0, %v628
  %v630 = vpop.f32.mrb[0].mxu0
  %631 = vmatprep.mubr.bf16.mxu0 %v304
  %632 = vmatmul.mubr.bf16.gmra.mrb[0].mxu0 %v303
  %v633 = vpop.f32.mrb[0].mxu0
  %v634 = vadd.f32 0.0, %v633
  %v635 = vpop.f32.mrb[0].mxu0
  %v636 = vpop.f32.mrb[0].mxu0
  %v637 = vadd.f32 0.0, %v636
  %v638 = vpop.f32.mrb[0].mxu0
  %639 = vmatprep.mubr.bf16.mxu0 %v306
  %640 = vmatmul.mubr.bf16.gmra.mrb[0].mxu0 %v305
  %v641 = vpop.f32.mrb[0].mxu0
  %v642 = vadd.f32 0.0, %v641
  %v643 = vpop.f32.mrb[0].mxu0
  %v644 = vpop.f32.mrb[0].mxu0
  %v645 = vadd.f32 0.0, %v644
  %v646 = vpop.f32.mrb[0].mxu0
  %647 = vmatprep.mubr.bf16.mxu0 %v308
  %648 = vmatmul.mubr.bf16.gmra.mrb[0].mxu0 %v307
  %v649 = vpop.f32.mrb[0].mxu0
  %v650 = vadd.f32 0.0, %v649
  %v651 = vpop.f32.mrb[0].mxu0
  %v652 = vpop.f32.mrb[0].mxu0
  %v653 = vadd.f32 0.0, %v652
  %v654 = vpop.f32.mrb[0].mxu0
  %655 = vmatprep.mubr.bf16.mxu0 %v310
  %656 = vmatmul.mubr.bf16.gmra.mrb[0].mxu0 %v309
  %v657 = vpop.f32.mrb[0].mxu0
  %v658 = vadd.f32 0.0, %v657
  %v659 = vpop.f32.mrb[0].mxu0
  %v660 = vpop.f32.mrb[0].mxu0
  %v661 = vadd.f32 0.0, %v660
  %v662 = vpop.f32.mrb[0].mxu0
  %663 = vmatprep.mubr.bf16.mxu0 %v312
  %664 = vmatmul.mubr.bf16.gmra.mrb[0].mxu0 %v311
  %v665 = vpop.f32.mrb[0].mxu0
  %v666 = vadd.f32 0.0, %v665
  %v667 = vpop.f32.mrb[0].mxu0
  %v668 = vpop.f32.mrb[0].mxu0
  %v669 = vadd.f32 0.0, %v668
  %v670 = vpop.f32.mrb[0].mxu0
  %671 = vmatprep.mubr.bf16.mxu0 %v314
  %672 = vmatmul.mubr.bf16.gmra.mrb[0].mxu0 %v313
  %v673 = vpop.f32.mrb[0].mxu0
  %v674 = vadd.f32 0.0, %v673
  %v675 = vpop.f32.mrb[0].mxu0
  %v676 = vpop.f32.mrb[0].mxu0
  %v677 = vadd.f32 0.0, %v676
  %v678 = vpop.f32.mrb[0].mxu0
  %679 = vmatprep.mubr.bf16.mxu0 %v316
  %680 = vmatmul.mubr.bf16.gmra.mrb[0].mxu0 %v315
  %v681 = vpop.f32.mrb[0].mxu0
  %v682 = vadd.f32 0.0, %v681
  %v683 = vpop.f32.mrb[0].mxu0
  %v684 = vpop.f32.mrb[0].mxu0
  %v685 = vadd.f32 0.0, %v684
  %v686 = vpop.f32.mrb[0].mxu0
  %687 = vmatprep.mubr.bf16.mxu0 %v318
  %688 = vmatmul.mubr.bf16.gmra.mrb[0].mxu0 %v317
  %v689 = vpop.f32.mrb[0].mxu0
  %v690 = vadd.f32 0.0, %v689
  %v691 = vpop.f32.mrb[0].mxu0
  %v692 = vpop.f32.mrb[0].mxu0
  %v693 = vadd.f32 0.0, %v692
  %v694 = vpop.f32.mrb[0].mxu0
  %695 = vmatprep.mubr.bf16.mxu0 %v320
  %696 = vmatmul.mubr.bf16.gmra.mrb[0].mxu0 %v319
  %v697 = vpop.f32.mrb[0].mxu0
  %v698 = vadd.f32 0.0, %v697
  %v699 = vpop.f32.mrb[0].mxu0
  %v700 = vpop.f32.mrb[0].mxu0
  %v701 = vadd.f32 0.0, %v700
  %v702 = vpop.f32.mrb[0].mxu0
  %703 = vmatprep.mubr.bf16.mxu0 %v322
  %704 = vmatmul.mubr.bf16.gmra.mrb[0].mxu0 %v321
  %v705 = vpop.f32.mrb[0].mxu0
  %v706 = vadd.f32 0.0, %v705
  %v707 = vpop.f32.mrb[0].mxu0
  %v708 = vpop.f32.mrb[0].mxu0
  %v709 = vadd.f32 0.0, %v708
  %v710 = vpop.f32.mrb[0].mxu0
  %711 = vmatprep.mubr.bf16.mxu0 %v324
  %712 = vmatmul.mubr.bf16.gmra.mrb[0].mxu0 %v323
  %v713 = vpop.f32.mrb[0].mxu0
  %v714 = vadd.f32 0.0, %v713
  %v715 = vpop.f32.mrb[0].mxu0
  %v716 = vpop.f32.mrb[0].mxu0
  %v717 = vadd.f32 0.0, %v716
  %v718 = vpop.f32.mrb[0].mxu0
  %719 = vmatprep.mubr.bf16.mxu0 %v326
  %720 = vmatmul.mubr.bf16.gmra.mrb[0].mxu0 %v325
  %v721 = vpop.f32.mrb[0].mxu0
  %v722 = vadd.f32 0.0, %v721
  %v723 = vpop.f32.mrb[0].mxu0
  %v724 = vpop.f32.mrb[0].mxu0
  %v725 = vadd.f32 0.0, %v724
  %v726 = vpop.f32.mrb[0].mxu0
  %727 = vmatprep.mubr.bf16.mxu0 %v328
  %728 = vmatmul.mubr.bf16.gmra.mrb[0].mxu0 %v327
  %v729 = vpop.f32.mrb[0].mxu0
  %v730 = vadd.f32 0.0, %v729
  %v731 = vpop.f32.mrb[0].mxu0
  %v732 = vpop.f32.mrb[0].mxu0
  %v733 = vadd.f32 0.0, %v732
  %v734 = vpop.f32.mrb[0].mxu0
  %735 = vmatprep.mubr.bf16.mxu0 %v330
  %736 = vmatmul.mubr.bf16.gmra.mrb[0].mxu0 %v329
  %v737 = vpop.f32.mrb[0].mxu0
  %v738 = vadd.f32 0.0, %v737
  %v739 = vpop.f32.mrb[0].mxu0
  %v740 = vpop.f32.mrb[0].mxu0
  %v741 = vadd.f32 0.0, %v740
  %v742 = vpop.f32.mrb[0].mxu0
  %743 = vmatprep.mubr.bf16.mxu0 %v332
  %744 = vmatmul.mubr.bf16.gmra.mrb[0].mxu0 %v331
  %v745 = vpop.f32.mrb[0].mxu0
  %v746 = vadd.f32 0.0, %v745
  %v747 = vpop.f32.mrb[0].mxu0
  %v748 = vpop.f32.mrb[0].mxu0
  %v749 = vpop.f32.mrb[0].mxu0
  %750 = vdwg.mxu0
  %p751 = scmp.eq.s32.totalorder 0, 0
  // Predicated region
  $region10: #{ppo_forward.6} parent=0 // pred_check
    %p752 = pneg %p751
  $region11: #{ppo_forward.6} parent=0 // pred_check_branch
    %754 = sbr.rel (%p752) target = $region13
  $region12: #{ppo_forward.6} parent=0 // pred_region
    %vm755 = vcmask 253952
    %756 = vst.msk [vmem:[%s3] sm:$0x1] %vm755, 0.0
    %757 = vst.msk [vmem:[%s4] sm:$0x1] %vm755, 0.0
  $region13: #{ppo_forward.6} parent=0 // pred_fallthru
    _
  %v758 = vld [vmem:[%s3] sm:$0x1]
  %vm759 = vcmask 261120
  %v760 = vsel %vm759, %v522, 0.0
  %v761 = vsel %vm759, %v525, 0.0
  %v762 = vadd.f32 %v760, %v761
  %v763 = vsel %vm759, %v530, 0.0
  %v764 = vadd.f32 %v762, %v763
  %v765 = vsel %vm759, %v533, 0.0
  %v766 = vadd.f32 %v764, %v765
  %v767 = vsel %vm759, %v538, 0.0
  %v768 = vadd.f32 %v766, %v767
  %v769 = vsel %vm759, %v541, 0.0
  %v770 = vadd.f32 %v768, %v769
  %v771 = vsel %vm759, %v546, 0.0
  %v772 = vadd.f32 %v770, %v771
  %v773 = vsel %vm759, %v549, 0.0
  %v774 = vadd.f32 %v772, %v773
  %v775 = vsel %vm759, %v554, 0.0
  %v776 = vadd.f32 %v774, %v775
  %v777 = vsel %vm759, %v557, 0.0
  %v778 = vadd.f32 %v776, %v777
  %v779 = vsel %vm759, %v562, 0.0
  %v780 = vadd.f32 %v778, %v779
  %v781 = vsel %vm759, %v565, 0.0
  %v782 = vadd.f32 %v780, %v781
  %v783 = vsel %vm759, %v570, 0.0
  %v784 = vadd.f32 %v782, %v783
  %v785 = vsel %vm759, %v573, 0.0
  %v786 = vadd.f32 %v784, %v785
  %v787 = vsel %vm759, %v578, 0.0
  %v788 = vadd.f32 %v786, %v787
  %v789 = vsel %vm759, %v581, 0.0
  %v790 = vadd.f32 %v788, %v789
  %v791 = vsel %vm759, %v586, 0.0
  %v792 = vadd.f32 %v790, %v791
  %v793 = vsel %vm759, %v589, 0.0
  %v794 = vadd.f32 %v792, %v793
  %v795 = vsel %vm759, %v594, 0.0
  %v796 = vadd.f32 %v794, %v795
  %v797 = vsel %vm759, %v597, 0.0
  %v798 = vadd.f32 %v796, %v797
  %v799 = vsel %vm759, %v602, 0.0
  %v800 = vadd.f32 %v798, %v799
  %v801 = vsel %vm759, %v605, 0.0
  %v802 = vadd.f32 %v800, %v801
  %v803 = vsel %vm759, %v610, 0.0
  %v804 = vadd.f32 %v802, %v803
  %v805 = vsel %vm759, %v613, 0.0
  %v806 = vadd.f32 %v804, %v805
  %v807 = vsel %vm759, %v618, 0.0
  %v808 = vadd.f32 %v806, %v807
  %v809 = vsel %vm759, %v621, 0.0
  %v810 = vadd.f32 %v808, %v809
  %v811 = vsel %vm759, %v626, 0.0
  %v812 = vadd.f32 %v810, %v811
  %v813 = vsel %vm759, %v629, 0.0
  %v814 = vadd.f32 %v812, %v813
  %v815 = vsel %vm759, %v634, 0.0
  %v816 = vadd.f32 %v814, %v815
  %v817 = vsel %vm759, %v637, 0.0
  %v818 = vadd.f32 %v816, %v817
  %v819 = vsel %vm759, %v642, 0.0
  %v820 = vadd.f32 %v818, %v819
  %v821 = vsel %vm759, %v645, 0.0
  %v822 = vadd.f32 %v820, %v821
  %v823 = vsel %vm759, %v650, 0.0
  %v824 = vadd.f32 %v822, %v823
  %v825 = vsel %vm759, %v653, 0.0
  %v826 = vadd.f32 %v824, %v825
  %v827 = vsel %vm759, %v658, 0.0
  %v828 = vadd.f32 %v826, %v827
  %v829 = vsel %vm759, %v661, 0.0
  %v830 = vadd.f32 %v828, %v829
  %v831 = vsel %vm759, %v666, 0.0
  %v832 = vadd.f32 %v830, %v831
  %v833 = vsel %vm759, %v669, 0.0
  %v834 = vadd.f32 %v832, %v833
  %v835 = vsel %vm759, %v674, 0.0
  %v836 = vadd.f32 %v834, %v835
  %v837 = vsel %vm759, %v677, 0.0
  %v838 = vadd.f32 %v836, %v837
  %v839 = vsel %vm759, %v682, 0.0
  %v840 = vadd.f32 %v838, %v839
  %v841 = vsel %vm759, %v685, 0.0
  %v842 = vadd.f32 %v840, %v841
  %v843 = vsel %vm759, %v690, 0.0
  %v844 = vadd.f32 %v842, %v843
  %v845 = vsel %vm759, %v693, 0.0
  %v846 = vadd.f32 %v844, %v845
  %v847 = vsel %vm759, %v698, 0.0
  %v848 = vadd.f32 %v846, %v847
  %v849 = vsel %vm759, %v701, 0.0
  %v850 = vadd.f32 %v848, %v849
  %v851 = vsel %vm759, %v706, 0.0
  %v852 = vadd.f32 %v850, %v851
  %v853 = vsel %vm759, %v709, 0.0
  %v854 = vadd.f32 %v852, %v853
  %v855 = vsel %vm759, %v714, 0.0
  %v856 = vadd.f32 %v854, %v855
  %v857 = vsel %vm759, %v717, 0.0
  %v858 = vadd.f32 %v856, %v857
  %v859 = vsel %vm759, %v722, 0.0
  %v860 = vadd.f32 %v858, %v859
  %v861 = vsel %vm759, %v725, 0.0
  %v862 = vadd.f32 %v860, %v861
  %v863 = vsel %vm759, %v730, 0.0
  %v864 = vadd.f32 %v862, %v863
  %v865 = vsel %vm759, %v733, 0.0
  %v866 = vadd.f32 %v864, %v865
  %v867 = vsel %vm759, %v738, 0.0
  %v868 = vadd.f32 %v866, %v867
  %v869 = vsel %vm759, %v741, 0.0
  %v870 = vadd.f32 %v868, %v869
  %v871 = vsel %vm759, %v746, 0.0
  %v872 = vadd.f32 %v870, %v871
  %v873 = vrot.slane %v872, 4
  %v874 = vadd.f32 %v872, %v873
  %v875 = vrot.slane %v874, 2
  %v876 = vadd.f32 %v874, %v875
  %v877 = vrot.slane %v876, 1
  %v878 = vadd.f32 %v876, %v877
  %v879 = vadd.f32 %v758, %v878
  %vm880 = vcmask 253952
  %881 = vst.msk [vmem:[%s3] sm:$0x1] %vm880, %v879
  %v882 = vld [vmem:[%s4] sm:$0x1]
  %v883 = vmul.f32 %v522, %v522
  %v884 = vmul.f32 %v525, %v525
  %v885 = vmul.f32 %v530, %v530
  %v886 = vmul.f32 %v533, %v533
  %v887 = vmul.f32 %v538, %v538
  %v888 = vmul.f32 %v541, %v541
  %v889 = vmul.f32 %v546, %v546
  %v890 = vmul.f32 %v549, %v549
  %v891 = vmul.f32 %v554, %v554
  %v892 = vmul.f32 %v557, %v557
  %v893 = vmul.f32 %v562, %v562
  %v894 = vmul.f32 %v565, %v565
  %v895 = vmul.f32 %v570, %v570
  %v896 = vmul.f32 %v573, %v573
  %v897 = vmul.f32 %v578, %v578
  %v898 = vmul.f32 %v581, %v581
  %v899 = vmul.f32 %v586, %v586
  %v900 = vmul.f32 %v589, %v589
  %v901 = vmul.f32 %v594, %v594
  %v902 = vmul.f32 %v597, %v597
  %v903 = vmul.f32 %v602, %v602
  %v904 = vmul.f32 %v605, %v605
  %v905 = vmul.f32 %v610, %v610
  %v906 = vmul.f32 %v613, %v613
  %v907 = vmul.f32 %v618, %v618
  %v908 = vmul.f32 %v621, %v621
  %v909 = vmul.f32 %v626, %v626
  %v910 = vmul.f32 %v629, %v629
  %v911 = vmul.f32 %v634, %v634
  %v912 = vmul.f32 %v637, %v637
  %v913 = vmul.f32 %v642, %v642
  %v914 = vmul.f32 %v645, %v645
  %v915 = vmul.f32 %v650, %v650
  %v916 = vmul.f32 %v653, %v653
  %v917 = vmul.f32 %v658, %v658
  %v918 = vmul.f32 %v661, %v661
  %v919 = vmul.f32 %v666, %v666
  %v920 = vmul.f32 %v669, %v669
  %v921 = vmul.f32 %v674, %v674
  %v922 = vmul.f32 %v677, %v677
  %v923 = vmul.f32 %v682, %v682
  %v924 = vmul.f32 %v685, %v685
  %v925 = vmul.f32 %v690, %v690
  %v926 = vmul.f32 %v693, %v693
  %v927 = vmul.f32 %v698, %v698
  %v928 = vmul.f32 %v701, %v701
  %v929 = vmul.f32 %v706, %v706
  %v930 = vmul.f32 %v709, %v709
  %v931 = vmul.f32 %v714, %v714
  %v932 = vmul.f32 %v717, %v717
  %v933 = vmul.f32 %v722, %v722
  %v934 = vmul.f32 %v725, %v725
  %v935 = vmul.f32 %v730, %v730
  %v936 = vmul.f32 %v733, %v733
  %v937 = vmul.f32 %v738, %v738
  %v938 = vmul.f32 %v741, %v741
  %v939 = vmul.f32 %v746, %v746
  %v940 = vsel %vm759, %v883, 0.0
  %v941 = vsel %vm759, %v884, 0.0
  %v942 = vadd.f32 %v940, %v941
  %v943 = vsel %vm759, %v885, 0.0
  %v944 = vadd.f32 %v942, %v943
  %v945 = vsel %vm759, %v886, 0.0
  %v946 = vadd.f32 %v944, %v945
  %v947 = vsel %vm759, %v887, 0.0
  %v948 = vadd.f32 %v946, %v947
  %v949 = vsel %vm759, %v888, 0.0
  %v950 = vadd.f32 %v948, %v949
  %v951 = vsel %vm759, %v889, 0.0
  %v952 = vadd.f32 %v950, %v951
  %v953 = vsel %vm759, %v890, 0.0
  %v954 = vadd.f32 %v952, %v953
  %v955 = vsel %vm759, %v891, 0.0
  %v956 = vadd.f32 %v954, %v955
  %v957 = vsel %vm759, %v892, 0.0
  %v958 = vadd.f32 %v956, %v957
  %v959 = vsel %vm759, %v893, 0.0
  %v960 = vadd.f32 %v958, %v959
  %v961 = vsel %vm759, %v894, 0.0
  %v962 = vadd.f32 %v960, %v961
  %v963 = vsel %vm759, %v895, 0.0
  %v964 = vadd.f32 %v962, %v963
  %v965 = vsel %vm759, %v896, 0.0
  %v966 = vadd.f32 %v964, %v965
  %v967 = vsel %vm759, %v897, 0.0
  %v968 = vadd.f32 %v966, %v967
  %v969 = vsel %vm759, %v898, 0.0
  %v970 = vadd.f32 %v968, %v969
  %v971 = vsel %vm759, %v899, 0.0
  %v972 = vadd.f32 %v970, %v971
  %v973 = vsel %vm759, %v900, 0.0
  %v974 = vadd.f32 %v972, %v973
  %v975 = vsel %vm759, %v901, 0.0
  %v976 = vadd.f32 %v974, %v975
  %v977 = vsel %vm759, %v902, 0.0
  %v978 = vadd.f32 %v976, %v977
  %v979 = vsel %vm759, %v903, 0.0
  %v980 = vadd.f32 %v978, %v979
  %v981 = vsel %vm759, %v904, 0.0
  %v982 = vadd.f32 %v980, %v981
  %v983 = vsel %vm759, %v905, 0.0
  %v984 = vadd.f32 %v982, %v983
  %v985 = vsel %vm759, %v906, 0.0
  %v986 = vadd.f32 %v984, %v985
  %v987 = vsel %vm759, %v907, 0.0
  %v988 = vadd.f32 %v986, %v987
  %v989 = vsel %vm759, %v908, 0.0
  %v990 = vadd.f32 %v988, %v989
  %v991 = vsel %vm759, %v909, 0.0
  %v992 = vadd.f32 %v990, %v991
  %v993 = vsel %vm759, %v910, 0.0
  %v994 = vadd.f32 %v992, %v993
  %v995 = vsel %vm759, %v911, 0.0
  %v996 = vadd.f32 %v994, %v995
  %v997 = vsel %vm759, %v912, 0.0
  %v998 = vadd.f32 %v996, %v997
  %v999 = vsel %vm759, %v913, 0.0
  %v1000 = vadd.f32 %v998, %v999
  %v1001 = vsel %vm759, %v914, 0.0
  %v1002 = vadd.f32 %v1000, %v1001
  %v1003 = vsel %vm759, %v915, 0.0
  %v1004 = vadd.f32 %v1002, %v1003
  %v1005 = vsel %vm759, %v916, 0.0
  %v1006 = vadd.f32 %v1004, %v1005
  %v1007 = vsel %vm759, %v917, 0.0
  %v1008 = vadd.f32 %v1006, %v1007
  %v1009 = vsel %vm759, %v918, 0.0
  %v1010 = vadd.f32 %v1008, %v1009
  %v1011 = vsel %vm759, %v919, 0.0
  %v1012 = vadd.f32 %v1010, %v1011
  %v1013 = vsel %vm759, %v920, 0.0
  %v1014 = vadd.f32 %v1012, %v1013
  %v1015 = vsel %vm759, %v921, 0.0
  %v1016 = vadd.f32 %v1014, %v1015
  %v1017 = vsel %vm759, %v922, 0.0
  %v1018 = vadd.f32 %v1016, %v1017
  %v1019 = vsel %vm759, %v923, 0.0
  %v1020 = vadd.f32 %v1018, %v1019
  %v1021 = vsel %vm759, %v924, 0.0
  %v1022 = vadd.f32 %v1020, %v1021
  %v1023 = vsel %vm759, %v925, 0.0
  %v1024 = vadd.f32 %v1022, %v1023
  %v1025 = vsel %vm759, %v926, 0.0
  %v1026 = vadd.f32 %v1024, %v1025
  %v1027 = vsel %vm759, %v927, 0.0
  %v1028 = vadd.f32 %v1026, %v1027
  %v1029 = vsel %vm759, %v928, 0.0
  %v1030 = vadd.f32 %v1028, %v1029
  %v1031 = vsel %vm759, %v929, 0.0
  %v1032 = vadd.f32 %v1030, %v1031
  %v1033 = vsel %vm759, %v930, 0.0
  %v1034 = vadd.f32 %v1032, %v1033
  %v1035 = vsel %vm759, %v931, 0.0
  %v1036 = vadd.f32 %v1034, %v1035
  %v1037 = vsel %vm759, %v932, 0.0
  %v1038 = vadd.f32 %v1036, %v1037
  %v1039 = vsel %vm759, %v933, 0.0
  %v1040 = vadd.f32 %v1038, %v1039
  %v1041 = vsel %vm759, %v934, 0.0
  %v1042 = vadd.f32 %v1040, %v1041
  %v1043 = vsel %vm759, %v935, 0.0
  %v1044 = vadd.f32 %v1042, %v1043
  %v1045 = vsel %vm759, %v936, 0.0
  %v1046 = vadd.f32 %v1044, %v1045
  %v1047 = vsel %vm759, %v937, 0.0
  %v1048 = vadd.f32 %v1046, %v1047
  %v1049 = vsel %vm759, %v938, 0.0
  %v1050 = vadd.f32 %v1048, %v1049
  %v1051 = vsel %vm759, %v939, 0.0
  %v1052 = vadd.f32 %v1050, %v1051
  %v1053 = vrot.slane %v1052, 4
  %v1054 = vadd.f32 %v1052, %v1053
  %v1055 = vrot.slane %v1054, 2
  %v1056 = vadd.f32 %v1054, %v1055
  %v1057 = vrot.slane %v1056, 1
  %v1058 = vadd.f32 %v1056, %v1057
  %v1059 = vadd.f32 %v882, %v1058
  %1060 = vst.msk [vmem:[%s4] sm:$0x1] %vm880, %v1059
  %v1061 = vpack.c.bf16 %v525, %v522
  %v1062 = vpack.c.bf16 %v533, %v530
  %v1063 = vpack.c.bf16 %v541, %v538
  %v1064 = vpack.c.bf16 %v549, %v546
  %v1065 = vpack.c.bf16 %v557, %v554
  %v1066 = vpack.c.bf16 %v565, %v562
  %v1067 = vpack.c.bf16 %v573, %v570
  %v1068 = vpack.c.bf16 %v581, %v578
  %v1069 = vpack.c.bf16 %v589, %v586
  %v1070 = vpack.c.bf16 %v597, %v594
  %v1071 = vpack.c.bf16 %v605, %v602
  %v1072 = vpack.c.bf16 %v613, %v610
  %v1073 = vpack.c.bf16 %v621, %v618
  %v1074 = vpack.c.bf16 %v629, %v626
  %v1075 = vpack.c.bf16 %v637, %v634
  %v1076 = vpack.c.bf16 %v645, %v642
  %v1077 = vpack.c.bf16 %v653, %v650
  %v1078 = vpack.c.bf16 %v661, %v658
  %v1079 = vpack.c.bf16 %v669, %v666
  %v1080 = vpack.c.bf16 %v677, %v674
  %v1081 = vpack.c.bf16 %v685, %v682
  %v1082 = vpack.c.bf16 %v693, %v690
  %v1083 = vpack.c.bf16 %v701, %v698
  %v1084 = vpack.c.bf16 %v709, %v706
  %v1085 = vpack.c.bf16 %v717, %v714
  %v1086 = vpack.c.bf16 %v725, %v722
  %v1087 = vpack.c.bf16 %v733, %v730
  %v1088 = vpack.c.bf16 %v741, %v738
  %v1089 = vpack.c.bf16 %v746, %v746
  %v1119 = vunpack.c.l.b16 %v1061
  %v1120 = vunpack.c.h.b16 %v1061
  %v1121 = vunpack.c.l.b16 %v1062
  %v1122 = vunpack.c.h.b16 %v1062
  %v1123 = vunpack.c.l.b16 %v1063
  %v1124 = vunpack.c.h.b16 %v1063
  %v1125 = vunpack.c.l.b16 %v1064
  %v1126 = vunpack.c.h.b16 %v1064
  %v1127 = vunpack.c.l.b16 %v1065
  %v1128 = vunpack.c.h.b16 %v1065
  %v1129 = vunpack.c.l.b16 %v1066
  %v1130 = vunpack.c.h.b16 %v1066
  %v1131 = vunpack.c.l.b16 %v1067
  %v1132 = vunpack.c.h.b16 %v1067
  %v1133 = vunpack.c.l.b16 %v1068
  %v1134 = vunpack.c.h.b16 %v1068
  %v1135 = vunpack.c.l.b16 %v1069
  %v1136 = vunpack.c.h.b16 %v1069
  %v1137 = vunpack.c.l.b16 %v1070
  %v1138 = vunpack.c.h.b16 %v1070
  %v1139 = vunpack.c.l.b16 %v1071
  %v1140 = vunpack.c.h.b16 %v1071
  %v1141 = vunpack.c.l.b16 %v1072
  %v1142 = vunpack.c.h.b16 %v1072
  %v1143 = vunpack.c.l.b16 %v1073
  %v1144 = vunpack.c.h.b16 %v1073
  %v1145 = vunpack.c.l.b16 %v1074
  %v1146 = vunpack.c.h.b16 %v1074
  %v1147 = vunpack.c.l.b16 %v1075
  %v1148 = vunpack.c.h.b16 %v1075
  %v1149 = vunpack.c.l.b16 %v1076
  %v1150 = vunpack.c.h.b16 %v1076
  %v1151 = vunpack.c.l.b16 %v1077
  %v1152 = vunpack.c.h.b16 %v1077
  %v1153 = vunpack.c.l.b16 %v1078
  %v1154 = vunpack.c.h.b16 %v1078
  %v1155 = vunpack.c.l.b16 %v1079
  %v1156 = vunpack.c.h.b16 %v1079
  %v1157 = vunpack.c.l.b16 %v1080
  %v1158 = vunpack.c.h.b16 %v1080
  %v1159 = vunpack.c.l.b16 %v1081
  %v1160 = vunpack.c.h.b16 %v1081
  %v1161 = vunpack.c.l.b16 %v1082
  %v1162 = vunpack.c.h.b16 %v1082
  %v1163 = vunpack.c.l.b16 %v1083
  %v1164 = vunpack.c.h.b16 %v1083
  %v1165 = vunpack.c.l.b16 %v1084
  %v1166 = vunpack.c.h.b16 %v1084
  %v1167 = vunpack.c.l.b16 %v1085
  %v1168 = vunpack.c.h.b16 %v1085
  %v1169 = vunpack.c.l.b16 %v1086
  %v1170 = vunpack.c.h.b16 %v1086
  %v1171 = vunpack.c.l.b16 %v1087
  %v1172 = vunpack.c.h.b16 %v1087
  %v1173 = vunpack.c.l.b16 %v1088
  %v1174 = vunpack.c.h.b16 %v1088
  %v1175 = vunpack.c.l.b16 %v1089
  %v1176 = vpack.c.b16 %v1119, %v1119
  %v1177 = vpack.c.b16 %v1120, %v1120
  %v1178 = vpack.c.b16 %v1121, %v1121
  %v1179 = vpack.c.b16 %v1122, %v1122
  %v1180 = vpack.c.b16 %v1123, %v1123
  %v1181 = vpack.c.b16 %v1124, %v1124
  %v1182 = vpack.c.b16 %v1125, %v1125
  %v1183 = vpack.c.b16 %v1126, %v1126
  %v1184 = vpack.c.b16 %v1127, %v1127
  %v1185 = vpack.c.b16 %v1128, %v1128
  %v1186 = vpack.c.b16 %v1129, %v1129
  %v1187 = vpack.c.b16 %v1130, %v1130
  %v1188 = vpack.c.b16 %v1131, %v1131
  %v1189 = vpack.c.b16 %v1132, %v1132
  %v1190 = vpack.c.b16 %v1133, %v1133
  %v1191 = vpack.c.b16 %v1134, %v1134
  %v1192 = vpack.c.b16 %v1135, %v1135
  %v1193 = vpack.c.b16 %v1136, %v1136
  %v1194 = vpack.c.b16 %v1137, %v1137
  %v1195 = vpack.c.b16 %v1138, %v1138
  %v1196 = vpack.c.b16 %v1139, %v1139
  %v1197 = vpack.c.b16 %v1140, %v1140
  %v1198 = vpack.c.b16 %v1141, %v1141
  %v1199 = vpack.c.b16 %v1142, %v1142
  %v1200 = vpack.c.b16 %v1143, %v1143
  %v1201 = vpack.c.b16 %v1144, %v1144
  %v1202 = vpack.c.b16 %v1145, %v1145
  %v1203 = vpack.c.b16 %v1146, %v1146
  %v1204 = vpack.c.b16 %v1147, %v1147
  %v1205 = vpack.c.b16 %v1148, %v1148
  %v1206 = vpack.c.b16 %v1149, %v1149
  %v1207 = vpack.c.b16 %v1150, %v1150
  %v1208 = vpack.c.b16 %v1151, %v1151
  %v1209 = vpack.c.b16 %v1152, %v1152
  %v1210 = vpack.c.b16 %v1153, %v1153
  %v1211 = vpack.c.b16 %v1154, %v1154
  %v1212 = vpack.c.b16 %v1155, %v1155
  %v1213 = vpack.c.b16 %v1156, %v1156
  %v1214 = vpack.c.b16 %v1157, %v1157
  %v1215 = vpack.c.b16 %v1158, %v1158
  %v1216 = vpack.c.b16 %v1159, %v1159
  %v1217 = vpack.c.b16 %v1160, %v1160
  %v1218 = vpack.c.b16 %v1161, %v1161
  %v1219 = vpack.c.b16 %v1162, %v1162
  %v1220 = vpack.c.b16 %v1163, %v1163
  %v1221 = vpack.c.b16 %v1164, %v1164
  %v1222 = vpack.c.b16 %v1165, %v1165
  %v1223 = vpack.c.b16 %v1166, %v1166
  %v1224 = vpack.c.b16 %v1167, %v1167
  %v1225 = vpack.c.b16 %v1168, %v1168
  %v1226 = vpack.c.b16 %v1169, %v1169
  %v1227 = vpack.c.b16 %v1170, %v1170
  %v1228 = vpack.c.b16 %v1171, %v1171
  %v1229 = vpack.c.b16 %v1172, %v1172
  %v1230 = vpack.c.b16 %v1173, %v1173
  %v1231 = vpack.c.b16 %v1174, %v1174
  %v1232 = vpack.c.b16 %v1175, %v1175
  %vm1290 = vcmask 257024
  %1291 = vst.msk [vmem:[%s2] sm:$0xf] %vm1290, %v1176
  %1292 = vst.msk [vmem:[%s2 + $0x4] sm:$0xf] %vm1290, %v1177
  %1293 = vst.msk [vmem:[%s2 + $0x8] sm:$0xf] %vm1290, %v1178
  %1294 = vst.msk [vmem:[%s2 + $0xc] sm:$0xf] %vm1290, %v1179
  %1295 = vst.msk [vmem:[%s2 + $0x10] sm:$0xf] %vm1290, %v1180
  %1296 = vst.msk [vmem:[%s2 + $0x14] sm:$0xf] %vm1290, %v1181
  %1297 = vst.msk [vmem:[%s2 + $0x18] sm:$0xf] %vm1290, %v1182
  %1298 = vst.msk [vmem:[%s2 + $0x1c] sm:$0xf] %vm1290, %v1183
  %1299 = vst.msk [vmem:[%s2 + $0x20] sm:$0xf] %vm1290, %v1184
  %1300 = vst.msk [vmem:[%s2 + $0x24] sm:$0xf] %vm1290, %v1185
  %1301 = vst.msk [vmem:[%s2 + $0x28] sm:$0xf] %vm1290, %v1186
  %1302 = vst.msk [vmem:[%s2 + $0x2c] sm:$0xf] %vm1290, %v1187
  %1303 = vst.msk [vmem:[%s2 + $0x30] sm:$0xf] %vm1290, %v1188
  %1304 = vst.msk [vmem:[%s2 + $0x34] sm:$0xf] %vm1290, %v1189
  %1305 = vst.msk [vmem:[%s2 + $0x38] sm:$0xf] %vm1290, %v1190
  %1306 = vst.msk [vmem:[%s2 + $0x3c] sm:$0xf] %vm1290, %v1191
  %1307 = vst.msk [vmem:[%s2 + $0x40] sm:$0xf] %vm1290, %v1192
  %1308 = vst.msk [vmem:[%s2 + $0x44] sm:$0xf] %vm1290, %v1193
  %1309 = vst.msk [vmem:[%s2 + $0x48] sm:$0xf] %vm1290, %v1194
  %1310 = vst.msk [vmem:[%s2 + $0x4c] sm:$0xf] %vm1290, %v1195
  %1311 = vst.msk [vmem:[%s2 + $0x50] sm:$0xf] %vm1290, %v1196
  %1312 = vst.msk [vmem:[%s2 + $0x54] sm:$0xf] %vm1290, %v1197
  %1313 = vst.msk [vmem:[%s2 + $0x58] sm:$0xf] %vm1290, %v1198
  %1314 = vst.msk [vmem:[%s2 + $0x5c] sm:$0xf] %vm1290, %v1199
  %1315 = vst.msk [vmem:[%s2 + $0x60] sm:$0xf] %vm1290, %v1200
  %1316 = vst.msk [vmem:[%s2 + $0x64] sm:$0xf] %vm1290, %v1201
  %1317 = vst.msk [vmem:[%s2 + $0x68] sm:$0xf] %vm1290, %v1202
  %1318 = vst.msk [vmem:[%s2 + $0x6c] sm:$0xf] %vm1290, %v1203
  %1319 = vst.msk [vmem:[%s2 + $0x70] sm:$0xf] %vm1290, %v1204
  %1320 = vst.msk [vmem:[%s2 + $0x74] sm:$0xf] %vm1290, %v1205
  %1321 = vst.msk [vmem:[%s2 + $0x78] sm:$0xf] %vm1290, %v1206
  %1322 = vst.msk [vmem:[%s2 + $0x7c] sm:$0xf] %vm1290, %v1207
  %1323 = vst.msk [vmem:[%s2 + $0x80] sm:$0xf] %vm1290, %v1208
  %1324 = vst.msk [vmem:[%s2 + $0x84] sm:$0xf] %vm1290, %v1209
  %1325 = vst.msk [vmem:[%s2 + $0x88] sm:$0xf] %vm1290, %v1210
  %1326 = vst.msk [vmem:[%s2 + $0x8c] sm:$0xf] %vm1290, %v1211
  %1327 = vst.msk [vmem:[%s2 + $0x90] sm:$0xf] %vm1290, %v1212
  %1328 = vst.msk [vmem:[%s2 + $0x94] sm:$0xf] %vm1290, %v1213
  %1329 = vst.msk [vmem:[%s2 + $0x98] sm:$0xf] %vm1290, %v1214
  %1330 = vst.msk [vmem:[%s2 + $0x9c] sm:$0xf] %vm1290, %v1215
  %1331 = vst.msk [vmem:[%s2 + $0xa0] sm:$0xf] %vm1290, %v1216
  %1332 = vst.msk [vmem:[%s2 + $0xa4] sm:$0xf] %vm1290, %v1217
  %1333 = vst.msk [vmem:[%s2 + $0xa8] sm:$0xf] %vm1290, %v1218
  %1334 = vst.msk [vmem:[%s2 + $0xac] sm:$0xf] %vm1290, %v1219
  %1335 = vst.msk [vmem:[%s2 + $0xb0] sm:$0xf] %vm1290, %v1220
  %1336 = vst.msk [vmem:[%s2 + $0xb4] sm:$0xf] %vm1290, %v1221
  %1337 = vst.msk [vmem:[%s2 + $0xb8] sm:$0xf] %vm1290, %v1222
  %1338 = vst.msk [vmem:[%s2 + $0xbc] sm:$0xf] %vm1290, %v1223
  %1339 = vst.msk [vmem:[%s2 + $0xc0] sm:$0xf] %vm1290, %v1224
  %1340 = vst.msk [vmem:[%s2 + $0xc4] sm:$0xf] %vm1290, %v1225
  %1341 = vst.msk [vmem:[%s2 + $0xc8] sm:$0xf] %vm1290, %v1226
  %1342 = vst.msk [vmem:[%s2 + $0xcc] sm:$0xf] %vm1290, %v1227
  %1343 = vst.msk [vmem:[%s2 + $0xd0] sm:$0xf] %vm1290, %v1228
  %1344 = vst.msk [vmem:[%s2 + $0xd4] sm:$0xf] %vm1290, %v1229
  %1345 = vst.msk [vmem:[%s2 + $0xd8] sm:$0xf] %vm1290, %v1230
  %1346 = vst.msk [vmem:[%s2 + $0xdc] sm:$0xf] %vm1290, %v1231
  %1347 = vst.msk [vmem:[%s2 + $0xe0] sm:$0xf] %vm1290, %v1232
  // Predicated region
  $region14: #{ppo_forward.6} parent=0 // pred_check
    _
  $region15: #{ppo_forward.6} parent=0 // pred_check_branch
    %1349 = sbr.rel (0) target = $region17
  $region16: #{ppo_forward.6} parent=0 // pred_region
    _
  $region17: #{ppo_forward.6} parent=0 // pred_fallthru
    _
  // Predicated region
  $region18: #{ppo_forward.6} parent=0 // pred_check
    _
  $region19: #{ppo_forward.6} parent=0 // pred_check_branch
    %1351 = sbr.rel (0) target = $region21
  $region20: #{ppo_forward.6} parent=0 // pred_region
    _
  $region21: #{ppo_forward.6} parent=0 // pred_fallthru
    _
  // Predicated region
  $region22: #{ppo_forward.6} parent=0 // pred_check
    _
  $region23: #{ppo_forward.6} parent=0 // pred_check_branch
    %1353 = sbr.rel (0) target = $region25
  $region24: #{ppo_forward.6} parent=0 // pred_region
    _
  $region25: #{ppo_forward.6} parent=0 // pred_fallthru
    _
  // Predicated region
  $region26: #{ppo_forward.6} parent=0 // pred_check
    _
  $region27: #{ppo_forward.6} parent=0 // pred_check_branch
    %1355 = sbr.rel (0) target = $region29
  $region28: #{ppo_forward.6} parent=0 // pred_region
    _
  $region29: #{ppo_forward.6} parent=0 // pred_fallthru
    _
  // Predicated region
  $region30: #{ppo_forward.6} parent=0 // pred_check
    _
  $region31: #{ppo_forward.6} parent=0 // pred_check_branch
    %1357 = sbr.rel (0) target = $region33
  $region32: #{ppo_forward.6} parent=0 // pred_region
    _
  $region33: #{ppo_forward.6} parent=0 // pred_fallthru
    _
  // Predicated region
  $region34: #{ppo_forward.6} parent=0 // pred_check
    _
  $region35: #{ppo_forward.6} parent=0 // pred_check_branch
    %1359 = sbr.rel (0) target = $region37
  $region36: #{ppo_forward.6} parent=0 // pred_region
    _
  $region37: #{ppo_forward.6} parent=0 // pred_fallthru
    _

// kernel: ppo_forward.8
$region0: #{ppo_forward.8}
  #allocation0 [shape = 'u32[]', space=smem, size = 0x4, offset = 0x4, fixed_abs, tag = 'smem constant byte address 0x4 - core index']
  #allocation1 [shape = 'u32[144,128]{1,0:T(1,128)}', space=vmem, size = 0x12000, scoped, tag = 'internal scratch']
  %s0 = inlined_call_operand.vmem [shape: bf16[72,512], index: 0, kind: input, shape index: {}]
  %s1 = inlined_call_operand.vmem [shape: bf16[512,64], index: 1, kind: input, shape index: {}]
  %s2 = inlined_call_operand.vmem [shape: bf16[72,64], index: 2, kind: output, shape index: {0}]
  %s3 = inlined_call_operand.vmem [shape: f32[1,64], index: 3, kind: output, shape index: {1}]
  %s4 = inlined_call_operand.vmem [shape: f32[1,64], index: 4, kind: output, shape index: {2}]
  %5 = xla_tuple %s2, %s3, %s4
  %s6 = sld [smem:[#allocation0]]
  $region38: #{ppo_forward.8} parent=0
    _
  %s8 = ssub.s32 1, %s6
  %s9 = scalar_select 0, %s8, %s6
  // Predicated region
  $region2: #{ppo_forward.8} parent=0 // pred_check
    _
  $region3: #{ppo_forward.8} parent=0 // pred_check_branch
    %11 = sbr.rel (0) target = $region5
  $region4: #{ppo_forward.8} parent=0 // pred_region
    _
  $region5: #{ppo_forward.8} parent=0 // pred_fallthru
    _
  // Predicated region
  $region6: #{ppo_forward.8} parent=0 // pred_check
    _
  $region7: #{ppo_forward.8} parent=0 // pred_check_branch
    %13 = sbr.rel (0) target = $region9
  $region8: #{ppo_forward.8} parent=0 // pred_region
    _
  $region9: #{ppo_forward.8} parent=0 // pred_fallthru
    _
  %v15 = vld [vmem:[%s0] sm:$0xff]
  %v16 = vld [vmem:[%s0 + $0x8] sm:$0xff]
  %v17 = vld [vmem:[%s0 + $0x10] sm:$0xff]
  %v18 = vld [vmem:[%s0 + $0x18] sm:$0xff]
  %v19 = vld [vmem:[%s0 + $0x20] sm:$0xff]
  %v20 = vld [vmem:[%s0 + $0x28] sm:$0xff]
  %v21 = vld [vmem:[%s0 + $0x30] sm:$0xff]
  %v22 = vld [vmem:[%s0 + $0x38] sm:$0xff]
  %v23 = vld [vmem:[%s0 + $0x40] sm:$0xff]
  %v24 = vld [vmem:[%s0 + $0x48] sm:$0xff]
  %v25 = vld [vmem:[%s0 + $0x50] sm:$0xff]
  %v26 = vld [vmem:[%s0 + $0x58] sm:$0xff]
  %v27 = vld [vmem:[%s0 + $0x60] sm:$0xff]
  %v28 = vld [vmem:[%s0 + $0x68] sm:$0xff]
  %v29 = vld [vmem:[%s0 + $0x70] sm:$0xff]
  %v30 = vld [vmem:[%s0 + $0x78] sm:$0xff]
  %v31 = vld [vmem:[%s0 + $0x80] sm:$0xff]
  %v32 = vld [vmem:[%s0 + $0x88] sm:$0xff]
  %v33 = vld [vmem:[%s1] sm:$0xf]
  %v34 = vld [vmem:[%s1 + $0x4] sm:$0xf]
  %v35 = vld [vmem:[%s1 + $0x8] sm:$0xf]
  %v36 = vld [vmem:[%s1 + $0xc] sm:$0xf]
  %v37 = vld [vmem:[%s1 + $0x10] sm:$0xf]
  %v38 = vld [vmem:[%s1 + $0x14] sm:$0xf]
  %v39 = vld [vmem:[%s1 + $0x18] sm:$0xf]
  %v40 = vld [vmem:[%s1 + $0x1c] sm:$0xf]
  %v41 = vld [vmem:[%s1 + $0x20] sm:$0xf]
  %v42 = vld [vmem:[%s1 + $0x24] sm:$0xf]
  %v43 = vld [vmem:[%s1 + $0x28] sm:$0xf]
  %v44 = vld [vmem:[%s1 + $0x2c] sm:$0xf]
  %v45 = vld [vmem:[%s1 + $0x30] sm:$0xf]
  %v46 = vld [vmem:[%s1 + $0x34] sm:$0xf]
  %v47 = vld [vmem:[%s1 + $0x38] sm:$0xf]
  %v48 = vld [vmem:[%s1 + $0x3c] sm:$0xf]
  %v49 = vld [vmem:[%s1 + $0x40] sm:$0xf]
  %v50 = vld [vmem:[%s1 + $0x44] sm:$0xf]
  %v51 = vld [vmem:[%s1 + $0x48] sm:$0xf]
  %v52 = vld [vmem:[%s1 + $0x4c] sm:$0xf]
  %v53 = vld [vmem:[%s1 + $0x50] sm:$0xf]
  %v54 = vld [vmem:[%s1 + $0x54] sm:$0xf]
  %v55 = vld [vmem:[%s1 + $0x58] sm:$0xf]
  %v56 = vld [vmem:[%s1 + $0x5c] sm:$0xf]
  %v57 = vld [vmem:[%s1 + $0x60] sm:$0xf]
  %v58 = vld [vmem:[%s1 + $0x64] sm:$0xf]
  %v59 = vld [vmem:[%s1 + $0x68] sm:$0xf]
  %v60 = vld [vmem:[%s1 + $0x6c] sm:$0xf]
  %v61 = vld [vmem:[%s1 + $0x70] sm:$0xf]
  %v62 = vld [vmem:[%s1 + $0x74] sm:$0xf]
  %v63 = vld [vmem:[%s1 + $0x78] sm:$0xf]
  %v64 = vld [vmem:[%s1 + $0x7c] sm:$0xf]
  %v65 = vld [vmem:[%s1 + $0x80] sm:$0xf]
  %v66 = vld [vmem:[%s1 + $0x84] sm:$0xf]
  %v67 = vld [vmem:[%s1 + $0x88] sm:$0xf]
  %v68 = vld [vmem:[%s1 + $0x8c] sm:$0xf]
  %v69 = vld [vmem:[%s1 + $0x90] sm:$0xf]
  %v70 = vld [vmem:[%s1 + $0x94] sm:$0xf]
  %v71 = vld [vmem:[%s1 + $0x98] sm:$0xf]
  %v72 = vld [vmem:[%s1 + $0x9c] sm:$0xf]
  %v73 = vld [vmem:[%s1 + $0xa0] sm:$0xf]
  %v74 = vld [vmem:[%s1 + $0xa4] sm:$0xf]
  %v75 = vld [vmem:[%s1 + $0xa8] sm:$0xf]
  %v76 = vld [vmem:[%s1 + $0xac] sm:$0xf]
  %v77 = vld [vmem:[%s1 + $0xb0] sm:$0xf]
  %v78 = vld [vmem:[%s1 + $0xb4] sm:$0xf]
  %v79 = vld [vmem:[%s1 + $0xb8] sm:$0xf]
  %v80 = vld [vmem:[%s1 + $0xbc] sm:$0xf]
  %v81 = vld [vmem:[%s1 + $0xc0] sm:$0xf]
  %v82 = vld [vmem:[%s1 + $0xc4] sm:$0xf]
  %v83 = vld [vmem:[%s1 + $0xc8] sm:$0xf]
  %v84 = vld [vmem:[%s1 + $0xcc] sm:$0xf]
  %v85 = vld [vmem:[%s1 + $0xd0] sm:$0xf]
  %v86 = vld [vmem:[%s1 + $0xd4] sm:$0xf]
  %v87 = vld [vmem:[%s1 + $0xd8] sm:$0xf]
  %v88 = vld [vmem:[%s1 + $0xdc] sm:$0xf]
  %v89 = vld [vmem:[%s1 + $0xe0] sm:$0xf]
  %v90 = vld [vmem:[%s1 + $0xe4] sm:$0xf]
  %v91 = vld [vmem:[%s1 + $0xe8] sm:$0xf]
  %v92 = vld [vmem:[%s1 + $0xec] sm:$0xf]
  %v93 = vld [vmem:[%s1 + $0xf0] sm:$0xf]
  %v94 = vld [vmem:[%s1 + $0xf4] sm:$0xf]
  %v95 = vld [vmem:[%s1 + $0xf8] sm:$0xf]
  %v96 = vld [vmem:[%s1 + $0xfc] sm:$0xf]
  %v115 = vunpack.c.l.b16 %v15
  %v116 = vunpack.c.h.b16 %v15
  %v117 = vunpack.c.l.b16 %v16
  %v118 = vunpack.c.h.b16 %v16
  %v119 = vunpack.c.l.b16 %v17
  %v120 = vunpack.c.h.b16 %v17
  %v121 = vunpack.c.l.b16 %v18
  %v122 = vunpack.c.h.b16 %v18
  %v123 = vunpack.c.l.b16 %v19
  %v124 = vunpack.c.h.b16 %v19
  %v125 = vunpack.c.l.b16 %v20
  %v126 = vunpack.c.h.b16 %v20
  %v127 = vunpack.c.l.b16 %v21
  %v128 = vunpack.c.h.b16 %v21
  %v129 = vunpack.c.l.b16 %v22
  %v130 = vunpack.c.h.b16 %v22
  %v131 = vunpack.c.l.b16 %v23
  %v132 = vunpack.c.h.b16 %v23
  %v133 = vunpack.c.l.b16 %v24
  %v134 = vunpack.c.h.b16 %v24
  %v135 = vunpack.c.l.b16 %v25
  %v136 = vunpack.c.h.b16 %v25
  %v137 = vunpack.c.l.b16 %v26
  %v138 = vunpack.c.h.b16 %v26
  %v139 = vunpack.c.l.b16 %v27
  %v140 = vunpack.c.h.b16 %v27
  %v141 = vunpack.c.l.b16 %v28
  %v142 = vunpack.c.h.b16 %v28
  %v143 = vunpack.c.l.b16 %v29
  %v144 = vunpack.c.h.b16 %v29
  %v145 = vunpack.c.l.b16 %v30
  %v146 = vunpack.c.h.b16 %v30
  %v147 = vunpack.c.l.b16 %v31
  %v148 = vunpack.c.h.b16 %v31
  %v149 = vunpack.c.l.b16 %v32
  %v150 = vunpack.c.h.b16 %v32
  %v151 = vpack.c.b16 %v119, %v115
  %v152 = vpack.c.b16 %v120, %v116
  %v153 = vpack.c.b16 %v121, %v117
  %v154 = vpack.c.b16 %v122, %v118
  %v155 = vpack.c.b16 %v127, %v123
  %v156 = vpack.c.b16 %v128, %v124
  %v157 = vpack.c.b16 %v129, %v125
  %v158 = vpack.c.b16 %v130, %v126
  %v159 = vpack.c.b16 %v135, %v131
  %v160 = vpack.c.b16 %v136, %v132
  %v161 = vpack.c.b16 %v137, %v133
  %v162 = vpack.c.b16 %v138, %v134
  %v163 = vpack.c.b16 %v143, %v139
  %v164 = vpack.c.b16 %v144, %v140
  %v165 = vpack.c.b16 %v145, %v141
  %v166 = vpack.c.b16 %v146, %v142
  %v167 = vpack.c.b16 %v147, %v147
  %v168 = vpack.c.b16 %v148, %v148
  %v169 = vpack.c.b16 %v149, %v149
  %v170 = vpack.c.b16 %v150, %v150
  %v255 = vunpack.c.l.b16 %v33
  %v256 = vunpack.c.l.b16 %v34
  %v257 = vunpack.c.l.b16 %v35
  %v258 = vunpack.c.l.b16 %v36
  %v259 = vunpack.c.l.b16 %v37
  %v260 = vunpack.c.l.b16 %v38
  %v261 = vunpack.c.l.b16 %v39
  %v262 = vunpack.c.l.b16 %v40
  %v263 = vunpack.c.l.b16 %v41
  %v264 = vunpack.c.l.b16 %v42
  %v265 = vunpack.c.l.b16 %v43
  %v266 = vunpack.c.l.b16 %v44
  %v267 = vunpack.c.l.b16 %v45
  %v268 = vunpack.c.l.b16 %v46
  %v269 = vunpack.c.l.b16 %v47
  %v270 = vunpack.c.l.b16 %v48
  %v271 = vunpack.c.l.b16 %v49
  %v272 = vunpack.c.l.b16 %v50
  %v273 = vunpack.c.l.b16 %v51
  %v274 = vunpack.c.l.b16 %v52
  %v275 = vunpack.c.l.b16 %v53
  %v276 = vunpack.c.l.b16 %v54
  %v277 = vunpack.c.l.b16 %v55
  %v278 = vunpack.c.l.b16 %v56
  %v279 = vunpack.c.l.b16 %v57
  %v280 = vunpack.c.l.b16 %v58
  %v281 = vunpack.c.l.b16 %v59
  %v282 = vunpack.c.l.b16 %v60
  %v283 = vunpack.c.l.b16 %v61
  %v284 = vunpack.c.l.b16 %v62
  %v285 = vunpack.c.l.b16 %v63
  %v286 = vunpack.c.l.b16 %v64
  %v287 = vunpack.c.l.b16 %v65
  %v288 = vunpack.c.l.b16 %v66
  %v289 = vunpack.c.l.b16 %v67
  %v290 = vunpack.c.l.b16 %v68
  %v291 = vunpack.c.l.b16 %v69
  %v292 = vunpack.c.l.b16 %v70
  %v293 = vunpack.c.l.b16 %v71
  %v294 = vunpack.c.l.b16 %v72
  %v295 = vunpack.c.l.b16 %v73
  %v296 = vunpack.c.l.b16 %v74
  %v297 = vunpack.c.l.b16 %v75
  %v298 = vunpack.c.l.b16 %v76
  %v299 = vunpack.c.l.b16 %v77
  %v300 = vunpack.c.l.b16 %v78
  %v301 = vunpack.c.l.b16 %v79
  %v302 = vunpack.c.l.b16 %v80
  %v303 = vunpack.c.l.b16 %v81
  %v304 = vunpack.c.l.b16 %v82
  %v305 = vunpack.c.l.b16 %v83
  %v306 = vunpack.c.l.b16 %v84
  %v307 = vunpack.c.l.b16 %v85
  %v308 = vunpack.c.l.b16 %v86
  %v309 = vunpack.c.l.b16 %v87
  %v310 = vunpack.c.l.b16 %v88
  %v311 = vunpack.c.l.b16 %v89
  %v312 = vunpack.c.l.b16 %v90
  %v313 = vunpack.c.l.b16 %v91
  %v314 = vunpack.c.l.b16 %v92
  %v315 = vunpack.c.l.b16 %v93
  %v316 = vunpack.c.l.b16 %v94
  %v317 = vunpack.c.l.b16 %v95
  %v318 = vunpack.c.l.b16 %v96
  %v319 = vpack.c.b16 %v256, %v255
  %v320 = vpack.c.b16 %v258, %v257
  %v321 = vpack.c.b16 %v260, %v259
  %v322 = vpack.c.b16 %v262, %v261
  %v323 = vpack.c.b16 %v264, %v263
  %v324 = vpack.c.b16 %v266, %v265
  %v325 = vpack.c.b16 %v268, %v267
  %v326 = vpack.c.b16 %v270, %v269
  %v327 = vpack.c.b16 %v272, %v271
  %v328 = vpack.c.b16 %v274, %v273
  %v329 = vpack.c.b16 %v276, %v275
  %v330 = vpack.c.b16 %v278, %v277
  %v331 = vpack.c.b16 %v280, %v279
  %v332 = vpack.c.b16 %v282, %v281
  %v333 = vpack.c.b16 %v284, %v283
  %v334 = vpack.c.b16 %v286, %v285
  %v335 = vpack.c.b16 %v288, %v287
  %v336 = vpack.c.b16 %v290, %v289
  %v337 = vpack.c.b16 %v292, %v291
  %v338 = vpack.c.b16 %v294, %v293
  %v339 = vpack.c.b16 %v296, %v295
  %v340 = vpack.c.b16 %v298, %v297
  %v341 = vpack.c.b16 %v300, %v299
  %v342 = vpack.c.b16 %v302, %v301
  %v343 = vpack.c.b16 %v304, %v303
  %v344 = vpack.c.b16 %v306, %v305
  %v345 = vpack.c.b16 %v308, %v307
  %v346 = vpack.c.b16 %v310, %v309
  %v347 = vpack.c.b16 %v312, %v311
  %v348 = vpack.c.b16 %v314, %v313
  %v349 = vpack.c.b16 %v316, %v315
  %v350 = vpack.c.b16 %v318, %v317
  %383 = vmatprep.subr.bf16.mxu0 0
  %384 = vmatpush1.bf16.msra.mxu0 %v319
  %385 = vmatprep.subr.bf16.mxu0 0
  %386 = vmatpush1.bf16.msra.mxu0 %v320
  %387 = vmatprep.subr.bf16.mxu0 0
  %388 = vmatpush1.bf16.msra.mxu0 %v321
  %389 = vmatprep.subr.bf16.mxu0 0
  %390 = vmatpush1.bf16.msra.mxu0 %v322
  %391 = vmatprep.subr.bf16.mxu0 0
  %392 = vmatpush1.bf16.msra.mxu0 %v323
  %393 = vmatprep.subr.bf16.mxu0 0
  %394 = vmatpush1.bf16.msra.mxu0 %v324
  %395 = vmatprep.subr.bf16.mxu0 0
  %396 = vmatpush1.bf16.msra.mxu0 %v325
  %397 = vmatprep.subr.bf16.mxu0 0
  %398 = vmatpush1.bf16.msra.mxu0 %v326
  %399 = vmatprep.subr.bf16.mxu0 0
  %400 = vmatpush1.bf16.msra.mxu0 %v327
  %401 = vmatprep.subr.bf16.mxu0 0
  %402 = vmatpush1.bf16.msra.mxu0 %v328
  %403 = vmatprep.subr.bf16.mxu0 0
  %404 = vmatpush1.bf16.msra.mxu0 %v329
  %405 = vmatprep.subr.bf16.mxu0 0
  %406 = vmatpush1.bf16.msra.mxu0 %v330
  %407 = vmatprep.subr.bf16.mxu0 0
  %408 = vmatpush1.bf16.msra.mxu0 %v331
  %409 = vmatprep.subr.bf16.mxu0 0
  %410 = vmatpush1.bf16.msra.mxu0 %v332
  %411 = vmatprep.subr.bf16.mxu0 0
  %412 = vmatpush1.bf16.msra.mxu0 %v333
  %413 = vmatprep.subr.bf16.mxu0 0
  %414 = vmatpush1.bf16.msra.mxu0 %v334
  %415 = vmatprep.mubr.bf16.mxu0 %v152
  %416 = vmatmul.mubr.bf16.gmra.mrb[0].mxu0 %v151
  %v417 = vpop.f32.mrb[0].mxu0
  %v418 = vadd.f32 0.0, %v417
  %v419 = vpop.f32.mrb[0].mxu0
  %v420 = vpop.f32.mrb[0].mxu0
  %v421 = vadd.f32 0.0, %v420
  %v422 = vpop.f32.mrb[0].mxu0
  %423 = vmatprep.mubr.bf16.mxu0 %v156
  %424 = vmatmul.mubr.bf16.gmra.mrb[0].mxu0 %v155
  %v425 = vpop.f32.mrb[0].mxu0
  %v426 = vadd.f32 0.0, %v425
  %v427 = vpop.f32.mrb[0].mxu0
  %v428 = vpop.f32.mrb[0].mxu0
  %v429 = vadd.f32 0.0, %v428
  %v430 = vpop.f32.mrb[0].mxu0
  %431 = vmatprep.mubr.bf16.mxu0 %v160
  %432 = vmatmul.mubr.bf16.gmra.mrb[0].mxu0 %v159
  %v433 = vpop.f32.mrb[0].mxu0
  %v434 = vadd.f32 0.0, %v433
  %v435 = vpop.f32.mrb[0].mxu0
  %v436 = vpop.f32.mrb[0].mxu0
  %v437 = vadd.f32 0.0, %v436
  %v438 = vpop.f32.mrb[0].mxu0
  %439 = vmatprep.mubr.bf16.mxu0 %v164
  %440 = vmatmul.mubr.bf16.gmra.mrb[0].mxu0 %v163
  %v441 = vpop.f32.mrb[0].mxu0
  %v442 = vadd.f32 0.0, %v441
  %v443 = vpop.f32.mrb[0].mxu0
  %v444 = vpop.f32.mrb[0].mxu0
  %v445 = vadd.f32 0.0, %v444
  %v446 = vpop.f32.mrb[0].mxu0
  %447 = vmatprep.mubr.bf16.mxu0 %v168
  %448 = vmatmul.mubr.bf16.gmra.mrb[0].mxu0 %v167
  %v449 = vpop.f32.mrb[0].mxu0
  %v450 = vadd.f32 0.0, %v449
  %v451 = vpop.f32.mrb[0].mxu0
  %v452 = vpop.f32.mrb[0].mxu0
  %v453 = vpop.f32.mrb[0].mxu0
  %454 = vdwg.mxu0
  %455 = vmatprep.subr.bf16.mxu0 0
  %456 = vmatpush1.bf16.msra.mxu0 %v335
  %457 = vmatprep.subr.bf16.mxu0 0
  %458 = vmatpush1.bf16.msra.mxu0 %v336
  %459 = vmatprep.subr.bf16.mxu0 0
  %460 = vmatpush1.bf16.msra.mxu0 %v337
  %461 = vmatprep.subr.bf16.mxu0 0
  %462 = vmatpush1.bf16.msra.mxu0 %v338
  %463 = vmatprep.subr.bf16.mxu0 0
  %464 = vmatpush1.bf16.msra.mxu0 %v339
  %465 = vmatprep.subr.bf16.mxu0 0
  %466 = vmatpush1.bf16.msra.mxu0 %v340
  %467 = vmatprep.subr.bf16.mxu0 0
  %468 = vmatpush1.bf16.msra.mxu0 %v341
  %469 = vmatprep.subr.bf16.mxu0 0
  %470 = vmatpush1.bf16.msra.mxu0 %v342
  %471 = vmatprep.subr.bf16.mxu0 0
  %472 = vmatpush1.bf16.msra.mxu0 %v343
  %473 = vmatprep.subr.bf16.mxu0 0
  %474 = vmatpush1.bf16.msra.mxu0 %v344
  %475 = vmatprep.subr.bf16.mxu0 0
  %476 = vmatpush1.bf16.msra.mxu0 %v345
  %477 = vmatprep.subr.bf16.mxu0 0
  %478 = vmatpush1.bf16.msra.mxu0 %v346
  %479 = vmatprep.subr.bf16.mxu0 0
  %480 = vmatpush1.bf16.msra.mxu0 %v347
  %481 = vmatprep.subr.bf16.mxu0 0
  %482 = vmatpush1.bf16.msra.mxu0 %v348
  %483 = vmatprep.subr.bf16.mxu0 0
  %484 = vmatpush1.bf16.msra.mxu0 %v349
  %485 = vmatprep.subr.bf16.mxu0 0
  %486 = vmatpush1.bf16.msra.mxu0 %v350
  %487 = vmatprep.mubr.bf16.mxu0 %v154
  %488 = vmatmul.mubr.bf16.gmra.mrb[0].mxu0 %v153
  %v489 = vpop.f32.mrb[0].mxu0
  %v490 = vadd.f32 %v418, %v489
  %v491 = vpop.f32.mrb[0].mxu0
  %v492 = vpop.f32.mrb[0].mxu0
  %v493 = vadd.f32 %v421, %v492
  %v494 = vpop.f32.mrb[0].mxu0
  %495 = vmatprep.mubr.bf16.mxu0 %v158
  %496 = vmatmul.mubr.bf16.gmra.mrb[0].mxu0 %v157
  %v497 = vpop.f32.mrb[0].mxu0
  %v498 = vadd.f32 %v426, %v497
  %v499 = vpop.f32.mrb[0].mxu0
  %v500 = vpop.f32.mrb[0].mxu0
  %v501 = vadd.f32 %v429, %v500
  %v502 = vpop.f32.mrb[0].mxu0
  %503 = vmatprep.mubr.bf16.mxu0 %v162
  %504 = vmatmul.mubr.bf16.gmra.mrb[0].mxu0 %v161
  %v505 = vpop.f32.mrb[0].mxu0
  %v506 = vadd.f32 %v434, %v505
  %v507 = vpop.f32.mrb[0].mxu0
  %v508 = vpop.f32.mrb[0].mxu0
  %v509 = vadd.f32 %v437, %v508
  %v510 = vpop.f32.mrb[0].mxu0
  %511 = vmatprep.mubr.bf16.mxu0 %v166
  %512 = vmatmul.mubr.bf16.gmra.mrb[0].mxu0 %v165
  %v513 = vpop.f32.mrb[0].mxu0
  %v514 = vadd.f32 %v442, %v513
  %v515 = vpop.f32.mrb[0].mxu0
  %v516 = vpop.f32.mrb[0].mxu0
  %v517 = vadd.f32 %v445, %v516
  %v518 = vpop.f32.mrb[0].mxu0
  %519 = vmatprep.mubr.bf16.mxu0 %v170
  %520 = vmatmul.mubr.bf16.gmra.mrb[0].mxu0 %v169
  %v521 = vpop.f32.mrb[0].mxu0
  %v522 = vadd.f32 %v450, %v521
  %v523 = vpop.f32.mrb[0].mxu0
  %v524 = vpop.f32.mrb[0].mxu0
  %v525 = vpop.f32.mrb[0].mxu0
  %526 = vdwg.mxu0
  %p527 = scmp.eq.s32.totalorder 0, 0
  // Predicated region
  $region10: #{ppo_forward.8} parent=0 // pred_check
    %p528 = pneg %p527
  $region11: #{ppo_forward.8} parent=0 // pred_check_branch
    %530 = sbr.rel (%p528) target = $region13
  $region12: #{ppo_forward.8} parent=0 // pred_region
    %vm531 = vcmask 516096
    %532 = vst.msk [vmem:[%s3] sm:$0x1] %vm531, 0.0
    %533 = vst.msk [vmem:[%s4] sm:$0x1] %vm531, 0.0
  $region13: #{ppo_forward.8} parent=0 // pred_fallthru
    _
  %v534 = vld [vmem:[%s3] sm:$0x1]
  %vm535 = vcmask 523264
  %v536 = vsel %vm535, %v490, 0.0
  %v537 = vsel %vm535, %v493, 0.0
  %v538 = vadd.f32 %v536, %v537
  %v539 = vsel %vm535, %v498, 0.0
  %v540 = vadd.f32 %v538, %v539
  %v541 = vsel %vm535, %v501, 0.0
  %v542 = vadd.f32 %v540, %v541
  %v543 = vsel %vm535, %v506, 0.0
  %v544 = vadd.f32 %v542, %v543
  %v545 = vsel %vm535, %v509, 0.0
  %v546 = vadd.f32 %v544, %v545
  %v547 = vsel %vm535, %v514, 0.0
  %v548 = vadd.f32 %v546, %v547
  %v549 = vsel %vm535, %v517, 0.0
  %v550 = vadd.f32 %v548, %v549
  %v551 = vsel %vm535, %v522, 0.0
  %v552 = vadd.f32 %v550, %v551
  %v553 = vrot.slane %v552, 4
  %v554 = vadd.f32 %v552, %v553
  %v555 = vrot.slane %v554, 2
  %v556 = vadd.f32 %v554, %v555
  %v557 = vrot.slane %v556, 1
  %v558 = vadd.f32 %v556, %v557
  %v559 = vadd.f32 %v534, %v558
  %vm560 = vcmask 516096
  %561 = vst.msk [vmem:[%s3] sm:$0x1] %vm560, %v559
  %v562 = vld [vmem:[%s4] sm:$0x1]
  %v563 = vmul.f32 %v490, %v490
  %v564 = vmul.f32 %v493, %v493
  %v565 = vmul.f32 %v498, %v498
  %v566 = vmul.f32 %v501, %v501
  %v567 = vmul.f32 %v506, %v506
  %v568 = vmul.f32 %v509, %v509
  %v569 = vmul.f32 %v514, %v514
  %v570 = vmul.f32 %v517, %v517
  %v571 = vmul.f32 %v522, %v522
  %v572 = vsel %vm535, %v563, 0.0
  %v573 = vsel %vm535, %v564, 0.0
  %v574 = vadd.f32 %v572, %v573
  %v575 = vsel %vm535, %v565, 0.0
  %v576 = vadd.f32 %v574, %v575
  %v577 = vsel %vm535, %v566, 0.0
  %v578 = vadd.f32 %v576, %v577
  %v579 = vsel %vm535, %v567, 0.0
  %v580 = vadd.f32 %v578, %v579
  %v581 = vsel %vm535, %v568, 0.0
  %v582 = vadd.f32 %v580, %v581
  %v583 = vsel %vm535, %v569, 0.0
  %v584 = vadd.f32 %v582, %v583
  %v585 = vsel %vm535, %v570, 0.0
  %v586 = vadd.f32 %v584, %v585
  %v587 = vsel %vm535, %v571, 0.0
  %v588 = vadd.f32 %v586, %v587
  %v589 = vrot.slane %v588, 4
  %v590 = vadd.f32 %v588, %v589
  %v591 = vrot.slane %v590, 2
  %v592 = vadd.f32 %v590, %v591
  %v593 = vrot.slane %v592, 1
  %v594 = vadd.f32 %v592, %v593
  %v595 = vadd.f32 %v562, %v594
  %596 = vst.msk [vmem:[%s4] sm:$0x1] %vm560, %v595
  %v597 = vpack.c.bf16 %v493, %v490
  %v598 = vpack.c.bf16 %v501, %v498
  %v599 = vpack.c.bf16 %v509, %v506
  %v600 = vpack.c.bf16 %v517, %v514
  %v601 = vpack.c.bf16 %v522, %v522
  %v607 = vunpack.c.l.b16 %v597
  %v608 = vunpack.c.h.b16 %v597
  %v609 = vunpack.c.l.b16 %v598
  %v610 = vunpack.c.h.b16 %v598
  %v611 = vunpack.c.l.b16 %v599
  %v612 = vunpack.c.h.b16 %v599
  %v613 = vunpack.c.l.b16 %v600
  %v614 = vunpack.c.h.b16 %v600
  %v615 = vunpack.c.l.b16 %v601
  %v616 = vpack.c.b16 %v607, %v607
  %v617 = vpack.c.b16 %v608, %v608
  %v618 = vpack.c.b16 %v609, %v609
  %v619 = vpack.c.b16 %v610, %v610
  %v620 = vpack.c.b16 %v611, %v611
  %v621 = vpack.c.b16 %v612, %v612
  %v622 = vpack.c.b16 %v613, %v613
  %v623 = vpack.c.b16 %v614, %v614
  %v624 = vpack.c.b16 %v615, %v615
  %vm634 = vcmask 519168
  %635 = vst.msk [vmem:[%s2] sm:$0xf] %vm634, %v616
  %636 = vst.msk [vmem:[%s2 + $0x4] sm:$0xf] %vm634, %v617
  %637 = vst.msk [vmem:[%s2 + $0x8] sm:$0xf] %vm634, %v618
  %638 = vst.msk [vmem:[%s2 + $0xc] sm:$0xf] %vm634, %v619
  %639 = vst.msk [vmem:[%s2 + $0x10] sm:$0xf] %vm634, %v620
  %640 = vst.msk [vmem:[%s2 + $0x14] sm:$0xf] %vm634, %v621
  %641 = vst.msk [vmem:[%s2 + $0x18] sm:$0xf] %vm634, %v622
  %642 = vst.msk [vmem:[%s2 + $0x1c] sm:$0xf] %vm634, %v623
  %643 = vst.msk [vmem:[%s2 + $0x20] sm:$0xf] %vm634, %v624
  // Predicated region
  $region14: #{ppo_forward.8} parent=0 // pred_check
    _
  $region15: #{ppo_forward.8} parent=0 // pred_check_branch
    %645 = sbr.rel (0) target = $region17
  $region16: #{ppo_forward.8} parent=0 // pred_region
    _
  $region17: #{ppo_forward.8} parent=0 // pred_fallthru
    _
  // Predicated region
  $region18: #{ppo_forward.8} parent=0 // pred_check
    _
  $region19: #{ppo_forward.8} parent=0 // pred_check_branch
    %647 = sbr.rel (0) target = $region21
  $region20: #{ppo_forward.8} parent=0 // pred_region
    _
  $region21: #{ppo_forward.8} parent=0 // pred_fallthru
    _
  // Predicated region
  $region22: #{ppo_forward.8} parent=0 // pred_check
    _
  $region23: #{ppo_forward.8} parent=0 // pred_check_branch
    %649 = sbr.rel (0) target = $region25
  $region24: #{ppo_forward.8} parent=0 // pred_region
    _
  $region25: #{ppo_forward.8} parent=0 // pred_fallthru
    _
  // Predicated region
  $region26: #{ppo_forward.8} parent=0 // pred_check
    _
  $region27: #{ppo_forward.8} parent=0 // pred_check_branch
    %651 = sbr.rel (0) target = $region29
  $region28: #{ppo_forward.8} parent=0 // pred_region
    _
  $region29: #{ppo_forward.8} parent=0 // pred_fallthru
    _
  // Predicated region
  $region30: #{ppo_forward.8} parent=0 // pred_check
    _
  $region31: #{ppo_forward.8} parent=0 // pred_check_branch
    %653 = sbr.rel (0) target = $region33
  $region32: #{ppo_forward.8} parent=0 // pred_region
    _
  $region33: #{ppo_forward.8} parent=0 // pred_fallthru
    _
  // Predicated region
  $region34: #{ppo_forward.8} parent=0 // pred_check
    _
  $region35: #{ppo_forward.8} parent=0 // pred_check_branch
    %655 = sbr.rel (0) target = $region37
  $region36: #{ppo_forward.8} parent=0 // pred_region
    _
  $region37: #{ppo_forward.8} parent=0 // pred_fallthru
    _

// kernel: ppo_forward.9
$region0: #{ppo_forward.9}
  #allocation0 [shape = 'u32[]', space=smem, size = 0x4, offset = 0x4, fixed_abs, tag = 'smem constant byte address 0x4 - core index']
  #allocation1 [shape = 'u32[144,128]{1,0:T(1,128)}', space=vmem, size = 0x12000, scoped, tag = 'internal scratch']
  %s0 = inlined_call_operand.vmem [shape: bf16[72,64], index: 0, kind: input, shape index: {}]
  %s1 = inlined_call_operand.vmem [shape: f32[1,64], index: 1, kind: input, shape index: {}]
  %s2 = inlined_call_operand.vmem [shape: f32[1,64], index: 2, kind: input, shape index: {}]
  %s3 = inlined_call_operand.vmem [shape: bf16[72,64], index: 3, kind: output, shape index: {}]
  %s4 = sld [smem:[#allocation0]]
  $region22: #{ppo_forward.9} parent=0
    _
  %s6 = ssub.s32 1, %s4
  %s7 = scalar_select 0, %s6, %s4
  // Predicated region
  $region2: #{ppo_forward.9} parent=0 // pred_check
    _
  $region3: #{ppo_forward.9} parent=0 // pred_check_branch
    %9 = sbr.rel (0) target = $region5
  $region4: #{ppo_forward.9} parent=0 // pred_region
    _
  $region5: #{ppo_forward.9} parent=0 // pred_fallthru
    _
  // Predicated region
  $region6: #{ppo_forward.9} parent=0 // pred_check
    _
  $region7: #{ppo_forward.9} parent=0 // pred_check_branch
    %11 = sbr.rel (0) target = $region9
  $region8: #{ppo_forward.9} parent=0 // pred_region
    _
  $region9: #{ppo_forward.9} parent=0 // pred_fallthru
    _
  // Predicated region
  $region10: #{ppo_forward.9} parent=0 // pred_check
    _
  $region11: #{ppo_forward.9} parent=0 // pred_check_branch
    %13 = sbr.rel (0) target = $region13
  $region12: #{ppo_forward.9} parent=0 // pred_region
    _
  $region13: #{ppo_forward.9} parent=0 // pred_fallthru
    _
  %v14 = vld [vmem:[%s0] sm:$0xf]
  %v15 = vld [vmem:[%s0 + $0x4] sm:$0xf]
  %v16 = vld [vmem:[%s0 + $0x8] sm:$0xf]
  %v17 = vld [vmem:[%s0 + $0xc] sm:$0xf]
  %v18 = vld [vmem:[%s0 + $0x10] sm:$0xf]
  %v19 = vld [vmem:[%s0 + $0x14] sm:$0xf]
  %v20 = vld [vmem:[%s0 + $0x18] sm:$0xf]
  %v21 = vld [vmem:[%s0 + $0x1c] sm:$0xf]
  %v22 = vld [vmem:[%s0 + $0x20] sm:$0xf]
  %v23 = vunpack.c.l.bf16 %v14
  %v24 = vunpack.c.l.bf16 %v15
  %v25 = vunpack.c.l.bf16 %v16
  %v26 = vunpack.c.l.bf16 %v17
  %v27 = vunpack.c.l.bf16 %v18
  %v28 = vunpack.c.l.bf16 %v19
  %v29 = vunpack.c.l.bf16 %v20
  %v30 = vunpack.c.l.bf16 %v21
  %v31 = vunpack.c.l.bf16 %v22
  %v32 = vld [vmem:[%s1] sm:$0x1]
  %v34 = vlaneseq
  %v35 = vshrl.u32 %v34, 7
  %v36 = vsub.s32 0, %v35
  %v37 = vrot.slane %v32, %v36
  %v39 = vmul.f32 %v23, %v37
  %v40 = vmul.f32 %v24, %v37
  %v41 = vmul.f32 %v25, %v37
  %v42 = vmul.f32 %v26, %v37
  %v43 = vmul.f32 %v27, %v37
  %v44 = vmul.f32 %v28, %v37
  %v45 = vmul.f32 %v29, %v37
  %v46 = vmul.f32 %v30, %v37
  %v47 = vmul.f32 %v31, %v37
  %v48 = vld [vmem:[%s2] sm:$0x1]
  %v50 = vlaneseq
  %v51 = vshrl.u32 %v50, 7
  %v52 = vsub.s32 0, %v51
  %v53 = vrot.slane %v48, %v52
  %v55 = vadd.f32 %v39, %v53
  %v56 = vadd.f32 %v40, %v53
  %v57 = vadd.f32 %v41, %v53
  %v58 = vadd.f32 %v42, %v53
  %v59 = vadd.f32 %v43, %v53
  %v60 = vadd.f32 %v44, %v53
  %v61 = vadd.f32 %v45, %v53
  %v62 = vadd.f32 %v46, %v53
  %v63 = vadd.f32 %v47, %v53
  %v64 = vmax.f32 %v55, 0.0
  %v65 = vmax.f32 %v56, 0.0
  %v66 = vmax.f32 %v57, 0.0
  %v67 = vmax.f32 %v58, 0.0
  %v68 = vmax.f32 %v59, 0.0
  %v69 = vmax.f32 %v60, 0.0
  %v70 = vmax.f32 %v61, 0.0
  %v71 = vmax.f32 %v62, 0.0
  %v72 = vmax.f32 %v63, 0.0
  %v73 = vpack.c.bf16 %v65, %v64
  %v74 = vpack.c.bf16 %v67, %v66
  %v75 = vpack.c.bf16 %v69, %v68
  %v76 = vpack.c.bf16 %v71, %v70
  %v77 = vpack.c.bf16 %v72, %v72
  %v83 = vunpack.c.l.b16 %v73
  %v84 = vunpack.c.h.b16 %v73
  %v85 = vunpack.c.l.b16 %v74
  %v86 = vunpack.c.h.b16 %v74
  %v87 = vunpack.c.l.b16 %v75
  %v88 = vunpack.c.h.b16 %v75
  %v89 = vunpack.c.l.b16 %v76
  %v90 = vunpack.c.h.b16 %v76
  %v91 = vunpack.c.l.b16 %v77
  %v92 = vpack.c.b16 %v83, %v83
  %v93 = vpack.c.b16 %v84, %v84
  %v94 = vpack.c.b16 %v85, %v85
  %v95 = vpack.c.b16 %v86, %v86
  %v96 = vpack.c.b16 %v87, %v87
  %v97 = vpack.c.b16 %v88, %v88
  %v98 = vpack.c.b16 %v89, %v89
  %v99 = vpack.c.b16 %v90, %v90
  %v100 = vpack.c.b16 %v91, %v91
  %vm110 = vcmask 519168
  %111 = vst.msk [vmem:[%s3] sm:$0xf] %vm110, %v92
  %112 = vst.msk [vmem:[%s3 + $0x4] sm:$0xf] %vm110, %v93
  %113 = vst.msk [vmem:[%s3 + $0x8] sm:$0xf] %vm110, %v94
  %114 = vst.msk [vmem:[%s3 + $0xc] sm:$0xf] %vm110, %v95
  %115 = vst.msk [vmem:[%s3 + $0x10] sm:$0xf] %vm110, %v96
  %116 = vst.msk [vmem:[%s3 + $0x14] sm:$0xf] %vm110, %v97
  %117 = vst.msk [vmem:[%s3 + $0x18] sm:$0xf] %vm110, %v98
  %118 = vst.msk [vmem:[%s3 + $0x1c] sm:$0xf] %vm110, %v99
  %119 = vst.msk [vmem:[%s3 + $0x20] sm:$0xf] %vm110, %v100
  // Predicated region
  $region14: #{ppo_forward.9} parent=0 // pred_check
    _
  $region15: #{ppo_forward.9} parent=0 // pred_check_branch
    %121 = sbr.rel (0) target = $region17
  $region16: #{ppo_forward.9} parent=0 // pred_region
    _
  $region17: #{ppo_forward.9} parent=0 // pred_fallthru
    _
  // Predicated region
  $region18: #{ppo_forward.9} parent=0 // pred_check
    _
  $region19: #{ppo_forward.9} parent=0 // pred_check_branch
    %123 = sbr.rel (0) target = $region21
  $region20: #{ppo_forward.9} parent=0 // pred_region
    _
  $region21: #{ppo_forward.9} parent=0 // pred_fallthru
    _

// kernel: ppo_forward.10
$region0: #{ppo_forward.10}
  #allocation0 [shape = 'u32[]', space=smem, size = 0x4, offset = 0x4, fixed_abs, tag = 'smem constant byte address 0x4 - core index']
  #allocation1 [shape = 'u32[144,128]{1,0:T(1,128)}', space=vmem, size = 0x12000, scoped, tag = 'internal scratch']
  %s0 = inlined_call_operand.vmem [shape: bf16[32,576], index: 0, kind: input, shape index: {}]
  %s1 = inlined_call_operand.vmem [shape: bf16[576,64], index: 1, kind: input, shape index: {}]
  %s2 = inlined_call_operand.vmem [shape: bf16[32,64], index: 2, kind: output, shape index: {0}]
  %s3 = inlined_call_operand.vmem [shape: f32[1,64], index: 3, kind: output, shape index: {1}]
  %s4 = inlined_call_operand.vmem [shape: f32[1,64], index: 4, kind: output, shape index: {2}]
  %5 = xla_tuple %s2, %s3, %s4
  %s6 = sld [smem:[#allocation0]]
  $region38: #{ppo_forward.10} parent=0
    _
  %s8 = ssub.s32 1, %s6
  %s9 = scalar_select 0, %s8, %s6
  // Predicated region
  $region2: #{ppo_forward.10} parent=0 // pred_check
    _
  $region3: #{ppo_forward.10} parent=0 // pred_check_branch
    %11 = sbr.rel (0) target = $region5
  $region4: #{ppo_forward.10} parent=0 // pred_region
    _
  $region5: #{ppo_forward.10} parent=0 // pred_fallthru
    _
  // Predicated region
  $region6: #{ppo_forward.10} parent=0 // pred_check
    _
  $region7: #{ppo_forward.10} parent=0 // pred_check_branch
    %13 = sbr.rel (0) target = $region9
  $region8: #{ppo_forward.10} parent=0 // pred_region
    _
  $region9: #{ppo_forward.10} parent=0 // pred_fallthru
    _
  %v15 = vld [vmem:[%s0] sm:$0xff]
  %v16 = vld [vmem:[%s0 + $0x8] sm:$0xff]
  %v17 = vld [vmem:[%s0 + $0x10] sm:$0xf]
  %v18 = vld [vmem:[%s0 + $0x14] sm:$0xff]
  %v19 = vld [vmem:[%s0 + $0x1c] sm:$0xff]
  %v20 = vld [vmem:[%s0 + $0x24] sm:$0xf]
  %v21 = vld [vmem:[%s0 + $0x28] sm:$0xff]
  %v22 = vld [vmem:[%s0 + $0x30] sm:$0xff]
  %v23 = vld [vmem:[%s0 + $0x38] sm:$0xf]
  %v24 = vld [vmem:[%s0 + $0x3c] sm:$0xff]
  %v25 = vld [vmem:[%s0 + $0x44] sm:$0xff]
  %v26 = vld [vmem:[%s0 + $0x4c] sm:$0xf]
  %v27 = vld [vmem:[%s1] sm:$0xf]
  %v28 = vld [vmem:[%s1 + $0x4] sm:$0xf]
  %v29 = vld [vmem:[%s1 + $0x8] sm:$0xf]
  %v30 = vld [vmem:[%s1 + $0xc] sm:$0xf]
  %v31 = vld [vmem:[%s1 + $0x10] sm:$0xf]
  %v32 = vld [vmem:[%s1 + $0x14] sm:$0xf]
  %v33 = vld [vmem:[%s1 + $0x18] sm:$0xf]
  %v34 = vld [vmem:[%s1 + $0x1c] sm:$0xf]
  %v35 = vld [vmem:[%s1 + $0x20] sm:$0xf]
  %v36 = vld [vmem:[%s1 + $0x24] sm:$0xf]
  %v37 = vld [vmem:[%s1 + $0x28] sm:$0xf]
  %v38 = vld [vmem:[%s1 + $0x2c] sm:$0xf]
  %v39 = vld [vmem:[%s1 + $0x30] sm:$0xf]
  %v40 = vld [vmem:[%s1 + $0x34] sm:$0xf]
  %v41 = vld [vmem:[%s1 + $0x38] sm:$0xf]
  %v42 = vld [vmem:[%s1 + $0x3c] sm:$0xf]
  %v43 = vld [vmem:[%s1 + $0x40] sm:$0xf]
  %v44 = vld [vmem:[%s1 + $0x44] sm:$0xf]
  %v45 = vld [vmem:[%s1 + $0x48] sm:$0xf]
  %v46 = vld [vmem:[%s1 + $0x4c] sm:$0xf]
  %v47 = vld [vmem:[%s1 + $0x50] sm:$0xf]
  %v48 = vld [vmem:[%s1 + $0x54] sm:$0xf]
  %v49 = vld [vmem:[%s1 + $0x58] sm:$0xf]
  %v50 = vld [vmem:[%s1 + $0x5c] sm:$0xf]
  %v51 = vld [vmem:[%s1 + $0x60] sm:$0xf]
  %v52 = vld [vmem:[%s1 + $0x64] sm:$0xf]
  %v53 = vld [vmem:[%s1 + $0x68] sm:$0xf]
  %v54 = vld [vmem:[%s1 + $0x6c] sm:$0xf]
  %v55 = vld [vmem:[%s1 + $0x70] sm:$0xf]
  %v56 = vld [vmem:[%s1 + $0x74] sm:$0xf]
  %v57 = vld [vmem:[%s1 + $0x78] sm:$0xf]
  %v58 = vld [vmem:[%s1 + $0x7c] sm:$0xf]
  %v59 = vld [vmem:[%s1 + $0x80] sm:$0xf]
  %v60 = vld [vmem:[%s1 + $0x84] sm:$0xf]
  %v61 = vld [vmem:[%s1 + $0x88] sm:$0xf]
  %v62 = vld [vmem:[%s1 + $0x8c] sm:$0xf]
  %v63 = vld [vmem:[%s1 + $0x90] sm:$0xf]
  %v64 = vld [vmem:[%s1 + $0x94] sm:$0xf]
  %v65 = vld [vmem:[%s1 + $0x98] sm:$0xf]
  %v66 = vld [vmem:[%s1 + $0x9c] sm:$0xf]
  %v67 = vld [vmem:[%s1 + $0xa0] sm:$0xf]
  %v68 = vld [vmem:[%s1 + $0xa4] sm:$0xf]
  %v69 = vld [vmem:[%s1 + $0xa8] sm:$0xf]
  %v70 = vld [vmem:[%s1 + $0xac] sm:$0xf]
  %v71 = vld [vmem:[%s1 + $0xb0] sm:$0xf]
  %v72 = vld [vmem:[%s1 + $0xb4] sm:$0xf]
  %v73 = vld [vmem:[%s1 + $0xb8] sm:$0xf]
  %v74 = vld [vmem:[%s1 + $0xbc] sm:$0xf]
  %v75 = vld [vmem:[%s1 + $0xc0] sm:$0xf]
  %v76 = vld [vmem:[%s1 + $0xc4] sm:$0xf]
  %v77 = vld [vmem:[%s1 + $0xc8] sm:$0xf]
  %v78 = vld [vmem:[%s1 + $0xcc] sm:$0xf]
  %v79 = vld [vmem:[%s1 + $0xd0] sm:$0xf]
  %v80 = vld [vmem:[%s1 + $0xd4] sm:$0xf]
  %v81 = vld [vmem:[%s1 + $0xd8] sm:$0xf]
  %v82 = vld [vmem:[%s1 + $0xdc] sm:$0xf]
  %v83 = vld [vmem:[%s1 + $0xe0] sm:$0xf]
  %v84 = vld [vmem:[%s1 + $0xe4] sm:$0xf]
  %v85 = vld [vmem:[%s1 + $0xe8] sm:$0xf]
  %v86 = vld [vmem:[%s1 + $0xec] sm:$0xf]
  %v87 = vld [vmem:[%s1 + $0xf0] sm:$0xf]
  %v88 = vld [vmem:[%s1 + $0xf4] sm:$0xf]
  %v89 = vld [vmem:[%s1 + $0xf8] sm:$0xf]
  %v90 = vld [vmem:[%s1 + $0xfc] sm:$0xf]
  %v91 = vld [vmem:[%s1 + $0x100] sm:$0xf]
  %v92 = vld [vmem:[%s1 + $0x104] sm:$0xf]
  %v93 = vld [vmem:[%s1 + $0x108] sm:$0xf]
  %v94 = vld [vmem:[%s1 + $0x10c] sm:$0xf]
  %v95 = vld [vmem:[%s1 + $0x110] sm:$0xf]
  %v96 = vld [vmem:[%s1 + $0x114] sm:$0xf]
  %v97 = vld [vmem:[%s1 + $0x118] sm:$0xf]
  %v98 = vld [vmem:[%s1 + $0x11c] sm:$0xf]
  %v111 = vunpack.c.l.b16 %v15
  %v112 = vunpack.c.h.b16 %v15
  %v113 = vunpack.c.l.b16 %v16
  %v114 = vunpack.c.h.b16 %v16
  %v115 = vunpack.c.l.b16 %v17
  %v116 = vunpack.c.l.b16 %v18
  %v117 = vunpack.c.h.b16 %v18
  %v118 = vunpack.c.l.b16 %v19
  %v119 = vunpack.c.h.b16 %v19
  %v120 = vunpack.c.l.b16 %v20
  %v121 = vunpack.c.l.b16 %v21
  %v122 = vunpack.c.h.b16 %v21
  %v123 = vunpack.c.l.b16 %v22
  %v124 = vunpack.c.h.b16 %v22
  %v125 = vunpack.c.l.b16 %v23
  %v126 = vunpack.c.l.b16 %v24
  %v127 = vunpack.c.h.b16 %v24
  %v128 = vunpack.c.l.b16 %v25
  %v129 = vunpack.c.h.b16 %v25
  %v130 = vunpack.c.l.b16 %v26
  %v131 = vpack.c.b16 %v116, %v111
  %v132 = vpack.c.b16 %v117, %v112
  %v133 = vpack.c.b16 %v118, %v113
  %v134 = vpack.c.b16 %v119, %v114
  %v135 = vpack.c.b16 %v120, %v115
  %v136 = vpack.c.b16 %v126, %v121
  %v137 = vpack.c.b16 %v127, %v122
  %v138 = vpack.c.b16 %v128, %v123
  %v139 = vpack.c.b16 %v129, %v124
  %v140 = vpack.c.b16 %v130, %v125
  %v221 = vunpack.c.l.b16 %v27
  %v222 = vunpack.c.l.b16 %v28
  %v223 = vunpack.c.l.b16 %v29
  %v224 = vunpack.c.l.b16 %v30
  %v225 = vunpack.c.l.b16 %v31
  %v226 = vunpack.c.l.b16 %v32
  %v227 = vunpack.c.l.b16 %v33
  %v228 = vunpack.c.l.b16 %v34
  %v229 = vunpack.c.l.b16 %v35
  %v230 = vunpack.c.l.b16 %v36
  %v231 = vunpack.c.l.b16 %v37
  %v232 = vunpack.c.l.b16 %v38
  %v233 = vunpack.c.l.b16 %v39
  %v234 = vunpack.c.l.b16 %v40
  %v235 = vunpack.c.l.b16 %v41
  %v236 = vunpack.c.l.b16 %v42
  %v237 = vunpack.c.l.b16 %v43
  %v238 = vunpack.c.l.b16 %v44
  %v239 = vunpack.c.l.b16 %v45
  %v240 = vunpack.c.l.b16 %v46
  %v241 = vunpack.c.l.b16 %v47
  %v242 = vunpack.c.l.b16 %v48
  %v243 = vunpack.c.l.b16 %v49
  %v244 = vunpack.c.l.b16 %v50
  %v245 = vunpack.c.l.b16 %v51
  %v246 = vunpack.c.l.b16 %v52
  %v247 = vunpack.c.l.b16 %v53
  %v248 = vunpack.c.l.b16 %v54
  %v249 = vunpack.c.l.b16 %v55
  %v250 = vunpack.c.l.b16 %v56
  %v251 = vunpack.c.l.b16 %v57
  %v252 = vunpack.c.l.b16 %v58
  %v253 = vunpack.c.l.b16 %v59
  %v254 = vunpack.c.l.b16 %v60
  %v255 = vunpack.c.l.b16 %v61
  %v256 = vunpack.c.l.b16 %v62
  %v257 = vunpack.c.l.b16 %v63
  %v258 = vunpack.c.l.b16 %v64
  %v259 = vunpack.c.l.b16 %v65
  %v260 = vunpack.c.l.b16 %v66
  %v261 = vunpack.c.l.b16 %v67
  %v262 = vunpack.c.l.b16 %v68
  %v263 = vunpack.c.l.b16 %v69
  %v264 = vunpack.c.l.b16 %v70
  %v265 = vunpack.c.l.b16 %v71
  %v266 = vunpack.c.l.b16 %v72
  %v267 = vunpack.c.l.b16 %v73
  %v268 = vunpack.c.l.b16 %v74
  %v269 = vunpack.c.l.b16 %v75
  %v270 = vunpack.c.l.b16 %v76
  %v271 = vunpack.c.l.b16 %v77
  %v272 = vunpack.c.l.b16 %v78
  %v273 = vunpack.c.l.b16 %v79
  %v274 = vunpack.c.l.b16 %v80
  %v275 = vunpack.c.l.b16 %v81
  %v276 = vunpack.c.l.b16 %v82
  %v277 = vunpack.c.l.b16 %v83
  %v278 = vunpack.c.l.b16 %v84
  %v279 = vunpack.c.l.b16 %v85
  %v280 = vunpack.c.l.b16 %v86
  %v281 = vunpack.c.l.b16 %v87
  %v282 = vunpack.c.l.b16 %v88
  %v283 = vunpack.c.l.b16 %v89
  %v284 = vunpack.c.l.b16 %v90
  %v285 = vunpack.c.l.b16 %v91
  %v286 = vunpack.c.l.b16 %v92
  %v287 = vunpack.c.l.b16 %v93
  %v288 = vunpack.c.l.b16 %v94
  %v289 = vunpack.c.l.b16 %v95
  %v290 = vunpack.c.l.b16 %v96
  %v291 = vunpack.c.l.b16 %v97
  %v292 = vunpack.c.l.b16 %v98
  %v293 = vpack.c.b16 %v222, %v221
  %v294 = vpack.c.b16 %v224, %v223
  %v295 = vpack.c.b16 %v226, %v225
  %v296 = vpack.c.b16 %v228, %v227
  %v297 = vpack.c.b16 %v230, %v229
  %v298 = vpack.c.b16 %v232, %v231
  %v299 = vpack.c.b16 %v234, %v233
  %v300 = vpack.c.b16 %v236, %v235
  %v301 = vpack.c.b16 %v238, %v237
  %v302 = vpack.c.b16 %v240, %v239
  %v303 = vpack.c.b16 %v242, %v241
  %v304 = vpack.c.b16 %v244, %v243
  %v305 = vpack.c.b16 %v246, %v245
  %v306 = vpack.c.b16 %v248, %v247
  %v307 = vpack.c.b16 %v250, %v249
  %v308 = vpack.c.b16 %v252, %v251
  %v309 = vpack.c.b16 %v254, %v253
  %v310 = vpack.c.b16 %v256, %v255
  %v311 = vpack.c.b16 %v258, %v257
  %v312 = vpack.c.b16 %v260, %v259
  %v313 = vpack.c.b16 %v262, %v261
  %v314 = vpack.c.b16 %v264, %v263
  %v315 = vpack.c.b16 %v266, %v265
  %v316 = vpack.c.b16 %v268, %v267
  %v317 = vpack.c.b16 %v270, %v269
  %v318 = vpack.c.b16 %v272, %v271
  %v319 = vpack.c.b16 %v274, %v273
  %v320 = vpack.c.b16 %v276, %v275
  %v321 = vpack.c.b16 %v278, %v277
  %v322 = vpack.c.b16 %v280, %v279
  %v323 = vpack.c.b16 %v282, %v281
  %v324 = vpack.c.b16 %v284, %v283
  %v325 = vpack.c.b16 %v286, %v285
  %v326 = vpack.c.b16 %v288, %v287
  %v327 = vpack.c.b16 %v290, %v289
  %v328 = vpack.c.b16 %v292, %v291
  %vm365 = vcmask 523264
  %v367 = vsel %vm365, %v135, 0
  %v370 = vsel %vm365, %v140, 0
  %372 = vmatprep.subr.bf16.mxu0 0
  %373 = vmatpush1.bf16.msra.mxu0 %v293
  %374 = vmatprep.subr.bf16.mxu0 0
  %375 = vmatpush1.bf16.msra.mxu0 %v294
  %376 = vmatprep.subr.bf16.mxu0 0
  %377 = vmatpush1.bf16.msra.mxu0 %v295
  %378 = vmatprep.subr.bf16.mxu0 0
  %379 = vmatpush1.bf16.msra.mxu0 %v296
  %380 = vmatprep.subr.bf16.mxu0 0
  %381 = vmatpush1.bf16.msra.mxu0 %v297
  %382 = vmatprep.subr.bf16.mxu0 0
  %383 = vmatpush1.bf16.msra.mxu0 %v298
  %384 = vmatprep.subr.bf16.mxu0 0
  %385 = vmatpush1.bf16.msra.mxu0 %v299
  %386 = vmatprep.subr.bf16.mxu0 0
  %387 = vmatpush1.bf16.msra.mxu0 %v300
  %388 = vmatprep.subr.bf16.mxu0 0
  %389 = vmatpush1.bf16.msra.mxu0 %v301
  %390 = vmatprep.subr.bf16.mxu0 0
  %391 = vmatpush1.bf16.msra.mxu0 %v302
  %392 = vmatprep.subr.bf16.mxu0 0
  %393 = vmatpush1.bf16.msra.mxu0 %v303
  %394 = vmatprep.subr.bf16.mxu0 0
  %395 = vmatpush1.bf16.msra.mxu0 %v304
  %396 = vmatprep.subr.bf16.mxu0 0
  %397 = vmatpush1.bf16.msra.mxu0 %v305
  %398 = vmatprep.subr.bf16.mxu0 0
  %399 = vmatpush1.bf16.msra.mxu0 %v306
  %400 = vmatprep.subr.bf16.mxu0 0
  %401 = vmatpush1.bf16.msra.mxu0 %v307
  %402 = vmatprep.subr.bf16.mxu0 0
  %403 = vmatpush1.bf16.msra.mxu0 %v308
  %404 = vmatprep.mubr.bf16.mxu0 %v132
  %405 = vmatmul.mubr.bf16.gmra.mrb[0].mxu0 %v131
  %v406 = vpop.f32.mrb[0].mxu0
  %v407 = vadd.f32 0.0, %v406
  %v408 = vpop.f32.mrb[0].mxu0
  %v409 = vpop.f32.mrb[0].mxu0
  %v410 = vadd.f32 0.0, %v409
  %v411 = vpop.f32.mrb[0].mxu0
  %412 = vmatprep.mubr.bf16.mxu0 %v137
  %413 = vmatmul.mubr.bf16.gmra.mrb[0].mxu0 %v136
  %v414 = vpop.f32.mrb[0].mxu0
  %v415 = vadd.f32 0.0, %v414
  %v416 = vpop.f32.mrb[0].mxu0
  %v417 = vpop.f32.mrb[0].mxu0
  %v418 = vadd.f32 0.0, %v417
  %v419 = vpop.f32.mrb[0].mxu0
  %420 = vdwg.mxu0
  %421 = vmatprep.subr.bf16.mxu0 0
  %422 = vmatpush1.bf16.msra.mxu0 %v309
  %423 = vmatprep.subr.bf16.mxu0 0
  %424 = vmatpush1.bf16.msra.mxu0 %v310
  %425 = vmatprep.subr.bf16.mxu0 0
  %426 = vmatpush1.bf16.msra.mxu0 %v311
  %427 = vmatprep.subr.bf16.mxu0 0
  %428 = vmatpush1.bf16.msra.mxu0 %v312
  %429 = vmatprep.subr.bf16.mxu0 0
  %430 = vmatpush1.bf16.msra.mxu0 %v313
  %431 = vmatprep.subr.bf16.mxu0 0
  %432 = vmatpush1.bf16.msra.mxu0 %v314
  %433 = vmatprep.subr.bf16.mxu0 0
  %434 = vmatpush1.bf16.msra.mxu0 %v315
  %435 = vmatprep.subr.bf16.mxu0 0
  %436 = vmatpush1.bf16.msra.mxu0 %v316
  %437 = vmatprep.subr.bf16.mxu0 0
  %438 = vmatpush1.bf16.msra.mxu0 %v317
  %439 = vmatprep.subr.bf16.mxu0 0
  %440 = vmatpush1.bf16.msra.mxu0 %v318
  %441 = vmatprep.subr.bf16.mxu0 0
  %442 = vmatpush1.bf16.msra.mxu0 %v319
  %443 = vmatprep.subr.bf16.mxu0 0
  %444 = vmatpush1.bf16.msra.mxu0 %v320
  %445 = vmatprep.subr.bf16.mxu0 0
  %446 = vmatpush1.bf16.msra.mxu0 %v321
  %447 = vmatprep.subr.bf16.mxu0 0
  %448 = vmatpush1.bf16.msra.mxu0 %v322
  %449 = vmatprep.subr.bf16.mxu0 0
  %450 = vmatpush1.bf16.msra.mxu0 %v323
  %451 = vmatprep.subr.bf16.mxu0 0
  %452 = vmatpush1.bf16.msra.mxu0 %v324
  %453 = vmatprep.mubr.bf16.mxu0 %v134
  %454 = vmatmul.mubr.bf16.gmra.mrb[0].mxu0 %v133
  %v455 = vpop.f32.mrb[0].mxu0
  %v456 = vadd.f32 %v407, %v455
  %v457 = vpop.f32.mrb[0].mxu0
  %v458 = vpop.f32.mrb[0].mxu0
  %v459 = vadd.f32 %v410, %v458
  %v460 = vpop.f32.mrb[0].mxu0
  %461 = vmatprep.mubr.bf16.mxu0 %v139
  %462 = vmatmul.mubr.bf16.gmra.mrb[0].mxu0 %v138
  %v463 = vpop.f32.mrb[0].mxu0
  %v464 = vadd.f32 %v415, %v463
  %v465 = vpop.f32.mrb[0].mxu0
  %v466 = vpop.f32.mrb[0].mxu0
  %v467 = vadd.f32 %v418, %v466
  %v468 = vpop.f32.mrb[0].mxu0
  %469 = vdwg.mxu0
  %470 = vmatprep.subr.bf16.mxu0 0
  %471 = vmatpush1.bf16.msra.mxu0 %v325
  %472 = vmatprep.subr.bf16.mxu0 0
  %473 = vmatpush1.bf16.msra.mxu0 %v326
  %474 = vmatprep.subr.bf16.mxu0 0
  %475 = vmatpush1.bf16.msra.mxu0 %v327
  %476 = vmatprep.subr.bf16.mxu0 0
  %477 = vmatpush1.bf16.msra.mxu0 %v328
  %478 = vmatprep.subr.bf16.mxu0 0
  %479 = vmatpush1.bf16.msra.mxu0 0
  %480 = vmatprep.subr.bf16.mxu0 0
  %481 = vmatpush1.bf16.msra.mxu0 0
  %482 = vmatprep.subr.bf16.mxu0 0
  %483 = vmatpush1.bf16.msra.mxu0 0
  %484 = vmatprep.subr.bf16.mxu0 0
  %485 = vmatpush1.bf16.msra.mxu0 0
  %486 = vmatprep.subr.bf16.mxu0 0
  %487 = vmatpush1.bf16.msra.mxu0 0
  %488 = vmatprep.subr.bf16.mxu0 0
  %489 = vmatpush1.bf16.msra.mxu0 0
  %490 = vmatprep.subr.bf16.mxu0 0
  %491 = vmatpush1.bf16.msra.mxu0 0
  %492 = vmatprep.subr.bf16.mxu0 0
  %493 = vmatpush1.bf16.msra.mxu0 0
  %494 = vmatprep.subr.bf16.mxu0 0
  %495 = vmatpush1.bf16.msra.mxu0 0
  %496 = vmatprep.subr.bf16.mxu0 0
  %497 = vmatpush1.bf16.msra.mxu0 0
  %498 = vmatprep.subr.bf16.mxu0 0
  %499 = vmatpush1.bf16.msra.mxu0 0
  %500 = vmatprep.subr.bf16.mxu0 0
  %501 = vmatpush1.bf16.msra.mxu0 0
  %502 = vmatprep.mubr.bf16.mxu0 0
  %503 = vmatmul.mubr.bf16.gmra.mrb[0].mxu0 %v367
  %v504 = vpop.f32.mrb[0].mxu0
  %v505 = vadd.f32 %v456, %v504
  %v506 = vpop.f32.mrb[0].mxu0
  %v507 = vpop.f32.mrb[0].mxu0
  %v508 = vadd.f32 %v459, %v507
  %v509 = vpop.f32.mrb[0].mxu0
  %510 = vmatprep.mubr.bf16.mxu0 0
  %511 = vmatmul.mubr.bf16.gmra.mrb[0].mxu0 %v370
  %v512 = vpop.f32.mrb[0].mxu0
  %v513 = vadd.f32 %v464, %v512
  %v514 = vpop.f32.mrb[0].mxu0
  %v515 = vpop.f32.mrb[0].mxu0
  %v516 = vadd.f32 %v467, %v515
  %v517 = vpop.f32.mrb[0].mxu0
  %518 = vdwg.mxu0
  %p519 = scmp.eq.s32.totalorder 0, 0
  // Predicated region
  $region10: #{ppo_forward.10} parent=0 // pred_check
    %p520 = pneg %p519
  $region11: #{ppo_forward.10} parent=0 // pred_check_branch
    %522 = sbr.rel (%p520) target = $region13
  $region12: #{ppo_forward.10} parent=0 // pred_region
    %vm523 = vcmask 516096
    %524 = vst.msk [vmem:[%s3] sm:$0x1] %vm523, 0.0
    %525 = vst.msk [vmem:[%s4] sm:$0x1] %vm523, 0.0
  $region13: #{ppo_forward.10} parent=0 // pred_fallthru
    _
  %v526 = vld [vmem:[%s3] sm:$0x1]
  %v527 = vsel %vm365, %v505, 0.0
  %v528 = vsel %vm365, %v508, 0.0
  %v529 = vadd.f32 %v527, %v528
  %v530 = vsel %vm365, %v513, 0.0
  %v531 = vadd.f32 %v529, %v530
  %v532 = vsel %vm365, %v516, 0.0
  %v533 = vadd.f32 %v531, %v532
  %v534 = vrot.slane %v533, 4
  %v535 = vadd.f32 %v533, %v534
  %v536 = vrot.slane %v535, 2
  %v537 = vadd.f32 %v535, %v536
  %v538 = vrot.slane %v537, 1
  %v539 = vadd.f32 %v537, %v538
  %v540 = vadd.f32 %v526, %v539
  %vm541 = vcmask 516096
  %542 = vst.msk [vmem:[%s3] sm:$0x1] %vm541, %v540
  %v543 = vld [vmem:[%s4] sm:$0x1]
  %v544 = vmul.f32 %v505, %v505
  %v545 = vmul.f32 %v508, %v508
  %v546 = vmul.f32 %v513, %v513
  %v547 = vmul.f32 %v516, %v516
  %v548 = vsel %vm365, %v544, 0.0
  %v549 = vsel %vm365, %v545, 0.0
  %v550 = vadd.f32 %v548, %v549
  %v551 = vsel %vm365, %v546, 0.0
  %v552 = vadd.f32 %v550, %v551
  %v553 = vsel %vm365, %v547, 0.0
  %v554 = vadd.f32 %v552, %v553
  %v555 = vrot.slane %v554, 4
  %v556 = vadd.f32 %v554, %v555
  %v557 = vrot.slane %v556, 2
  %v558 = vadd.f32 %v556, %v557
  %v559 = vrot.slane %v558, 1
  %v560 = vadd.f32 %v558, %v559
  %v561 = vadd.f32 %v543, %v560
  %562 = vst.msk [vmem:[%s4] sm:$0x1] %vm541, %v561
  %v563 = vpack.c.bf16 %v508, %v505
  %v564 = vpack.c.bf16 %v516, %v513
  %v567 = vunpack.c.l.b16 %v563
  %v568 = vunpack.c.h.b16 %v563
  %v569 = vunpack.c.l.b16 %v564
  %v570 = vunpack.c.h.b16 %v564
  %v571 = vpack.c.b16 %v567, %v567
  %v572 = vpack.c.b16 %v568, %v568
  %v573 = vpack.c.b16 %v569, %v569
  %v574 = vpack.c.b16 %v570, %v570
  %vm579 = vcmask 519168
  %580 = vst.msk [vmem:[%s2] sm:$0xf] %vm579, %v571
  %581 = vst.msk [vmem:[%s2 + $0x4] sm:$0xf] %vm579, %v572
  %582 = vst.msk [vmem:[%s2 + $0x8] sm:$0xf] %vm579, %v573
  %583 = vst.msk [vmem:[%s2 + $0xc] sm:$0xf] %vm579, %v574
  // Predicated region
  $region14: #{ppo_forward.10} parent=0 // pred_check
    _
  $region15: #{ppo_forward.10} parent=0 // pred_check_branch
    %585 = sbr.rel (0) target = $region17
  $region16: #{ppo_forward.10} parent=0 // pred_region
    _
  $region17: #{ppo_forward.10} parent=0 // pred_fallthru
    _
  // Predicated region
  $region18: #{ppo_forward.10} parent=0 // pred_check
    _
  $region19: #{ppo_forward.10} parent=0 // pred_check_branch
    %587 = sbr.rel (0) target = $region21
  $region20: #{ppo_forward.10} parent=0 // pred_region
    _
  $region21: #{ppo_forward.10} parent=0 // pred_fallthru
    _
  // Predicated region
  $region22: #{ppo_forward.10} parent=0 // pred_check
    _
  $region23: #{ppo_forward.10} parent=0 // pred_check_branch
    %589 = sbr.rel (0) target = $region25
  $region24: #{ppo_forward.10} parent=0 // pred_region
    _
  $region25: #{ppo_forward.10} parent=0 // pred_fallthru
    _
  // Predicated region
  $region26: #{ppo_forward.10} parent=0 // pred_check
    _
  $region27: #{ppo_forward.10} parent=0 // pred_check_branch
    %591 = sbr.rel (0) target = $region29
  $region28: #{ppo_forward.10} parent=0 // pred_region
    _
  $region29: #{ppo_forward.10} parent=0 // pred_fallthru
    _
  // Predicated region
  $region30: #{ppo_forward.10} parent=0 // pred_check
    _
  $region31: #{ppo_forward.10} parent=0 // pred_check_branch
    %593 = sbr.rel (0) target = $region33
  $region32: #{ppo_forward.10} parent=0 // pred_region
    _
  $region33: #{ppo_forward.10} parent=0 // pred_fallthru
    _
  // Predicated region
  $region34: #{ppo_forward.10} parent=0 // pred_check
    _
  $region35: #{ppo_forward.10} parent=0 // pred_check_branch
    %595 = sbr.rel (0) target = $region37
  $region36: #{ppo_forward.10} parent=0 // pred_region
    _
  $region37: #{ppo_forward.10} parent=0 // pred_fallthru
    _

// kernel: ppo_forward.11
$region0: #{ppo_forward.11}
  #allocation0 [shape = 'u32[]', space=smem, size = 0x4, offset = 0x4, fixed_abs, tag = 'smem constant byte address 0x4 - core index']
  #allocation1 [shape = 'u32[144,128]{1,0:T(1,128)}', space=vmem, size = 0x12000, scoped, tag = 'internal scratch']
  %s0 = inlined_call_operand.vmem [shape: bf16[8,1024], index: 0, kind: input, shape index: {}]
  %s1 = inlined_call_operand.vmem [shape: f32[8,1], index: 1, kind: input, shape index: {}]
  %s2 = inlined_call_operand.vmem [shape: f32[1,1024], index: 2, kind: input, shape index: {}]
  %s3 = inlined_call_operand.vmem [shape: f32[1,1024], index: 3, kind: input, shape index: {}]
  %s4 = inlined_call_operand.vmem [shape: bf16[1024,512], index: 4, kind: input, shape index: {}]
  %s5 = inlined_call_operand.vmem [shape: f32[1,512], index: 5, kind: input, shape index: {}]
  %s6 = inlined_call_operand.vmem [shape: f32[1,512], index: 6, kind: input, shape index: {}]
  %s7 = inlined_call_operand.vmem [shape: f32[8,512], index: 7, kind: output, shape index: {}]
  %s8 = sld [smem:[#allocation0]]
  $region38: #{ppo_forward.11} parent=0
    _
  %s10 = ssub.s32 1, %s8
  %s11 = scalar_select 0, %s10, %s8
  // Predicated region
  $region2: #{ppo_forward.11} parent=0 // pred_check
    _
  $region3: #{ppo_forward.11} parent=0 // pred_check_branch
    %13 = sbr.rel (0) target = $region5
  $region4: #{ppo_forward.11} parent=0 // pred_region
    _
  $region5: #{ppo_forward.11} parent=0 // pred_fallthru
    _
  // Predicated region
  $region6: #{ppo_forward.11} parent=0 // pred_check
    _
  $region7: #{ppo_forward.11} parent=0 // pred_check_branch
    %15 = sbr.rel (0) target = $region9
  $region8: #{ppo_forward.11} parent=0 // pred_region
    _
  $region9: #{ppo_forward.11} parent=0 // pred_fallthru
    _
  // Predicated region
  $region10: #{ppo_forward.11} parent=0 // pred_check
    _
  $region11: #{ppo_forward.11} parent=0 // pred_check_branch
    %17 = sbr.rel (0) target = $region13
  $region12: #{ppo_forward.11} parent=0 // pred_region
    _
  $region13: #{ppo_forward.11} parent=0 // pred_fallthru
    _
  // Predicated region
  $region14: #{ppo_forward.11} parent=0 // pred_check
    _
  $region15: #{ppo_forward.11} parent=0 // pred_check_branch
    %19 = sbr.rel (0) target = $region17
  $region16: #{ppo_forward.11} parent=0 // pred_region
    _
  $region17: #{ppo_forward.11} parent=0 // pred_fallthru
    _
  // Predicated region
  $region18: #{ppo_forward.11} parent=0 // pred_check
    _
  $region19: #{ppo_forward.11} parent=0 // pred_check_branch
    %21 = sbr.rel (0) target = $region21
  $region20: #{ppo_forward.11} parent=0 // pred_region
    _
  $region21: #{ppo_forward.11} parent=0 // pred_fallthru
    _
  // Predicated region
  $region22: #{ppo_forward.11} parent=0 // pred_check
    _
  $region23: #{ppo_forward.11} parent=0 // pred_check_branch
    %23 = sbr.rel (0) target = $region25
  $region24: #{ppo_forward.11} parent=0 // pred_region
    _
  $region25: #{ppo_forward.11} parent=0 // pred_fallthru
    _
  // Predicated region
  $region26: #{ppo_forward.11} parent=0 // pred_check
    _
  $region27: #{ppo_forward.11} parent=0 // pred_check_branch
    %25 = sbr.rel (0) target = $region29
  $region28: #{ppo_forward.11} parent=0 // pred_region
    _
  $region29: #{ppo_forward.11} parent=0 // pred_fallthru
    _
  %v26 = vld [vmem:[%s0] sm:$0xff]
  %v27 = vld [vmem:[%s0 + $0x8] sm:$0xff]
  %v28 = vld [vmem:[%s0 + $0x10] sm:$0xff]
  %v29 = vld [vmem:[%s0 + $0x18] sm:$0xff]
  %v30 = vunpack.c.l.bf16 %v26
  %v31 = vunpack.c.h.bf16 %v26
  %v32 = vunpack.c.l.bf16 %v27
  %v33 = vunpack.c.h.bf16 %v27
  %v34 = vunpack.c.l.bf16 %v28
  %v35 = vunpack.c.h.bf16 %v28
  %v36 = vunpack.c.l.bf16 %v29
  %v37 = vunpack.c.h.bf16 %v29
  %v38 = vld [vmem:[%s2] sm:$0xff]
  %v40 = vlaneseq
  %v41 = vshrl.u32 %v40, 7
  %v42 = vsub.s32 0, %v41
  %v43 = vrot.slane %v38, %v42
  %v44 = vlaneseq
  %v45 = vshrl.u32 %v44, 7
  %v46 = vsub.s32 1, %v45
  %v47 = vrot.slane %v38, %v46
  %v48 = vlaneseq
  %v49 = vshrl.u32 %v48, 7
  %v50 = vsub.s32 2, %v49
  %v51 = vrot.slane %v38, %v50
  %v52 = vlaneseq
  %v53 = vshrl.u32 %v52, 7
  %v54 = vsub.s32 3, %v53
  %v55 = vrot.slane %v38, %v54
  %v56 = vlaneseq
  %v57 = vshrl.u32 %v56, 7
  %v58 = vsub.s32 4, %v57
  %v59 = vrot.slane %v38, %v58
  %v60 = vlaneseq
  %v61 = vshrl.u32 %v60, 7
  %v62 = vsub.s32 5, %v61
  %v63 = vrot.slane %v38, %v62
  %v64 = vlaneseq
  %v65 = vshrl.u32 %v64, 7
  %v66 = vsub.s32 6, %v65
  %v67 = vrot.slane %v38, %v66
  %v68 = vlaneseq
  %v69 = vshrl.u32 %v68, 7
  %v70 = vsub.s32 7, %v69
  %v71 = vrot.slane %v38, %v70
  %v80 = vmul.f32 %v30, %v43
  %v81 = vmul.f32 %v31, %v47
  %v82 = vmul.f32 %v32, %v51
  %v83 = vmul.f32 %v33, %v55
  %v84 = vmul.f32 %v34, %v59
  %v85 = vmul.f32 %v35, %v63
  %v86 = vmul.f32 %v36, %v67
  %v87 = vmul.f32 %v37, %v71
  %v88 = vld [vmem:[%s3] sm:$0xff]
  %v90 = vlaneseq
  %v91 = vshrl.u32 %v90, 7
  %v92 = vsub.s32 0, %v91
  %v93 = vrot.slane %v88, %v92
  %v94 = vlaneseq
  %v95 = vshrl.u32 %v94, 7
  %v96 = vsub.s32 1, %v95
  %v97 = vrot.slane %v88, %v96
  %v98 = vlaneseq
  %v99 = vshrl.u32 %v98, 7
  %v100 = vsub.s32 2, %v99
  %v101 = vrot.slane %v88, %v100
  %v102 = vlaneseq
  %v103 = vshrl.u32 %v102, 7
  %v104 = vsub.s32 3, %v103
  %v105 = vrot.slane %v88, %v104
  %v106 = vlaneseq
  %v107 = vshrl.u32 %v106, 7
  %v108 = vsub.s32 4, %v107
  %v109 = vrot.slane %v88, %v108
  %v110 = vlaneseq
  %v111 = vshrl.u32 %v110, 7
  %v112 = vsub.s32 5, %v111
  %v113 = vrot.slane %v88, %v112
  %v114 = vlaneseq
  %v115 = vshrl.u32 %v114, 7
  %v116 = vsub.s32 6, %v115
  %v117 = vrot.slane %v88, %v116
  %v118 = vlaneseq
  %v119 = vshrl.u32 %v118, 7
  %v120 = vsub.s32 7, %v119
  %v121 = vrot.slane %v88, %v120
  %v130 = vadd.f32 %v80, %v93
  %v131 = vadd.f32 %v81, %v97
  %v132 = vadd.f32 %v82, %v101
  %v133 = vadd.f32 %v83, %v105
  %v134 = vadd.f32 %v84, %v109
  %v135 = vadd.f32 %v85, %v113
  %v136 = vadd.f32 %v86, %v117
  %v137 = vadd.f32 %v87, %v121
  %v138 = vmax.f32 %v130, 0.0
  %v139 = vmax.f32 %v131, 0.0
  %v140 = vmax.f32 %v132, 0.0
  %v141 = vmax.f32 %v133, 0.0
  %v142 = vmax.f32 %v134, 0.0
  %v143 = vmax.f32 %v135, 0.0
  %v144 = vmax.f32 %v136, 0.0
  %v145 = vmax.f32 %v137, 0.0
  %v146 = vpack.c.bf16 %v138, %v138
  %v147 = vpack.c.bf16 %v139, %v139
  %v148 = vpack.c.bf16 %v140, %v140
  %v149 = vpack.c.bf16 %v141, %v141
  %v150 = vpack.c.bf16 %v142, %v142
  %v151 = vpack.c.bf16 %v143, %v143
  %v152 = vpack.c.bf16 %v144, %v144
  %v153 = vpack.c.bf16 %v145, %v145
  %v154 = vld [vmem:[%s4] sm:$0xff]
  %v155 = vld [vmem:[%s4 + $0x8] sm:$0xff]
  %v156 = vld [vmem:[%s4 + $0x10] sm:$0xff]
  %v157 = vld [vmem:[%s4 + $0x18] sm:$0xff]
  %v158 = vld [vmem:[%s4 + $0x20] sm:$0xff]
  %v159 = vld [vmem:[%s4 + $0x28] sm:$0xff]
  %v160 = vld [vmem:[%s4 + $0x30] sm:$0xff]
  %v161 = vld [vmem:[%s4 + $0x38] sm:$0xff]
  %v162 = vld [vmem:[%s4 + $0x40] sm:$0xff]
  %v163 = vld [vmem:[%s4 + $0x48] sm:$0xff]
  %v164 = vld [vmem:[%s4 + $0x50] sm:$0xff]
  %v165 = vld [vmem:[%s4 + $0x58] sm:$0xff]
  %v166 = vld [vmem:[%s4 + $0x60] sm:$0xff]
  %v167 = vld [vmem:[%s4 + $0x68] sm:$0xff]
  %v168 = vld [vmem:[%s4 + $0x70] sm:$0xff]
  %v169 = vld [vmem:[%s4 + $0x78] sm:$0xff]
  %v170 = vld [vmem:[%s4 + $0x80] sm:$0xff]
  %v171 = vld [vmem:[%s4 + $0x88] sm:$0xff]
  %v172 = vld [vmem:[%s4 + $0x90] sm:$0xff]
  %v173 = vld [vmem:[%s4 + $0x98] sm:$0xff]
  %v174 = vld [vmem:[%s4 + $0xa0] sm:$0xff]
  %v175 = vld [vmem:[%s4 + $0xa8] sm:$0xff]
  %v176 = vld [vmem:[%s4 + $0xb0] sm:$0xff]
  %v177 = vld [vmem:[%s4 + $0xb8] sm:$0xff]
  %v178 = vld [vmem:[%s4 + $0xc0] sm:$0xff]
  %v179 = vld [vmem:[%s4 + $0xc8] sm:$0xff]
  %v180 = vld [vmem:[%s4 + $0xd0] sm:$0xff]
  %v181 = vld [vmem:[%s4 + $0xd8] sm:$0xff]
  %v182 = vld [vmem:[%s4 + $0xe0] sm:$0xff]
  %v183 = vld [vmem:[%s4 + $0xe8] sm:$0xff]
  %v184 = vld [vmem:[%s4 + $0xf0] sm:$0xff]
  %v185 = vld [vmem:[%s4 + $0xf8] sm:$0xff]
  %v186 = vld [vmem:[%s4 + $0x100] sm:$0xff]
  %v187 = vld [vmem:[%s4 + $0x108] sm:$0xff]
  %v188 = vld [vmem:[%s4 + $0x110] sm:$0xff]
  %v189 = vld [vmem:[%s4 + $0x118] sm:$0xff]
  %v190 = vld [vmem:[%s4 + $0x120] sm:$0xff]
  %v191 = vld [vmem:[%s4 + $0x128] sm:$0xff]
  %v192 = vld [vmem:[%s4 + $0x130] sm:$0xff]
  %v193 = vld [vmem:[%s4 + $0x138] sm:$0xff]
  %v194 = vld [vmem:[%s4 + $0x140] sm:$0xff]
  %v195 = vld [vmem:[%s4 + $0x148] sm:$0xff]
  %v196 = vld [vmem:[%s4 + $0x150] sm:$0xff]
  %v197 = vld [vmem:[%s4 + $0x158] sm:$0xff]
  %v198 = vld [vmem:[%s4 + $0x160] sm:$0xff]
  %v199 = vld [vmem:[%s4 + $0x168] sm:$0xff]
  %v200 = vld [vmem:[%s4 + $0x170] sm:$0xff]
  %v201 = vld [vmem:[%s4 + $0x178] sm:$0xff]
  %v202 = vld [vmem:[%s4 + $0x180] sm:$0xff]
  %v203 = vld [vmem:[%s4 + $0x188] sm:$0xff]
  %v204 = vld [vmem:[%s4 + $0x190] sm:$0xff]
  %v205 = vld [vmem:[%s4 + $0x198] sm:$0xff]
  %v206 = vld [vmem:[%s4 + $0x1a0] sm:$0xff]
  %v207 = vld [vmem:[%s4 + $0x1a8] sm:$0xff]
  %v208 = vld [vmem:[%s4 + $0x1b0] sm:$0xff]
  %v209 = vld [vmem:[%s4 + $0x1b8] sm:$0xff]
  %v210 = vld [vmem:[%s4 + $0x1c0] sm:$0xff]
  %v211 = vld [vmem:[%s4 + $0x1c8] sm:$0xff]
  %v212 = vld [vmem:[%s4 + $0x1d0] sm:$0xff]
  %v213 = vld [vmem:[%s4 + $0x1d8] sm:$0xff]
  %v214 = vld [vmem:[%s4 + $0x1e0] sm:$0xff]
  %v215 = vld [vmem:[%s4 + $0x1e8] sm:$0xff]
  %v216 = vld [vmem:[%s4 + $0x1f0] sm:$0xff]
  %v217 = vld [vmem:[%s4 + $0x1f8] sm:$0xff]
  %v218 = vld [vmem:[%s4 + $0x200] sm:$0xff]
  %v219 = vld [vmem:[%s4 + $0x208] sm:$0xff]
  %v220 = vld [vmem:[%s4 + $0x210] sm:$0xff]
  %v221 = vld [vmem:[%s4 + $0x218] sm:$0xff]
  %v222 = vld [vmem:[%s4 + $0x220] sm:$0xff]
  %v223 = vld [vmem:[%s4 + $0x228] sm:$0xff]
  %v224 = vld [vmem:[%s4 + $0x230] sm:$0xff]
  %v225 = vld [vmem:[%s4 + $0x238] sm:$0xff]
  %v226 = vld [vmem:[%s4 + $0x240] sm:$0xff]
  %v227 = vld [vmem:[%s4 + $0x248] sm:$0xff]
  %v228 = vld [vmem:[%s4 + $0x250] sm:$0xff]
  %v229 = vld [vmem:[%s4 + $0x258] sm:$0xff]
  %v230 = vld [vmem:[%s4 + $0x260] sm:$0xff]
  %v231 = vld [vmem:[%s4 + $0x268] sm:$0xff]
  %v232 = vld [vmem:[%s4 + $0x270] sm:$0xff]
  %v233 = vld [vmem:[%s4 + $0x278] sm:$0xff]
  %v234 = vld [vmem:[%s4 + $0x280] sm:$0xff]
  %v235 = vld [vmem:[%s4 + $0x288] sm:$0xff]
  %v236 = vld [vmem:[%s4 + $0x290] sm:$0xff]
  %v237 = vld [vmem:[%s4 + $0x298] sm:$0xff]
  %v238 = vld [vmem:[%s4 + $0x2a0] sm:$0xff]
  %v239 = vld [vmem:[%s4 + $0x2a8] sm:$0xff]
  %v240 = vld [vmem:[%s4 + $0x2b0] sm:$0xff]
  %v241 = vld [vmem:[%s4 + $0x2b8] sm:$0xff]
  %v242 = vld [vmem:[%s4 + $0x2c0] sm:$0xff]
  %v243 = vld [vmem:[%s4 + $0x2c8] sm:$0xff]
  %v244 = vld [vmem:[%s4 + $0x2d0] sm:$0xff]
  %v245 = vld [vmem:[%s4 + $0x2d8] sm:$0xff]
  %v246 = vld [vmem:[%s4 + $0x2e0] sm:$0xff]
  %v247 = vld [vmem:[%s4 + $0x2e8] sm:$0xff]
  %v248 = vld [vmem:[%s4 + $0x2f0] sm:$0xff]
  %v249 = vld [vmem:[%s4 + $0x2f8] sm:$0xff]
  %v250 = vld [vmem:[%s4 + $0x300] sm:$0xff]
  %v251 = vld [vmem:[%s4 + $0x308] sm:$0xff]
  %v252 = vld [vmem:[%s4 + $0x310] sm:$0xff]
  %v253 = vld [vmem:[%s4 + $0x318] sm:$0xff]
  %v254 = vld [vmem:[%s4 + $0x320] sm:$0xff]
  %v255 = vld [vmem:[%s4 + $0x328] sm:$0xff]
  %v256 = vld [vmem:[%s4 + $0x330] sm:$0xff]
  %v257 = vld [vmem:[%s4 + $0x338] sm:$0xff]
  %v258 = vld [vmem:[%s4 + $0x340] sm:$0xff]
  %v259 = vld [vmem:[%s4 + $0x348] sm:$0xff]
  %v260 = vld [vmem:[%s4 + $0x350] sm:$0xff]
  %v261 = vld [vmem:[%s4 + $0x358] sm:$0xff]
  %v262 = vld [vmem:[%s4 + $0x360] sm:$0xff]
  %v263 = vld [vmem:[%s4 + $0x368] sm:$0xff]
  %v264 = vld [vmem:[%s4 + $0x370] sm:$0xff]
  %v265 = vld [vmem:[%s4 + $0x378] sm:$0xff]
  %v266 = vld [vmem:[%s4 + $0x380] sm:$0xff]
  %v267 = vld [vmem:[%s4 + $0x388] sm:$0xff]
  %v268 = vld [vmem:[%s4 + $0x390] sm:$0xff]
  %v269 = vld [vmem:[%s4 + $0x398] sm:$0xff]
  %v270 = vld [vmem:[%s4 + $0x3a0] sm:$0xff]
  %v271 = vld [vmem:[%s4 + $0x3a8] sm:$0xff]
  %v272 = vld [vmem:[%s4 + $0x3b0] sm:$0xff]
  %v273 = vld [vmem:[%s4 + $0x3b8] sm:$0xff]
  %v274 = vld [vmem:[%s4 + $0x3c0] sm:$0xff]
  %v275 = vld [vmem:[%s4 + $0x3c8] sm:$0xff]
  %v276 = vld [vmem:[%s4 + $0x3d0] sm:$0xff]
  %v277 = vld [vmem:[%s4 + $0x3d8] sm:$0xff]
  %v278 = vld [vmem:[%s4 + $0x3e0] sm:$0xff]
  %v279 = vld [vmem:[%s4 + $0x3e8] sm:$0xff]
  %v280 = vld [vmem:[%s4 + $0x3f0] sm:$0xff]
  %v281 = vld [vmem:[%s4 + $0x3f8] sm:$0xff]
  %v282 = vld [vmem:[%s4 + $0x400] sm:$0xff]
  %v283 = vld [vmem:[%s4 + $0x408] sm:$0xff]
  %v284 = vld [vmem:[%s4 + $0x410] sm:$0xff]
  %v285 = vld [vmem:[%s4 + $0x418] sm:$0xff]
  %v286 = vld [vmem:[%s4 + $0x420] sm:$0xff]
  %v287 = vld [vmem:[%s4 + $0x428] sm:$0xff]
  %v288 = vld [vmem:[%s4 + $0x430] sm:$0xff]
  %v289 = vld [vmem:[%s4 + $0x438] sm:$0xff]
  %v290 = vld [vmem:[%s4 + $0x440] sm:$0xff]
  %v291 = vld [vmem:[%s4 + $0x448] sm:$0xff]
  %v292 = vld [vmem:[%s4 + $0x450] sm:$0xff]
  %v293 = vld [vmem:[%s4 + $0x458] sm:$0xff]
  %v294 = vld [vmem:[%s4 + $0x460] sm:$0xff]
  %v295 = vld [vmem:[%s4 + $0x468] sm:$0xff]
  %v296 = vld [vmem:[%s4 + $0x470] sm:$0xff]
  %v297 = vld [vmem:[%s4 + $0x478] sm:$0xff]
  %v298 = vld [vmem:[%s4 + $0x480] sm:$0xff]
  %v299 = vld [vmem:[%s4 + $0x488] sm:$0xff]
  %v300 = vld [vmem:[%s4 + $0x490] sm:$0xff]
  %v301 = vld [vmem:[%s4 + $0x498] sm:$0xff]
  %v302 = vld [vmem:[%s4 + $0x4a0] sm:$0xff]
  %v303 = vld [vmem:[%s4 + $0x4a8] sm:$0xff]
  %v304 = vld [vmem:[%s4 + $0x4b0] sm:$0xff]
  %v305 = vld [vmem:[%s4 + $0x4b8] sm:$0xff]
  %v306 = vld [vmem:[%s4 + $0x4c0] sm:$0xff]
  %v307 = vld [vmem:[%s4 + $0x4c8] sm:$0xff]
  %v308 = vld [vmem:[%s4 + $0x4d0] sm:$0xff]
  %v309 = vld [vmem:[%s4 + $0x4d8] sm:$0xff]
  %v310 = vld [vmem:[%s4 + $0x4e0] sm:$0xff]
  %v311 = vld [vmem:[%s4 + $0x4e8] sm:$0xff]
  %v312 = vld [vmem:[%s4 + $0x4f0] sm:$0xff]
  %v313 = vld [vmem:[%s4 + $0x4f8] sm:$0xff]
  %v314 = vld [vmem:[%s4 + $0x500] sm:$0xff]
  %v315 = vld [vmem:[%s4 + $0x508] sm:$0xff]
  %v316 = vld [vmem:[%s4 + $0x510] sm:$0xff]
  %v317 = vld [vmem:[%s4 + $0x518] sm:$0xff]
  %v318 = vld [vmem:[%s4 + $0x520] sm:$0xff]
  %v319 = vld [vmem:[%s4 + $0x528] sm:$0xff]
  %v320 = vld [vmem:[%s4 + $0x530] sm:$0xff]
  %v321 = vld [vmem:[%s4 + $0x538] sm:$0xff]
  %v322 = vld [vmem:[%s4 + $0x540] sm:$0xff]
  %v323 = vld [vmem:[%s4 + $0x548] sm:$0xff]
  %v324 = vld [vmem:[%s4 + $0x550] sm:$0xff]
  %v325 = vld [vmem:[%s4 + $0x558] sm:$0xff]
  %v326 = vld [vmem:[%s4 + $0x560] sm:$0xff]
  %v327 = vld [vmem:[%s4 + $0x568] sm:$0xff]
  %v328 = vld [vmem:[%s4 + $0x570] sm:$0xff]
  %v329 = vld [vmem:[%s4 + $0x578] sm:$0xff]
  %v330 = vld [vmem:[%s4 + $0x580] sm:$0xff]
  %v331 = vld [vmem:[%s4 + $0x588] sm:$0xff]
  %v332 = vld [vmem:[%s4 + $0x590] sm:$0xff]
  %v333 = vld [vmem:[%s4 + $0x598] sm:$0xff]
  %v334 = vld [vmem:[%s4 + $0x5a0] sm:$0xff]
  %v335 = vld [vmem:[%s4 + $0x5a8] sm:$0xff]
  %v336 = vld [vmem:[%s4 + $0x5b0] sm:$0xff]
  %v337 = vld [vmem:[%s4 + $0x5b8] sm:$0xff]
  %v338 = vld [vmem:[%s4 + $0x5c0] sm:$0xff]
  %v339 = vld [vmem:[%s4 + $0x5c8] sm:$0xff]
  %v340 = vld [vmem:[%s4 + $0x5d0] sm:$0xff]
  %v341 = vld [vmem:[%s4 + $0x5d8] sm:$0xff]
  %v342 = vld [vmem:[%s4 + $0x5e0] sm:$0xff]
  %v343 = vld [vmem:[%s4 + $0x5e8] sm:$0xff]
  %v344 = vld [vmem:[%s4 + $0x5f0] sm:$0xff]
  %v345 = vld [vmem:[%s4 + $0x5f8] sm:$0xff]
  %v346 = vld [vmem:[%s4 + $0x600] sm:$0xff]
  %v347 = vld [vmem:[%s4 + $0x608] sm:$0xff]
  %v348 = vld [vmem:[%s4 + $0x610] sm:$0xff]
  %v349 = vld [vmem:[%s4 + $0x618] sm:$0xff]
  %v350 = vld [vmem:[%s4 + $0x620] sm:$0xff]
  %v351 = vld [vmem:[%s4 + $0x628] sm:$0xff]
  %v352 = vld [vmem:[%s4 + $0x630] sm:$0xff]
  %v353 = vld [vmem:[%s4 + $0x638] sm:$0xff]
  %v354 = vld [vmem:[%s4 + $0x640] sm:$0xff]
  %v355 = vld [vmem:[%s4 + $0x648] sm:$0xff]
  %v356 = vld [vmem:[%s4 + $0x650] sm:$0xff]
  %v357 = vld [vmem:[%s4 + $0x658] sm:$0xff]
  %v358 = vld [vmem:[%s4 + $0x660] sm:$0xff]
  %v359 = vld [vmem:[%s4 + $0x668] sm:$0xff]
  %v360 = vld [vmem:[%s4 + $0x670] sm:$0xff]
  %v361 = vld [vmem:[%s4 + $0x678] sm:$0xff]
  %v362 = vld [vmem:[%s4 + $0x680] sm:$0xff]
  %v363 = vld [vmem:[%s4 + $0x688] sm:$0xff]
  %v364 = vld [vmem:[%s4 + $0x690] sm:$0xff]
  %v365 = vld [vmem:[%s4 + $0x698] sm:$0xff]
  %v366 = vld [vmem:[%s4 + $0x6a0] sm:$0xff]
  %v367 = vld [vmem:[%s4 + $0x6a8] sm:$0xff]
  %v368 = vld [vmem:[%s4 + $0x6b0] sm:$0xff]
  %v369 = vld [vmem:[%s4 + $0x6b8] sm:$0xff]
  %v370 = vld [vmem:[%s4 + $0x6c0] sm:$0xff]
  %v371 = vld [vmem:[%s4 + $0x6c8] sm:$0xff]
  %v372 = vld [vmem:[%s4 + $0x6d0] sm:$0xff]
  %v373 = vld [vmem:[%s4 + $0x6d8] sm:$0xff]
  %v374 = vld [vmem:[%s4 + $0x6e0] sm:$0xff]
  %v375 = vld [vmem:[%s4 + $0x6e8] sm:$0xff]
  %v376 = vld [vmem:[%s4 + $0x6f0] sm:$0xff]
  %v377 = vld [vmem:[%s4 + $0x6f8] sm:$0xff]
  %v378 = vld [vmem:[%s4 + $0x700] sm:$0xff]
  %v379 = vld [vmem:[%s4 + $0x708] sm:$0xff]
  %v380 = vld [vmem:[%s4 + $0x710] sm:$0xff]
  %v381 = vld [vmem:[%s4 + $0x718] sm:$0xff]
  %v382 = vld [vmem:[%s4 + $0x720] sm:$0xff]
  %v383 = vld [vmem:[%s4 + $0x728] sm:$0xff]
  %v384 = vld [vmem:[%s4 + $0x730] sm:$0xff]
  %v385 = vld [vmem:[%s4 + $0x738] sm:$0xff]
  %v386 = vld [vmem:[%s4 + $0x740] sm:$0xff]
  %v387 = vld [vmem:[%s4 + $0x748] sm:$0xff]
  %v388 = vld [vmem:[%s4 + $0x750] sm:$0xff]
  %v389 = vld [vmem:[%s4 + $0x758] sm:$0xff]
  %v390 = vld [vmem:[%s4 + $0x760] sm:$0xff]
  %v391 = vld [vmem:[%s4 + $0x768] sm:$0xff]
  %v392 = vld [vmem:[%s4 + $0x770] sm:$0xff]
  %v393 = vld [vmem:[%s4 + $0x778] sm:$0xff]
  %v394 = vld [vmem:[%s4 + $0x780] sm:$0xff]
  %v395 = vld [vmem:[%s4 + $0x788] sm:$0xff]
  %v396 = vld [vmem:[%s4 + $0x790] sm:$0xff]
  %v397 = vld [vmem:[%s4 + $0x798] sm:$0xff]
  %v398 = vld [vmem:[%s4 + $0x7a0] sm:$0xff]
  %v399 = vld [vmem:[%s4 + $0x7a8] sm:$0xff]
  %v400 = vld [vmem:[%s4 + $0x7b0] sm:$0xff]
  %v401 = vld [vmem:[%s4 + $0x7b8] sm:$0xff]
  %v402 = vld [vmem:[%s4 + $0x7c0] sm:$0xff]
  %v403 = vld [vmem:[%s4 + $0x7c8] sm:$0xff]
  %v404 = vld [vmem:[%s4 + $0x7d0] sm:$0xff]
  %v405 = vld [vmem:[%s4 + $0x7d8] sm:$0xff]
  %v406 = vld [vmem:[%s4 + $0x7e0] sm:$0xff]
  %v407 = vld [vmem:[%s4 + $0x7e8] sm:$0xff]
  %v408 = vld [vmem:[%s4 + $0x7f0] sm:$0xff]
  %v409 = vld [vmem:[%s4 + $0x7f8] sm:$0xff]
  %v410 = vld [vmem:[%s1] sm:$0xff]
  %v411 = vld [vmem:[%s5] sm:$0xf]
  %413 = vset.pattern.permute.xlu0 0
  %414 = vperm.xlu0 %413, %v410
  %v415 = vpop.permute.xlu0 %414
  %v418 = vlaneseq
  %v419 = vshrl.u32 %v418, 7
  %v420 = vsub.s32 0, %v419
  %v421 = vrot.slane %v411, %v420
  %v422 = vlaneseq
  %v423 = vshrl.u32 %v422, 7
  %v424 = vsub.s32 1, %v423
  %v425 = vrot.slane %v411, %v424
  %v426 = vlaneseq
  %v427 = vshrl.u32 %v426, 7
  %v428 = vsub.s32 2, %v427
  %v429 = vrot.slane %v411, %v428
  %v430 = vlaneseq
  %v431 = vshrl.u32 %v430, 7
  %v432 = vsub.s32 3, %v431
  %v433 = vrot.slane %v411, %v432
  %v438 = vmul.f32 %v415, %v421
  %v439 = vmul.f32 %v415, %v425
  %v440 = vmul.f32 %v415, %v429
  %v441 = vmul.f32 %v415, %v433
  %v698 = vunpack.c.l.b16 %v154
  %v699 = vunpack.c.h.b16 %v154
  %v700 = vunpack.c.l.b16 %v155
  %v701 = vunpack.c.h.b16 %v155
  %v702 = vunpack.c.l.b16 %v156
  %v703 = vunpack.c.h.b16 %v156
  %v704 = vunpack.c.l.b16 %v157
  %v705 = vunpack.c.h.b16 %v157
  %v706 = vunpack.c.l.b16 %v158
  %v707 = vunpack.c.h.b16 %v158
  %v708 = vunpack.c.l.b16 %v159
  %v709 = vunpack.c.h.b16 %v159
  %v710 = vunpack.c.l.b16 %v160
  %v711 = vunpack.c.h.b16 %v160
  %v712 = vunpack.c.l.b16 %v161
  %v713 = vunpack.c.h.b16 %v161
  %v714 = vunpack.c.l.b16 %v162
  %v715 = vunpack.c.h.b16 %v162
  %v716 = vunpack.c.l.b16 %v163
  %v717 = vunpack.c.h.b16 %v163
  %v718 = vunpack.c.l.b16 %v164
  %v719 = vunpack.c.h.b16 %v164
  %v720 = vunpack.c.l.b16 %v165
  %v721 = vunpack.c.h.b16 %v165
  %v722 = vunpack.c.l.b16 %v166
  %v723 = vunpack.c.h.b16 %v166
  %v724 = vunpack.c.l.b16 %v167
  %v725 = vunpack.c.h.b16 %v167
  %v726 = vunpack.c.l.b16 %v168
  %v727 = vunpack.c.h.b16 %v168
  %v728 = vunpack.c.l.b16 %v169
  %v729 = vunpack.c.h.b16 %v169
  %v730 = vunpack.c.l.b16 %v170
  %v731 = vunpack.c.h.b16 %v170
  %v732 = vunpack.c.l.b16 %v171
  %v733 = vunpack.c.h.b16 %v171
  %v734 = vunpack.c.l.b16 %v172
  %v735 = vunpack.c.h.b16 %v172
  %v736 = vunpack.c.l.b16 %v173
  %v737 = vunpack.c.h.b16 %v173
  %v738 = vunpack.c.l.b16 %v174
  %v739 = vunpack.c.h.b16 %v174
  %v740 = vunpack.c.l.b16 %v175
  %v741 = vunpack.c.h.b16 %v175
  %v742 = vunpack.c.l.b16 %v176
  %v743 = vunpack.c.h.b16 %v176
  %v744 = vunpack.c.l.b16 %v177
  %v745 = vunpack.c.h.b16 %v177
  %v746 = vunpack.c.l.b16 %v178
  %v747 = vunpack.c.h.b16 %v178
  %v748 = vunpack.c.l.b16 %v179
  %v749 = vunpack.c.h.b16 %v179
  %v750 = vunpack.c.l.b16 %v180
  %v751 = vunpack.c.h.b16 %v180
  %v752 = vunpack.c.l.b16 %v181
  %v753 = vunpack.c.h.b16 %v181
  %v754 = vunpack.c.l.b16 %v182
  %v755 = vunpack.c.h.b16 %v182
  %v756 = vunpack.c.l.b16 %v183
  %v757 = vunpack.c.h.b16 %v183
  %v758 = vunpack.c.l.b16 %v184
  %v759 = vunpack.c.h.b16 %v184
  %v760 = vunpack.c.l.b16 %v185
  %v761 = vunpack.c.h.b16 %v185
  %v762 = vunpack.c.l.b16 %v186
  %v763 = vunpack.c.h.b16 %v186
  %v764 = vunpack.c.l.b16 %v187
  %v765 = vunpack.c.h.b16 %v187
  %v766 = vunpack.c.l.b16 %v188
  %v767 = vunpack.c.h.b16 %v188
  %v768 = vunpack.c.l.b16 %v189
  %v769 = vunpack.c.h.b16 %v189
  %v770 = vunpack.c.l.b16 %v190
  %v771 = vunpack.c.h.b16 %v190
  %v772 = vunpack.c.l.b16 %v191
  %v773 = vunpack.c.h.b16 %v191
  %v774 = vunpack.c.l.b16 %v192
  %v775 = vunpack.c.h.b16 %v192
  %v776 = vunpack.c.l.b16 %v193
  %v777 = vunpack.c.h.b16 %v193
  %v778 = vunpack.c.l.b16 %v194
  %v779 = vunpack.c.h.b16 %v194
  %v780 = vunpack.c.l.b16 %v195
  %v781 = vunpack.c.h.b16 %v195
  %v782 = vunpack.c.l.b16 %v196
  %v783 = vunpack.c.h.b16 %v196
  %v784 = vunpack.c.l.b16 %v197
  %v785 = vunpack.c.h.b16 %v197
  %v786 = vunpack.c.l.b16 %v198
  %v787 = vunpack.c.h.b16 %v198
  %v788 = vunpack.c.l.b16 %v199
  %v789 = vunpack.c.h.b16 %v199
  %v790 = vunpack.c.l.b16 %v200
  %v791 = vunpack.c.h.b16 %v200
  %v792 = vunpack.c.l.b16 %v201
  %v793 = vunpack.c.h.b16 %v201
  %v794 = vunpack.c.l.b16 %v202
  %v795 = vunpack.c.h.b16 %v202
  %v796 = vunpack.c.l.b16 %v203
  %v797 = vunpack.c.h.b16 %v203
  %v798 = vunpack.c.l.b16 %v204
  %v799 = vunpack.c.h.b16 %v204
  %v800 = vunpack.c.l.b16 %v205
  %v801 = vunpack.c.h.b16 %v205
  %v802 = vunpack.c.l.b16 %v206
  %v803 = vunpack.c.h.b16 %v206
  %v804 = vunpack.c.l.b16 %v207
  %v805 = vunpack.c.h.b16 %v207
  %v806 = vunpack.c.l.b16 %v208
  %v807 = vunpack.c.h.b16 %v208
  %v808 = vunpack.c.l.b16 %v209
  %v809 = vunpack.c.h.b16 %v209
  %v810 = vunpack.c.l.b16 %v210
  %v811 = vunpack.c.h.b16 %v210
  %v812 = vunpack.c.l.b16 %v211
  %v813 = vunpack.c.h.b16 %v211
  %v814 = vunpack.c.l.b16 %v212
  %v815 = vunpack.c.h.b16 %v212
  %v816 = vunpack.c.l.b16 %v213
  %v817 = vunpack.c.h.b16 %v213
  %v818 = vunpack.c.l.b16 %v214
  %v819 = vunpack.c.h.b16 %v214
  %v820 = vunpack.c.l.b16 %v215
  %v821 = vunpack.c.h.b16 %v215
  %v822 = vunpack.c.l.b16 %v216
  %v823 = vunpack.c.h.b16 %v216
  %v824 = vunpack.c.l.b16 %v217
  %v825 = vunpack.c.h.b16 %v217
  %v826 = vunpack.c.l.b16 %v218
  %v827 = vunpack.c.h.b16 %v218
  %v828 = vunpack.c.l.b16 %v219
  %v829 = vunpack.c.h.b16 %v219
  %v830 = vunpack.c.l.b16 %v220
  %v831 = vunpack.c.h.b16 %v220
  %v832 = vunpack.c.l.b16 %v221
  %v833 = vunpack.c.h.b16 %v221
  %v834 = vunpack.c.l.b16 %v222
  %v835 = vunpack.c.h.b16 %v222
  %v836 = vunpack.c.l.b16 %v223
  %v837 = vunpack.c.h.b16 %v223
  %v838 = vunpack.c.l.b16 %v224
  %v839 = vunpack.c.h.b16 %v224
  %v840 = vunpack.c.l.b16 %v225
  %v841 = vunpack.c.h.b16 %v225
  %v842 = vunpack.c.l.b16 %v226
  %v843 = vunpack.c.h.b16 %v226
  %v844 = vunpack.c.l.b16 %v227
  %v845 = vunpack.c.h.b16 %v227
  %v846 = vunpack.c.l.b16 %v228
  %v847 = vunpack.c.h.b16 %v228
  %v848 = vunpack.c.l.b16 %v229
  %v849 = vunpack.c.h.b16 %v229
  %v850 = vunpack.c.l.b16 %v230
  %v851 = vunpack.c.h.b16 %v230
  %v852 = vunpack.c.l.b16 %v231
  %v853 = vunpack.c.h.b16 %v231
  %v854 = vunpack.c.l.b16 %v232
  %v855 = vunpack.c.h.b16 %v232
  %v856 = vunpack.c.l.b16 %v233
  %v857 = vunpack.c.h.b16 %v233
  %v858 = vunpack.c.l.b16 %v234
  %v859 = vunpack.c.h.b16 %v234
  %v860 = vunpack.c.l.b16 %v235
  %v861 = vunpack.c.h.b16 %v235
  %v862 = vunpack.c.l.b16 %v236
  %v863 = vunpack.c.h.b16 %v236
  %v864 = vunpack.c.l.b16 %v237
  %v865 = vunpack.c.h.b16 %v237
  %v866 = vunpack.c.l.b16 %v238
  %v867 = vunpack.c.h.b16 %v238
  %v868 = vunpack.c.l.b16 %v239
  %v869 = vunpack.c.h.b16 %v239
  %v870 = vunpack.c.l.b16 %v240
  %v871 = vunpack.c.h.b16 %v240
  %v872 = vunpack.c.l.b16 %v241
  %v873 = vunpack.c.h.b16 %v241
  %v874 = vunpack.c.l.b16 %v242
  %v875 = vunpack.c.h.b16 %v242
  %v876 = vunpack.c.l.b16 %v243
  %v877 = vunpack.c.h.b16 %v243
  %v878 = vunpack.c.l.b16 %v244
  %v879 = vunpack.c.h.b16 %v244
  %v880 = vunpack.c.l.b16 %v245
  %v881 = vunpack.c.h.b16 %v245
  %v882 = vunpack.c.l.b16 %v246
  %v883 = vunpack.c.h.b16 %v246
  %v884 = vunpack.c.l.b16 %v247
  %v885 = vunpack.c.h.b16 %v247
  %v886 = vunpack.c.l.b16 %v248
  %v887 = vunpack.c.h.b16 %v248
  %v888 = vunpack.c.l.b16 %v249
  %v889 = vunpack.c.h.b16 %v249
  %v890 = vunpack.c.l.b16 %v250
  %v891 = vunpack.c.h.b16 %v250
  %v892 = vunpack.c.l.b16 %v251
  %v893 = vunpack.c.h.b16 %v251
  %v894 = vunpack.c.l.b16 %v252
  %v895 = vunpack.c.h.b16 %v252
  %v896 = vunpack.c.l.b16 %v253
  %v897 = vunpack.c.h.b16 %v253
  %v898 = vunpack.c.l.b16 %v254
  %v899 = vunpack.c.h.b16 %v254
  %v900 = vunpack.c.l.b16 %v255
  %v901 = vunpack.c.h.b16 %v255
  %v902 = vunpack.c.l.b16 %v256
  %v903 = vunpack.c.h.b16 %v256
  %v904 = vunpack.c.l.b16 %v257
  %v905 = vunpack.c.h.b16 %v257
  %v906 = vunpack.c.l.b16 %v258
  %v907 = vunpack.c.h.b16 %v258
  %v908 = vunpack.c.l.b16 %v259
  %v909 = vunpack.c.h.b16 %v259
  %v910 = vunpack.c.l.b16 %v260
  %v911 = vunpack.c.h.b16 %v260
  %v912 = vunpack.c.l.b16 %v261
  %v913 = vunpack.c.h.b16 %v261
  %v914 = vunpack.c.l.b16 %v262
  %v915 = vunpack.c.h.b16 %v262
  %v916 = vunpack.c.l.b16 %v263
  %v917 = vunpack.c.h.b16 %v263
  %v918 = vunpack.c.l.b16 %v264
  %v919 = vunpack.c.h.b16 %v264
  %v920 = vunpack.c.l.b16 %v265
  %v921 = vunpack.c.h.b16 %v265
  %v922 = vunpack.c.l.b16 %v266
  %v923 = vunpack.c.h.b16 %v266
  %v924 = vunpack.c.l.b16 %v267
  %v925 = vunpack.c.h.b16 %v267
  %v926 = vunpack.c.l.b16 %v268
  %v927 = vunpack.c.h.b16 %v268
  %v928 = vunpack.c.l.b16 %v269
  %v929 = vunpack.c.h.b16 %v269
  %v930 = vunpack.c.l.b16 %v270
  %v931 = vunpack.c.h.b16 %v270
  %v932 = vunpack.c.l.b16 %v271
  %v933 = vunpack.c.h.b16 %v271
  %v934 = vunpack.c.l.b16 %v272
  %v935 = vunpack.c.h.b16 %v272
  %v936 = vunpack.c.l.b16 %v273
  %v937 = vunpack.c.h.b16 %v273
  %v938 = vunpack.c.l.b16 %v274
  %v939 = vunpack.c.h.b16 %v274
  %v940 = vunpack.c.l.b16 %v275
  %v941 = vunpack.c.h.b16 %v275
  %v942 = vunpack.c.l.b16 %v276
  %v943 = vunpack.c.h.b16 %v276
  %v944 = vunpack.c.l.b16 %v277
  %v945 = vunpack.c.h.b16 %v277
  %v946 = vunpack.c.l.b16 %v278
  %v947 = vunpack.c.h.b16 %v278
  %v948 = vunpack.c.l.b16 %v279
  %v949 = vunpack.c.h.b16 %v279
  %v950 = vunpack.c.l.b16 %v280
  %v951 = vunpack.c.h.b16 %v280
  %v952 = vunpack.c.l.b16 %v281
  %v953 = vunpack.c.h.b16 %v281
  %v954 = vunpack.c.l.b16 %v282
  %v955 = vunpack.c.h.b16 %v282
  %v956 = vunpack.c.l.b16 %v283
  %v957 = vunpack.c.h.b16 %v283
  %v958 = vunpack.c.l.b16 %v284
  %v959 = vunpack.c.h.b16 %v284
  %v960 = vunpack.c.l.b16 %v285
  %v961 = vunpack.c.h.b16 %v285
  %v962 = vunpack.c.l.b16 %v286
  %v963 = vunpack.c.h.b16 %v286
  %v964 = vunpack.c.l.b16 %v287
  %v965 = vunpack.c.h.b16 %v287
  %v966 = vunpack.c.l.b16 %v288
  %v967 = vunpack.c.h.b16 %v288
  %v968 = vunpack.c.l.b16 %v289
  %v969 = vunpack.c.h.b16 %v289
  %v970 = vunpack.c.l.b16 %v290
  %v971 = vunpack.c.h.b16 %v290
  %v972 = vunpack.c.l.b16 %v291
  %v973 = vunpack.c.h.b16 %v291
  %v974 = vunpack.c.l.b16 %v292
  %v975 = vunpack.c.h.b16 %v292
  %v976 = vunpack.c.l.b16 %v293
  %v977 = vunpack.c.h.b16 %v293
  %v978 = vunpack.c.l.b16 %v294
  %v979 = vunpack.c.h.b16 %v294
  %v980 = vunpack.c.l.b16 %v295
  %v981 = vunpack.c.h.b16 %v295
  %v982 = vunpack.c.l.b16 %v296
  %v983 = vunpack.c.h.b16 %v296
  %v984 = vunpack.c.l.b16 %v297
  %v985 = vunpack.c.h.b16 %v297
  %v986 = vunpack.c.l.b16 %v298
  %v987 = vunpack.c.h.b16 %v298
  %v988 = vunpack.c.l.b16 %v299
  %v989 = vunpack.c.h.b16 %v299
  %v990 = vunpack.c.l.b16 %v300
  %v991 = vunpack.c.h.b16 %v300
  %v992 = vunpack.c.l.b16 %v301
  %v993 = vunpack.c.h.b16 %v301
  %v994 = vunpack.c.l.b16 %v302
  %v995 = vunpack.c.h.b16 %v302
  %v996 = vunpack.c.l.b16 %v303
  %v997 = vunpack.c.h.b16 %v303
  %v998 = vunpack.c.l.b16 %v304
  %v999 = vunpack.c.h.b16 %v304
  %v1000 = vunpack.c.l.b16 %v305
  %v1001 = vunpack.c.h.b16 %v305
  %v1002 = vunpack.c.l.b16 %v306
  %v1003 = vunpack.c.h.b16 %v306
  %v1004 = vunpack.c.l.b16 %v307
  %v1005 = vunpack.c.h.b16 %v307
  %v1006 = vunpack.c.l.b16 %v308
  %v1007 = vunpack.c.h.b16 %v308
  %v1008 = vunpack.c.l.b16 %v309
  %v1009 = vunpack.c.h.b16 %v309
  %v1010 = vunpack.c.l.b16 %v310
  %v1011 = vunpack.c.h.b16 %v310
  %v1012 = vunpack.c.l.b16 %v311
  %v1013 = vunpack.c.h.b16 %v311
  %v1014 = vunpack.c.l.b16 %v312
  %v1015 = vunpack.c.h.b16 %v312
  %v1016 = vunpack.c.l.b16 %v313
  %v1017 = vunpack.c.h.b16 %v313
  %v1018 = vunpack.c.l.b16 %v314
  %v1019 = vunpack.c.h.b16 %v314
  %v1020 = vunpack.c.l.b16 %v315
  %v1021 = vunpack.c.h.b16 %v315
  %v1022 = vunpack.c.l.b16 %v316
  %v1023 = vunpack.c.h.b16 %v316
  %v1024 = vunpack.c.l.b16 %v317
  %v1025 = vunpack.c.h.b16 %v317
  %v1026 = vunpack.c.l.b16 %v318
  %v1027 = vunpack.c.h.b16 %v318
  %v1028 = vunpack.c.l.b16 %v319
  %v1029 = vunpack.c.h.b16 %v319
  %v1030 = vunpack.c.l.b16 %v320
  %v1031 = vunpack.c.h.b16 %v320
  %v1032 = vunpack.c.l.b16 %v321
  %v1033 = vunpack.c.h.b16 %v321
  %v1034 = vunpack.c.l.b16 %v322
  %v1035 = vunpack.c.h.b16 %v322
  %v1036 = vunpack.c.l.b16 %v323
  %v1037 = vunpack.c.h.b16 %v323
  %v1038 = vunpack.c.l.b16 %v324
  %v1039 = vunpack.c.h.b16 %v324
  %v1040 = vunpack.c.l.b16 %v325
  %v1041 = vunpack.c.h.b16 %v325
  %v1042 = vunpack.c.l.b16 %v326
  %v1043 = vunpack.c.h.b16 %v326
  %v1044 = vunpack.c.l.b16 %v327
  %v1045 = vunpack.c.h.b16 %v327
  %v1046 = vunpack.c.l.b16 %v328
  %v1047 = vunpack.c.h.b16 %v328
  %v1048 = vunpack.c.l.b16 %v329
  %v1049 = vunpack.c.h.b16 %v329
  %v1050 = vunpack.c.l.b16 %v330
  %v1051 = vunpack.c.h.b16 %v330
  %v1052 = vunpack.c.l.b16 %v331
  %v1053 = vunpack.c.h.b16 %v331
  %v1054 = vunpack.c.l.b16 %v332
  %v1055 = vunpack.c.h.b16 %v332
  %v1056 = vunpack.c.l.b16 %v333
  %v1057 = vunpack.c.h.b16 %v333
  %v1058 = vunpack.c.l.b16 %v334
  %v1059 = vunpack.c.h.b16 %v334
  %v1060 = vunpack.c.l.b16 %v335
  %v1061 = vunpack.c.h.b16 %v335
  %v1062 = vunpack.c.l.b16 %v336
  %v1063 = vunpack.c.h.b16 %v336
  %v1064 = vunpack.c.l.b16 %v337
  %v1065 = vunpack.c.h.b16 %v337
  %v1066 = vunpack.c.l.b16 %v338
  %v1067 = vunpack.c.h.b16 %v338
  %v1068 = vunpack.c.l.b16 %v339
  %v1069 = vunpack.c.h.b16 %v339
  %v1070 = vunpack.c.l.b16 %v340
  %v1071 = vunpack.c.h.b16 %v340
  %v1072 = vunpack.c.l.b16 %v341
  %v1073 = vunpack.c.h.b16 %v341
  %v1074 = vunpack.c.l.b16 %v342
  %v1075 = vunpack.c.h.b16 %v342
  %v1076 = vunpack.c.l.b16 %v343
  %v1077 = vunpack.c.h.b16 %v343
  %v1078 = vunpack.c.l.b16 %v344
  %v1079 = vunpack.c.h.b16 %v344
  %v1080 = vunpack.c.l.b16 %v345
  %v1081 = vunpack.c.h.b16 %v345
  %v1082 = vunpack.c.l.b16 %v346
  %v1083 = vunpack.c.h.b16 %v346
  %v1084 = vunpack.c.l.b16 %v347
  %v1085 = vunpack.c.h.b16 %v347
  %v1086 = vunpack.c.l.b16 %v348
  %v1087 = vunpack.c.h.b16 %v348
  %v1088 = vunpack.c.l.b16 %v349
  %v1089 = vunpack.c.h.b16 %v349
  %v1090 = vunpack.c.l.b16 %v350
  %v1091 = vunpack.c.h.b16 %v350
  %v1092 = vunpack.c.l.b16 %v351
  %v1093 = vunpack.c.h.b16 %v351
  %v1094 = vunpack.c.l.b16 %v352
  %v1095 = vunpack.c.h.b16 %v352
  %v1096 = vunpack.c.l.b16 %v353
  %v1097 = vunpack.c.h.b16 %v353
  %v1098 = vunpack.c.l.b16 %v354
  %v1099 = vunpack.c.h.b16 %v354
  %v1100 = vunpack.c.l.b16 %v355
  %v1101 = vunpack.c.h.b16 %v355
  %v1102 = vunpack.c.l.b16 %v356
  %v1103 = vunpack.c.h.b16 %v356
  %v1104 = vunpack.c.l.b16 %v357
  %v1105 = vunpack.c.h.b16 %v357
  %v1106 = vunpack.c.l.b16 %v358
  %v1107 = vunpack.c.h.b16 %v358
  %v1108 = vunpack.c.l.b16 %v359
  %v1109 = vunpack.c.h.b16 %v359
  %v1110 = vunpack.c.l.b16 %v360
  %v1111 = vunpack.c.h.b16 %v360
  %v1112 = vunpack.c.l.b16 %v361
  %v1113 = vunpack.c.h.b16 %v361
  %v1114 = vunpack.c.l.b16 %v362
  %v1115 = vunpack.c.h.b16 %v362
  %v1116 = vunpack.c.l.b16 %v363
  %v1117 = vunpack.c.h.b16 %v363
  %v1118 = vunpack.c.l.b16 %v364
  %v1119 = vunpack.c.h.b16 %v364
  %v1120 = vunpack.c.l.b16 %v365
  %v1121 = vunpack.c.h.b16 %v365
  %v1122 = vunpack.c.l.b16 %v366
  %v1123 = vunpack.c.h.b16 %v366
  %v1124 = vunpack.c.l.b16 %v367
  %v1125 = vunpack.c.h.b16 %v367
  %v1126 = vunpack.c.l.b16 %v368
  %v1127 = vunpack.c.h.b16 %v368
  %v1128 = vunpack.c.l.b16 %v369
  %v1129 = vunpack.c.h.b16 %v369
  %v1130 = vunpack.c.l.b16 %v370
  %v1131 = vunpack.c.h.b16 %v370
  %v1132 = vunpack.c.l.b16 %v371
  %v1133 = vunpack.c.h.b16 %v371
  %v1134 = vunpack.c.l.b16 %v372
  %v1135 = vunpack.c.h.b16 %v372
  %v1136 = vunpack.c.l.b16 %v373
  %v1137 = vunpack.c.h.b16 %v373
  %v1138 = vunpack.c.l.b16 %v374
  %v1139 = vunpack.c.h.b16 %v374
  %v1140 = vunpack.c.l.b16 %v375
  %v1141 = vunpack.c.h.b16 %v375
  %v1142 = vunpack.c.l.b16 %v376
  %v1143 = vunpack.c.h.b16 %v376
  %v1144 = vunpack.c.l.b16 %v377
  %v1145 = vunpack.c.h.b16 %v377
  %v1146 = vunpack.c.l.b16 %v378
  %v1147 = vunpack.c.h.b16 %v378
  %v1148 = vunpack.c.l.b16 %v379
  %v1149 = vunpack.c.h.b16 %v379
  %v1150 = vunpack.c.l.b16 %v380
  %v1151 = vunpack.c.h.b16 %v380
  %v1152 = vunpack.c.l.b16 %v381
  %v1153 = vunpack.c.h.b16 %v381
  %v1154 = vunpack.c.l.b16 %v382
  %v1155 = vunpack.c.h.b16 %v382
  %v1156 = vunpack.c.l.b16 %v383
  %v1157 = vunpack.c.h.b16 %v383
  %v1158 = vunpack.c.l.b16 %v384
  %v1159 = vunpack.c.h.b16 %v384
  %v1160 = vunpack.c.l.b16 %v385
  %v1161 = vunpack.c.h.b16 %v385
  %v1162 = vunpack.c.l.b16 %v386
  %v1163 = vunpack.c.h.b16 %v386
  %v1164 = vunpack.c.l.b16 %v387
  %v1165 = vunpack.c.h.b16 %v387
  %v1166 = vunpack.c.l.b16 %v388
  %v1167 = vunpack.c.h.b16 %v388
  %v1168 = vunpack.c.l.b16 %v389
  %v1169 = vunpack.c.h.b16 %v389
  %v1170 = vunpack.c.l.b16 %v390
  %v1171 = vunpack.c.h.b16 %v390
  %v1172 = vunpack.c.l.b16 %v391
  %v1173 = vunpack.c.h.b16 %v391
  %v1174 = vunpack.c.l.b16 %v392
  %v1175 = vunpack.c.h.b16 %v392
  %v1176 = vunpack.c.l.b16 %v393
  %v1177 = vunpack.c.h.b16 %v393
  %v1178 = vunpack.c.l.b16 %v394
  %v1179 = vunpack.c.h.b16 %v394
  %v1180 = vunpack.c.l.b16 %v395
  %v1181 = vunpack.c.h.b16 %v395
  %v1182 = vunpack.c.l.b16 %v396
  %v1183 = vunpack.c.h.b16 %v396
  %v1184 = vunpack.c.l.b16 %v397
  %v1185 = vunpack.c.h.b16 %v397
  %v1186 = vunpack.c.l.b16 %v398
  %v1187 = vunpack.c.h.b16 %v398
  %v1188 = vunpack.c.l.b16 %v399
  %v1189 = vunpack.c.h.b16 %v399
  %v1190 = vunpack.c.l.b16 %v400
  %v1191 = vunpack.c.h.b16 %v400
  %v1192 = vunpack.c.l.b16 %v401
  %v1193 = vunpack.c.h.b16 %v401
  %v1194 = vunpack.c.l.b16 %v402
  %v1195 = vunpack.c.h.b16 %v402
  %v1196 = vunpack.c.l.b16 %v403
  %v1197 = vunpack.c.h.b16 %v403
  %v1198 = vunpack.c.l.b16 %v404
  %v1199 = vunpack.c.h.b16 %v404
  %v1200 = vunpack.c.l.b16 %v405
  %v1201 = vunpack.c.h.b16 %v405
  %v1202 = vunpack.c.l.b16 %v406
  %v1203 = vunpack.c.h.b16 %v406
  %v1204 = vunpack.c.l.b16 %v407
  %v1205 = vunpack.c.h.b16 %v407
  %v1206 = vunpack.c.l.b16 %v408
  %v1207 = vunpack.c.h.b16 %v408
  %v1208 = vunpack.c.l.b16 %v409
  %v1209 = vunpack.c.h.b16 %v409
  %v1210 = vpack.c.b16 %v702, %v698
  %v1211 = vpack.c.b16 %v703, %v699
  %v1212 = vpack.c.b16 %v704, %v700
  %v1213 = vpack.c.b16 %v705, %v701
  %v1214 = vpack.c.b16 %v710, %v706
  %v1215 = vpack.c.b16 %v711, %v707
  %v1216 = vpack.c.b16 %v712, %v708
  %v1217 = vpack.c.b16 %v713, %v709
  %v1218 = vpack.c.b16 %v718, %v714
  %v1219 = vpack.c.b16 %v719, %v715
  %v1220 = vpack.c.b16 %v720, %v716
  %v1221 = vpack.c.b16 %v721, %v717
  %v1222 = vpack.c.b16 %v726, %v722
  %v1223 = vpack.c.b16 %v727, %v723
  %v1224 = vpack.c.b16 %v728, %v724
  %v1225 = vpack.c.b16 %v729, %v725
  %v1226 = vpack.c.b16 %v734, %v730
  %v1227 = vpack.c.b16 %v735, %v731
  %v1228 = vpack.c.b16 %v736, %v732
  %v1229 = vpack.c.b16 %v737, %v733
  %v1230 = vpack.c.b16 %v742, %v738
  %v1231 = vpack.c.b16 %v743, %v739
  %v1232 = vpack.c.b16 %v744, %v740
  %v1233 = vpack.c.b16 %v745, %v741
  %v1234 = vpack.c.b16 %v750, %v746
  %v1235 = vpack.c.b16 %v751, %v747
  %v1236 = vpack.c.b16 %v752, %v748
  %v1237 = vpack.c.b16 %v753, %v749
  %v1238 = vpack.c.b16 %v758, %v754
  %v1239 = vpack.c.b16 %v759, %v755
  %v1240 = vpack.c.b16 %v760, %v756
  %v1241 = vpack.c.b16 %v761, %v757
  %v1242 = vpack.c.b16 %v766, %v762
  %v1243 = vpack.c.b16 %v767, %v763
  %v1244 = vpack.c.b16 %v768, %v764
  %v1245 = vpack.c.b16 %v769, %v765
  %v1246 = vpack.c.b16 %v774, %v770
  %v1247 = vpack.c.b16 %v775, %v771
  %v1248 = vpack.c.b16 %v776, %v772
  %v1249 = vpack.c.b16 %v777, %v773
  %v1250 = vpack.c.b16 %v782, %v778
  %v1251 = vpack.c.b16 %v783, %v779
  %v1252 = vpack.c.b16 %v784, %v780
  %v1253 = vpack.c.b16 %v785, %v781
  %v1254 = vpack.c.b16 %v790, %v786
  %v1255 = vpack.c.b16 %v791, %v787
  %v1256 = vpack.c.b16 %v792, %v788
  %v1257 = vpack.c.b16 %v793, %v789
  %v1258 = vpack.c.b16 %v798, %v794
  %v1259 = vpack.c.b16 %v799, %v795
  %v1260 = vpack.c.b16 %v800, %v796
  %v1261 = vpack.c.b16 %v801, %v797
  %v1262 = vpack.c.b16 %v806, %v802
  %v1263 = vpack.c.b16 %v807, %v803
  %v1264 = vpack.c.b16 %v808, %v804
  %v1265 = vpack.c.b16 %v809, %v805
  %v1266 = vpack.c.b16 %v814, %v810
  %v1267 = vpack.c.b16 %v815, %v811
  %v1268 = vpack.c.b16 %v816, %v812
  %v1269 = vpack.c.b16 %v817, %v813
  %v1270 = vpack.c.b16 %v822, %v818
  %v1271 = vpack.c.b16 %v823, %v819
  %v1272 = vpack.c.b16 %v824, %v820
  %v1273 = vpack.c.b16 %v825, %v821
  %v1274 = vpack.c.b16 %v830, %v826
  %v1275 = vpack.c.b16 %v831, %v827
  %v1276 = vpack.c.b16 %v832, %v828
  %v1277 = vpack.c.b16 %v833, %v829
  %v1278 = vpack.c.b16 %v838, %v834
  %v1279 = vpack.c.b16 %v839, %v835
  %v1280 = vpack.c.b16 %v840, %v836
  %v1281 = vpack.c.b16 %v841, %v837
  %v1282 = vpack.c.b16 %v846, %v842
  %v1283 = vpack.c.b16 %v847, %v843
  %v1284 = vpack.c.b16 %v848, %v844
  %v1285 = vpack.c.b16 %v849, %v845
  %v1286 = vpack.c.b16 %v854, %v850
  %v1287 = vpack.c.b16 %v855, %v851
  %v1288 = vpack.c.b16 %v856, %v852
  %v1289 = vpack.c.b16 %v857, %v853
  %v1290 = vpack.c.b16 %v862, %v858
  %v1291 = vpack.c.b16 %v863, %v859
  %v1292 = vpack.c.b16 %v864, %v860
  %v1293 = vpack.c.b16 %v865, %v861
  %v1294 = vpack.c.b16 %v870, %v866
  %v1295 = vpack.c.b16 %v871, %v867
  %v1296 = vpack.c.b16 %v872, %v868
  %v1297 = vpack.c.b16 %v873, %v869
  %v1298 = vpack.c.b16 %v878, %v874
  %v1299 = vpack.c.b16 %v879, %v875
  %v1300 = vpack.c.b16 %v880, %v876
  %v1301 = vpack.c.b16 %v881, %v877
  %v1302 = vpack.c.b16 %v886, %v882
  %v1303 = vpack.c.b16 %v887, %v883
  %v1304 = vpack.c.b16 %v888, %v884
  %v1305 = vpack.c.b16 %v889, %v885
  %v1306 = vpack.c.b16 %v894, %v890
  %v1307 = vpack.c.b16 %v895, %v891
  %v1308 = vpack.c.b16 %v896, %v892
  %v1309 = vpack.c.b16 %v897, %v893
  %v1310 = vpack.c.b16 %v902, %v898
  %v1311 = vpack.c.b16 %v903, %v899
  %v1312 = vpack.c.b16 %v904, %v900
  %v1313 = vpack.c.b16 %v905, %v901
  %v1314 = vpack.c.b16 %v910, %v906
  %v1315 = vpack.c.b16 %v911, %v907
  %v1316 = vpack.c.b16 %v912, %v908
  %v1317 = vpack.c.b16 %v913, %v909
  %v1318 = vpack.c.b16 %v918, %v914
  %v1319 = vpack.c.b16 %v919, %v915
  %v1320 = vpack.c.b16 %v920, %v916
  %v1321 = vpack.c.b16 %v921, %v917
  %v1322 = vpack.c.b16 %v926, %v922
  %v1323 = vpack.c.b16 %v927, %v923
  %v1324 = vpack.c.b16 %v928, %v924
  %v1325 = vpack.c.b16 %v929, %v925
  %v1326 = vpack.c.b16 %v934, %v930
  %v1327 = vpack.c.b16 %v935, %v931
  %v1328 = vpack.c.b16 %v936, %v932
  %v1329 = vpack.c.b16 %v937, %v933
  %v1330 = vpack.c.b16 %v942, %v938
  %v1331 = vpack.c.b16 %v943, %v939
  %v1332 = vpack.c.b16 %v944, %v940
  %v1333 = vpack.c.b16 %v945, %v941
  %v1334 = vpack.c.b16 %v950, %v946
  %v1335 = vpack.c.b16 %v951, %v947
  %v1336 = vpack.c.b16 %v952, %v948
  %v1337 = vpack.c.b16 %v953, %v949
  %v1338 = vpack.c.b16 %v958, %v954
  %v1339 = vpack.c.b16 %v959, %v955
  %v1340 = vpack.c.b16 %v960, %v956
  %v1341 = vpack.c.b16 %v961, %v957
  %v1342 = vpack.c.b16 %v966, %v962
  %v1343 = vpack.c.b16 %v967, %v963
  %v1344 = vpack.c.b16 %v968, %v964
  %v1345 = vpack.c.b16 %v969, %v965
  %v1346 = vpack.c.b16 %v974, %v970
  %v1347 = vpack.c.b16 %v975, %v971
  %v1348 = vpack.c.b16 %v976, %v972
  %v1349 = vpack.c.b16 %v977, %v973
  %v1350 = vpack.c.b16 %v982, %v978
  %v1351 = vpack.c.b16 %v983, %v979
  %v1352 = vpack.c.b16 %v984, %v980
  %v1353 = vpack.c.b16 %v985, %v981
  %v1354 = vpack.c.b16 %v990, %v986
  %v1355 = vpack.c.b16 %v991, %v987
  %v1356 = vpack.c.b16 %v992, %v988
  %v1357 = vpack.c.b16 %v993, %v989
  %v1358 = vpack.c.b16 %v998, %v994
  %v1359 = vpack.c.b16 %v999, %v995
  %v1360 = vpack.c.b16 %v1000, %v996
  %v1361 = vpack.c.b16 %v1001, %v997
  %v1362 = vpack.c.b16 %v1006, %v1002
  %v1363 = vpack.c.b16 %v1007, %v1003
  %v1364 = vpack.c.b16 %v1008, %v1004
  %v1365 = vpack.c.b16 %v1009, %v1005
  %v1366 = vpack.c.b16 %v1014, %v1010
  %v1367 = vpack.c.b16 %v1015, %v1011
  %v1368 = vpack.c.b16 %v1016, %v1012
  %v1369 = vpack.c.b16 %v1017, %v1013
  %v1370 = vpack.c.b16 %v1022, %v1018
  %v1371 = vpack.c.b16 %v1023, %v1019
  %v1372 = vpack.c.b16 %v1024, %v1020
  %v1373 = vpack.c.b16 %v1025, %v1021
  %v1374 = vpack.c.b16 %v1030, %v1026
  %v1375 = vpack.c.b16 %v1031, %v1027
  %v1376 = vpack.c.b16 %v1032, %v1028
  %v1377 = vpack.c.b16 %v1033, %v1029
  %v1378 = vpack.c.b16 %v1038, %v1034
  %v1379 = vpack.c.b16 %v1039, %v1035
  %v1380 = vpack.c.b16 %v1040, %v1036
  %v1381 = vpack.c.b16 %v1041, %v1037
  %v1382 = vpack.c.b16 %v1046, %v1042
  %v1383 = vpack.c.b16 %v1047, %v1043
  %v1384 = vpack.c.b16 %v1048, %v1044
  %v1385 = vpack.c.b16 %v1049, %v1045
  %v1386 = vpack.c.b16 %v1054, %v1050
  %v1387 = vpack.c.b16 %v1055, %v1051
  %v1388 = vpack.c.b16 %v1056, %v1052
  %v1389 = vpack.c.b16 %v1057, %v1053
  %v1390 = vpack.c.b16 %v1062, %v1058
  %v1391 = vpack.c.b16 %v1063, %v1059
  %v1392 = vpack.c.b16 %v1064, %v1060
  %v1393 = vpack.c.b16 %v1065, %v1061
  %v1394 = vpack.c.b16 %v1070, %v1066
  %v1395 = vpack.c.b16 %v1071, %v1067
  %v1396 = vpack.c.b16 %v1072, %v1068
  %v1397 = vpack.c.b16 %v1073, %v1069
  %v1398 = vpack.c.b16 %v1078, %v1074
  %v1399 = vpack.c.b16 %v1079, %v1075
  %v1400 = vpack.c.b16 %v1080, %v1076
  %v1401 = vpack.c.b16 %v1081, %v1077
  %v1402 = vpack.c.b16 %v1086, %v1082
  %v1403 = vpack.c.b16 %v1087, %v1083
  %v1404 = vpack.c.b16 %v1088, %v1084
  %v1405 = vpack.c.b16 %v1089, %v1085
  %v1406 = vpack.c.b16 %v1094, %v1090
  %v1407 = vpack.c.b16 %v1095, %v1091
  %v1408 = vpack.c.b16 %v1096, %v1092
  %v1409 = vpack.c.b16 %v1097, %v1093
  %v1410 = vpack.c.b16 %v1102, %v1098
  %v1411 = vpack.c.b16 %v1103, %v1099
  %v1412 = vpack.c.b16 %v1104, %v1100
  %v1413 = vpack.c.b16 %v1105, %v1101
  %v1414 = vpack.c.b16 %v1110, %v1106
  %v1415 = vpack.c.b16 %v1111, %v1107
  %v1416 = vpack.c.b16 %v1112, %v1108
  %v1417 = vpack.c.b16 %v1113, %v1109
  %v1418 = vpack.c.b16 %v1118, %v1114
  %v1419 = vpack.c.b16 %v1119, %v1115
  %v1420 = vpack.c.b16 %v1120, %v1116
  %v1421 = vpack.c.b16 %v1121, %v1117
  %v1422 = vpack.c.b16 %v1126, %v1122
  %v1423 = vpack.c.b16 %v1127, %v1123
  %v1424 = vpack.c.b16 %v1128, %v1124
  %v1425 = vpack.c.b16 %v1129, %v1125
  %v1426 = vpack.c.b16 %v1134, %v1130
  %v1427 = vpack.c.b16 %v1135, %v1131
  %v1428 = vpack.c.b16 %v1136, %v1132
  %v1429 = vpack.c.b16 %v1137, %v1133
  %v1430 = vpack.c.b16 %v1142, %v1138
  %v1431 = vpack.c.b16 %v1143, %v1139
  %v1432 = vpack.c.b16 %v1144, %v1140
  %v1433 = vpack.c.b16 %v1145, %v1141
  %v1434 = vpack.c.b16 %v1150, %v1146
  %v1435 = vpack.c.b16 %v1151, %v1147
  %v1436 = vpack.c.b16 %v1152, %v1148
  %v1437 = vpack.c.b16 %v1153, %v1149
  %v1438 = vpack.c.b16 %v1158, %v1154
  %v1439 = vpack.c.b16 %v1159, %v1155
  %v1440 = vpack.c.b16 %v1160, %v1156
  %v1441 = vpack.c.b16 %v1161, %v1157
  %v1442 = vpack.c.b16 %v1166, %v1162
  %v1443 = vpack.c.b16 %v1167, %v1163
  %v1444 = vpack.c.b16 %v1168, %v1164
  %v1445 = vpack.c.b16 %v1169, %v1165
  %v1446 = vpack.c.b16 %v1174, %v1170
  %v1447 = vpack.c.b16 %v1175, %v1171
  %v1448 = vpack.c.b16 %v1176, %v1172
  %v1449 = vpack.c.b16 %v1177, %v1173
  %v1450 = vpack.c.b16 %v1182, %v1178
  %v1451 = vpack.c.b16 %v1183, %v1179
  %v1452 = vpack.c.b16 %v1184, %v1180
  %v1453 = vpack.c.b16 %v1185, %v1181
  %v1454 = vpack.c.b16 %v1190, %v1186
  %v1455 = vpack.c.b16 %v1191, %v1187
  %v1456 = vpack.c.b16 %v1192, %v1188
  %v1457 = vpack.c.b16 %v1193, %v1189
  %v1458 = vpack.c.b16 %v1198, %v1194
  %v1459 = vpack.c.b16 %v1199, %v1195
  %v1460 = vpack.c.b16 %v1200, %v1196
  %v1461 = vpack.c.b16 %v1201, %v1197
  %v1462 = vpack.c.b16 %v1206, %v1202
  %v1463 = vpack.c.b16 %v1207, %v1203
  %v1464 = vpack.c.b16 %v1208, %v1204
  %v1465 = vpack.c.b16 %v1209, %v1205
  %1722 = vmatprep.subr.bf16.mxu0 %v1211
  %1723 = vmatpush1.bf16.msra.mxu0 %v1210
  %1724 = vmatprep.subr.bf16.mxu0 %v1215
  %1725 = vmatpush1.bf16.msra.mxu0 %v1214
  %1726 = vmatprep.subr.bf16.mxu0 %v1219
  %1727 = vmatpush1.bf16.msra.mxu0 %v1218
  %1728 = vmatprep.subr.bf16.mxu0 %v1223
  %1729 = vmatpush1.bf16.msra.mxu0 %v1222
  %1730 = vmatprep.subr.bf16.mxu0 %v1227
  %1731 = vmatpush1.bf16.msra.mxu0 %v1226
  %1732 = vmatprep.subr.bf16.mxu0 %v1231
  %1733 = vmatpush1.bf16.msra.mxu0 %v1230
  %1734 = vmatprep.subr.bf16.mxu0 %v1235
  %1735 = vmatpush1.bf16.msra.mxu0 %v1234
  %1736 = vmatprep.subr.bf16.mxu0 %v1239
  %1737 = vmatpush1.bf16.msra.mxu0 %v1238
  %1738 = vmatprep.subr.bf16.mxu0 %v1243
  %1739 = vmatpush1.bf16.msra.mxu0 %v1242
  %1740 = vmatprep.subr.bf16.mxu0 %v1247
  %1741 = vmatpush1.bf16.msra.mxu0 %v1246
  %1742 = vmatprep.subr.bf16.mxu0 %v1251
  %1743 = vmatpush1.bf16.msra.mxu0 %v1250
  %1744 = vmatprep.subr.bf16.mxu0 %v1255
  %1745 = vmatpush1.bf16.msra.mxu0 %v1254
  %1746 = vmatprep.subr.bf16.mxu0 %v1259
  %1747 = vmatpush1.bf16.msra.mxu0 %v1258
  %1748 = vmatprep.subr.bf16.mxu0 %v1263
  %1749 = vmatpush1.bf16.msra.mxu0 %v1262
  %1750 = vmatprep.subr.bf16.mxu0 %v1267
  %1751 = vmatpush1.bf16.msra.mxu0 %v1266
  %1752 = vmatprep.subr.bf16.mxu0 %v1271
  %1753 = vmatpush1.bf16.msra.mxu0 %v1270
  %1754 = vmatprep.mubr.bf16.mxu0 %v147
  %1755 = vmatmul.mubr.bf16.gmra.mrb[0].mxu0 %v146
  %v1756 = vpop.f32.mrb[0].mxu0
  %v1757 = vadd.f32 %v438, %v1756
  %v1758 = vpop.f32.mrb[0].mxu0
  %v1759 = vadd.f32 %v439, %v1758
  %v1760 = vpop.f32.mrb[0].mxu0
  %v1761 = vpop.f32.mrb[0].mxu0
  %1762 = vdwg.mxu0
  %1763 = vmatprep.subr.bf16.mxu0 %v1275
  %1764 = vmatpush1.bf16.msra.mxu0 %v1274
  %1765 = vmatprep.subr.bf16.mxu0 %v1279
  %1766 = vmatpush1.bf16.msra.mxu0 %v1278
  %1767 = vmatprep.subr.bf16.mxu0 %v1283
  %1768 = vmatpush1.bf16.msra.mxu0 %v1282
  %1769 = vmatprep.subr.bf16.mxu0 %v1287
  %1770 = vmatpush1.bf16.msra.mxu0 %v1286
  %1771 = vmatprep.subr.bf16.mxu0 %v1291
  %1772 = vmatpush1.bf16.msra.mxu0 %v1290
  %1773 = vmatprep.subr.bf16.mxu0 %v1295
  %1774 = vmatpush1.bf16.msra.mxu0 %v1294
  %1775 = vmatprep.subr.bf16.mxu0 %v1299
  %1776 = vmatpush1.bf16.msra.mxu0 %v1298
  %1777 = vmatprep.subr.bf16.mxu0 %v1303
  %1778 = vmatpush1.bf16.msra.mxu0 %v1302
  %1779 = vmatprep.subr.bf16.mxu0 %v1307
  %1780 = vmatpush1.bf16.msra.mxu0 %v1306
  %1781 = vmatprep.subr.bf16.mxu0 %v1311
  %1782 = vmatpush1.bf16.msra.mxu0 %v1310
  %1783 = vmatprep.subr.bf16.mxu0 %v1315
  %1784 = vmatpush1.bf16.msra.mxu0 %v1314
  %1785 = vmatprep.subr.bf16.mxu0 %v1319
  %1786 = vmatpush1.bf16.msra.mxu0 %v1318
  %1787 = vmatprep.subr.bf16.mxu0 %v1323
  %1788 = vmatpush1.bf16.msra.mxu0 %v1322
  %1789 = vmatprep.subr.bf16.mxu0 %v1327
  %1790 = vmatpush1.bf16.msra.mxu0 %v1326
  %1791 = vmatprep.subr.bf16.mxu0 %v1331
  %1792 = vmatpush1.bf16.msra.mxu0 %v1330
  %1793 = vmatprep.subr.bf16.mxu0 %v1335
  %1794 = vmatpush1.bf16.msra.mxu0 %v1334
  %1795 = vmatprep.mubr.bf16.mxu0 %v149
  %1796 = vmatmul.mubr.bf16.gmra.mrb[0].mxu0 %v148
  %v1797 = vpop.f32.mrb[0].mxu0
  %v1798 = vadd.f32 %v1757, %v1797
  %v1799 = vpop.f32.mrb[0].mxu0
  %v1800 = vadd.f32 %v1759, %v1799
  %v1801 = vpop.f32.mrb[0].mxu0
  %v1802 = vpop.f32.mrb[0].mxu0
  %1803 = vdwg.mxu0
  %1804 = vmatprep.subr.bf16.mxu0 %v1339
  %1805 = vmatpush1.bf16.msra.mxu0 %v1338
  %1806 = vmatprep.subr.bf16.mxu0 %v1343
  %1807 = vmatpush1.bf16.msra.mxu0 %v1342
  %1808 = vmatprep.subr.bf16.mxu0 %v1347
  %1809 = vmatpush1.bf16.msra.mxu0 %v1346
  %1810 = vmatprep.subr.bf16.mxu0 %v1351
  %1811 = vmatpush1.bf16.msra.mxu0 %v1350
  %1812 = vmatprep.subr.bf16.mxu0 %v1355
  %1813 = vmatpush1.bf16.msra.mxu0 %v1354
  %1814 = vmatprep.subr.bf16.mxu0 %v1359
  %1815 = vmatpush1.bf16.msra.mxu0 %v1358
  %1816 = vmatprep.subr.bf16.mxu0 %v1363
  %1817 = vmatpush1.bf16.msra.mxu0 %v1362
  %1818 = vmatprep.subr.bf16.mxu0 %v1367
  %1819 = vmatpush1.bf16.msra.mxu0 %v1366
  %1820 = vmatprep.subr.bf16.mxu0 %v1371
  %1821 = vmatpush1.bf16.msra.mxu0 %v1370
  %1822 = vmatprep.subr.bf16.mxu0 %v1375
  %1823 = vmatpush1.bf16.msra.mxu0 %v1374
  %1824 = vmatprep.subr.bf16.mxu0 %v1379
  %1825 = vmatpush1.bf16.msra.mxu0 %v1378
  %1826 = vmatprep.subr.bf16.mxu0 %v1383
  %1827 = vmatpush1.bf16.msra.mxu0 %v1382
  %1828 = vmatprep.subr.bf16.mxu0 %v1387
  %1829 = vmatpush1.bf16.msra.mxu0 %v1386
  %1830 = vmatprep.subr.bf16.mxu0 %v1391
  %1831 = vmatpush1.bf16.msra.mxu0 %v1390
  %1832 = vmatprep.subr.bf16.mxu0 %v1395
  %1833 = vmatpush1.bf16.msra.mxu0 %v1394
  %1834 = vmatprep.subr.bf16.mxu0 %v1399
  %1835 = vmatpush1.bf16.msra.mxu0 %v1398
  %1836 = vmatprep.mubr.bf16.mxu0 %v151
  %1837 = vmatmul.mubr.bf16.gmra.mrb[0].mxu0 %v150
  %v1838 = vpop.f32.mrb[0].mxu0
  %v1839 = vadd.f32 %v1798, %v1838
  %v1840 = vpop.f32.mrb[0].mxu0
  %v1841 = vadd.f32 %v1800, %v1840
  %v1842 = vpop.f32.mrb[0].mxu0
  %v1843 = vpop.f32.mrb[0].mxu0
  %1844 = vdwg.mxu0
  %1845 = vmatprep.subr.bf16.mxu0 %v1403
  %1846 = vmatpush1.bf16.msra.mxu0 %v1402
  %1847 = vmatprep.subr.bf16.mxu0 %v1407
  %1848 = vmatpush1.bf16.msra.mxu0 %v1406
  %1849 = vmatprep.subr.bf16.mxu0 %v1411
  %1850 = vmatpush1.bf16.msra.mxu0 %v1410
  %1851 = vmatprep.subr.bf16.mxu0 %v1415
  %1852 = vmatpush1.bf16.msra.mxu0 %v1414
  %1853 = vmatprep.subr.bf16.mxu0 %v1419
  %1854 = vmatpush1.bf16.msra.mxu0 %v1418
  %1855 = vmatprep.subr.bf16.mxu0 %v1423
  %1856 = vmatpush1.bf16.msra.mxu0 %v1422
  %1857 = vmatprep.subr.bf16.mxu0 %v1427
  %1858 = vmatpush1.bf16.msra.mxu0 %v1426
  %1859 = vmatprep.subr.bf16.mxu0 %v1431
  %1860 = vmatpush1.bf16.msra.mxu0 %v1430
  %1861 = vmatprep.subr.bf16.mxu0 %v1435
  %1862 = vmatpush1.bf16.msra.mxu0 %v1434
  %1863 = vmatprep.subr.bf16.mxu0 %v1439
  %1864 = vmatpush1.bf16.msra.mxu0 %v1438
  %1865 = vmatprep.subr.bf16.mxu0 %v1443
  %1866 = vmatpush1.bf16.msra.mxu0 %v1442
  %1867 = vmatprep.subr.bf16.mxu0 %v1447
  %1868 = vmatpush1.bf16.msra.mxu0 %v1446
  %1869 = vmatprep.subr.bf16.mxu0 %v1451
  %1870 = vmatpush1.bf16.msra.mxu0 %v1450
  %1871 = vmatprep.subr.bf16.mxu0 %v1455
  %1872 = vmatpush1.bf16.msra.mxu0 %v1454
  %1873 = vmatprep.subr.bf16.mxu0 %v1459
  %1874 = vmatpush1.bf16.msra.mxu0 %v1458
  %1875 = vmatprep.subr.bf16.mxu0 %v1463
  %1876 = vmatpush1.bf16.msra.mxu0 %v1462
  %1877 = vmatprep.mubr.bf16.mxu0 %v153
  %1878 = vmatmul.mubr.bf16.gmra.mrb[0].mxu0 %v152
  %v1879 = vpop.f32.mrb[0].mxu0
  %v1880 = vadd.f32 %v1839, %v1879
  %v1881 = vpop.f32.mrb[0].mxu0
  %v1882 = vadd.f32 %v1841, %v1881
  %v1883 = vpop.f32.mrb[0].mxu0
  %v1884 = vpop.f32.mrb[0].mxu0
  %1885 = vdwg.mxu0
  %1886 = vmatprep.subr.bf16.mxu0 %v1213
  %1887 = vmatpush1.bf16.msra.mxu0 %v1212
  %1888 = vmatprep.subr.bf16.mxu0 %v1217
  %1889 = vmatpush1.bf16.msra.mxu0 %v1216
  %1890 = vmatprep.subr.bf16.mxu0 %v1221
  %1891 = vmatpush1.bf16.msra.mxu0 %v1220
  %1892 = vmatprep.subr.bf16.mxu0 %v1225
  %1893 = vmatpush1.bf16.msra.mxu0 %v1224
  %1894 = vmatprep.subr.bf16.mxu0 %v1229
  %1895 = vmatpush1.bf16.msra.mxu0 %v1228
  %1896 = vmatprep.subr.bf16.mxu0 %v1233
  %1897 = vmatpush1.bf16.msra.mxu0 %v1232
  %1898 = vmatprep.subr.bf16.mxu0 %v1237
  %1899 = vmatpush1.bf16.msra.mxu0 %v1236
  %1900 = vmatprep.subr.bf16.mxu0 %v1241
  %1901 = vmatpush1.bf16.msra.mxu0 %v1240
  %1902 = vmatprep.subr.bf16.mxu0 %v1245
  %1903 = vmatpush1.bf16.msra.mxu0 %v1244
  %1904 = vmatprep.subr.bf16.mxu0 %v1249
  %1905 = vmatpush1.bf16.msra.mxu0 %v1248
  %1906 = vmatprep.subr.bf16.mxu0 %v1253
  %1907 = vmatpush1.bf16.msra.mxu0 %v1252
  %1908 = vmatprep.subr.bf16.mxu0 %v1257
  %1909 = vmatpush1.bf16.msra.mxu0 %v1256
  %1910 = vmatprep.subr.bf16.mxu0 %v1261
  %1911 = vmatpush1.bf16.msra.mxu0 %v1260
  %1912 = vmatprep.subr.bf16.mxu0 %v1265
  %1913 = vmatpush1.bf16.msra.mxu0 %v1264
  %1914 = vmatprep.subr.bf16.mxu0 %v1269
  %1915 = vmatpush1.bf16.msra.mxu0 %v1268
  %1916 = vmatprep.subr.bf16.mxu0 %v1273
  %1917 = vmatpush1.bf16.msra.mxu0 %v1272
  %1918 = vmatprep.mubr.bf16.mxu0 %v147
  %1919 = vmatmul.mubr.bf16.gmra.mrb[0].mxu0 %v146
  %v1920 = vpop.f32.mrb[0].mxu0
  %v1921 = vadd.f32 %v440, %v1920
  %v1922 = vpop.f32.mrb[0].mxu0
  %v1923 = vadd.f32 %v441, %v1922
  %v1924 = vpop.f32.mrb[0].mxu0
  %v1925 = vpop.f32.mrb[0].mxu0
  %1926 = vdwg.mxu0
  %1927 = vmatprep.subr.bf16.mxu0 %v1277
  %1928 = vmatpush1.bf16.msra.mxu0 %v1276
  %1929 = vmatprep.subr.bf16.mxu0 %v1281
  %1930 = vmatpush1.bf16.msra.mxu0 %v1280
  %1931 = vmatprep.subr.bf16.mxu0 %v1285
  %1932 = vmatpush1.bf16.msra.mxu0 %v1284
  %1933 = vmatprep.subr.bf16.mxu0 %v1289
  %1934 = vmatpush1.bf16.msra.mxu0 %v1288
  %1935 = vmatprep.subr.bf16.mxu0 %v1293
  %1936 = vmatpush1.bf16.msra.mxu0 %v1292
  %1937 = vmatprep.subr.bf16.mxu0 %v1297
  %1938 = vmatpush1.bf16.msra.mxu0 %v1296
  %1939 = vmatprep.subr.bf16.mxu0 %v1301
  %1940 = vmatpush1.bf16.msra.mxu0 %v1300
  %1941 = vmatprep.subr.bf16.mxu0 %v1305
  %1942 = vmatpush1.bf16.msra.mxu0 %v1304
  %1943 = vmatprep.subr.bf16.mxu0 %v1309
  %1944 = vmatpush1.bf16.msra.mxu0 %v1308
  %1945 = vmatprep.subr.bf16.mxu0 %v1313
  %1946 = vmatpush1.bf16.msra.mxu0 %v1312
  %1947 = vmatprep.subr.bf16.mxu0 %v1317
  %1948 = vmatpush1.bf16.msra.mxu0 %v1316
  %1949 = vmatprep.subr.bf16.mxu0 %v1321
  %1950 = vmatpush1.bf16.msra.mxu0 %v1320
  %1951 = vmatprep.subr.bf16.mxu0 %v1325
  %1952 = vmatpush1.bf16.msra.mxu0 %v1324
  %1953 = vmatprep.subr.bf16.mxu0 %v1329
  %1954 = vmatpush1.bf16.msra.mxu0 %v1328
  %1955 = vmatprep.subr.bf16.mxu0 %v1333
  %1956 = vmatpush1.bf16.msra.mxu0 %v1332
  %1957 = vmatprep.subr.bf16.mxu0 %v1337
  %1958 = vmatpush1.bf16.msra.mxu0 %v1336
  %1959 = vmatprep.mubr.bf16.mxu0 %v149
  %1960 = vmatmul.mubr.bf16.gmra.mrb[0].mxu0 %v148
  %v1961 = vpop.f32.mrb[0].mxu0
  %v1962 = vadd.f32 %v1921, %v1961
  %v1963 = vpop.f32.mrb[0].mxu0
  %v1964 = vadd.f32 %v1923, %v1963
  %v1965 = vpop.f32.mrb[0].mxu0
  %v1966 = vpop.f32.mrb[0].mxu0
  %1967 = vdwg.mxu0
  %1968 = vmatprep.subr.bf16.mxu0 %v1341
  %1969 = vmatpush1.bf16.msra.mxu0 %v1340
  %1970 = vmatprep.subr.bf16.mxu0 %v1345
  %1971 = vmatpush1.bf16.msra.mxu0 %v1344
  %1972 = vmatprep.subr.bf16.mxu0 %v1349
  %1973 = vmatpush1.bf16.msra.mxu0 %v1348
  %1974 = vmatprep.subr.bf16.mxu0 %v1353
  %1975 = vmatpush1.bf16.msra.mxu0 %v1352
  %1976 = vmatprep.subr.bf16.mxu0 %v1357
  %1977 = vmatpush1.bf16.msra.mxu0 %v1356
  %1978 = vmatprep.subr.bf16.mxu0 %v1361
  %1979 = vmatpush1.bf16.msra.mxu0 %v1360
  %1980 = vmatprep.subr.bf16.mxu0 %v1365
  %1981 = vmatpush1.bf16.msra.mxu0 %v1364
  %1982 = vmatprep.subr.bf16.mxu0 %v1369
  %1983 = vmatpush1.bf16.msra.mxu0 %v1368
  %1984 = vmatprep.subr.bf16.mxu0 %v1373
  %1985 = vmatpush1.bf16.msra.mxu0 %v1372
  %1986 = vmatprep.subr.bf16.mxu0 %v1377
  %1987 = vmatpush1.bf16.msra.mxu0 %v1376
  %1988 = vmatprep.subr.bf16.mxu0 %v1381
  %1989 = vmatpush1.bf16.msra.mxu0 %v1380
  %1990 = vmatprep.subr.bf16.mxu0 %v1385
  %1991 = vmatpush1.bf16.msra.mxu0 %v1384
  %1992 = vmatprep.subr.bf16.mxu0 %v1389
  %1993 = vmatpush1.bf16.msra.mxu0 %v1388
  %1994 = vmatprep.subr.bf16.mxu0 %v1393
  %1995 = vmatpush1.bf16.msra.mxu0 %v1392
  %1996 = vmatprep.subr.bf16.mxu0 %v1397
  %1997 = vmatpush1.bf16.msra.mxu0 %v1396
  %1998 = vmatprep.subr.bf16.mxu0 %v1401
  %1999 = vmatpush1.bf16.msra.mxu0 %v1400
  %2000 = vmatprep.mubr.bf16.mxu0 %v151
  %2001 = vmatmul.mubr.bf16.gmra.mrb[0].mxu0 %v150
  %v2002 = vpop.f32.mrb[0].mxu0
  %v2003 = vadd.f32 %v1962, %v2002
  %v2004 = vpop.f32.mrb[0].mxu0
  %v2005 = vadd.f32 %v1964, %v2004
  %v2006 = vpop.f32.mrb[0].mxu0
  %v2007 = vpop.f32.mrb[0].mxu0
  %2008 = vdwg.mxu0
  %2009 = vmatprep.subr.bf16.mxu0 %v1405
  %2010 = vmatpush1.bf16.msra.mxu0 %v1404
  %2011 = vmatprep.subr.bf16.mxu0 %v1409
  %2012 = vmatpush1.bf16.msra.mxu0 %v1408
  %2013 = vmatprep.subr.bf16.mxu0 %v1413
  %2014 = vmatpush1.bf16.msra.mxu0 %v1412
  %2015 = vmatprep.subr.bf16.mxu0 %v1417
  %2016 = vmatpush1.bf16.msra.mxu0 %v1416
  %2017 = vmatprep.subr.bf16.mxu0 %v1421
  %2018 = vmatpush1.bf16.msra.mxu0 %v1420
  %2019 = vmatprep.subr.bf16.mxu0 %v1425
  %2020 = vmatpush1.bf16.msra.mxu0 %v1424
  %2021 = vmatprep.subr.bf16.mxu0 %v1429
  %2022 = vmatpush1.bf16.msra.mxu0 %v1428
  %2023 = vmatprep.subr.bf16.mxu0 %v1433
  %2024 = vmatpush1.bf16.msra.mxu0 %v1432
  %2025 = vmatprep.subr.bf16.mxu0 %v1437
  %2026 = vmatpush1.bf16.msra.mxu0 %v1436
  %2027 = vmatprep.subr.bf16.mxu0 %v1441
  %2028 = vmatpush1.bf16.msra.mxu0 %v1440
  %2029 = vmatprep.subr.bf16.mxu0 %v1445
  %2030 = vmatpush1.bf16.msra.mxu0 %v1444
  %2031 = vmatprep.subr.bf16.mxu0 %v1449
  %2032 = vmatpush1.bf16.msra.mxu0 %v1448
  %2033 = vmatprep.subr.bf16.mxu0 %v1453
  %2034 = vmatpush1.bf16.msra.mxu0 %v1452
  %2035 = vmatprep.subr.bf16.mxu0 %v1457
  %2036 = vmatpush1.bf16.msra.mxu0 %v1456
  %2037 = vmatprep.subr.bf16.mxu0 %v1461
  %2038 = vmatpush1.bf16.msra.mxu0 %v1460
  %2039 = vmatprep.subr.bf16.mxu0 %v1465
  %2040 = vmatpush1.bf16.msra.mxu0 %v1464
  %2041 = vmatprep.mubr.bf16.mxu0 %v153
  %2042 = vmatmul.mubr.bf16.gmra.mrb[0].mxu0 %v152
  %v2043 = vpop.f32.mrb[0].mxu0
  %v2044 = vadd.f32 %v2003, %v2043
  %v2045 = vpop.f32.mrb[0].mxu0
  %v2046 = vadd.f32 %v2005, %v2045
  %v2047 = vpop.f32.mrb[0].mxu0
  %v2048 = vpop.f32.mrb[0].mxu0
  %2049 = vdwg.mxu0
  %v2050 = vld [vmem:[%s6] sm:$0xf]
  %v2052 = vlaneseq
  %v2053 = vshrl.u32 %v2052, 7
  %v2054 = vsub.s32 0, %v2053
  %v2055 = vrot.slane %v2050, %v2054
  %v2056 = vlaneseq
  %v2057 = vshrl.u32 %v2056, 7
  %v2058 = vsub.s32 1, %v2057
  %v2059 = vrot.slane %v2050, %v2058
  %v2060 = vlaneseq
  %v2061 = vshrl.u32 %v2060, 7
  %v2062 = vsub.s32 2, %v2061
  %v2063 = vrot.slane %v2050, %v2062
  %v2064 = vlaneseq
  %v2065 = vshrl.u32 %v2064, 7
  %v2066 = vsub.s32 3, %v2065
  %v2067 = vrot.slane %v2050, %v2066
  %v2072 = vadd.f32 %v1880, %v2055
  %v2073 = vadd.f32 %v1882, %v2059
  %v2074 = vadd.f32 %v2044, %v2063
  %v2075 = vadd.f32 %v2046, %v2067
  %v2076 = vmax.f32 %v2072, 0.0
  %v2077 = vmax.f32 %v2073, 0.0
  %v2078 = vmax.f32 %v2074, 0.0
  %v2079 = vmax.f32 %v2075, 0.0
  %2080 = vst [vmem:[%s7] sm:$0xff] %v2076
  %2081 = vst [vmem:[%s7 + $0x8] sm:$0xff] %v2077
  %2082 = vst [vmem:[%s7 + $0x10] sm:$0xff] %v2078
  %2083 = vst [vmem:[%s7 + $0x18] sm:$0xff] %v2079
  // Predicated region
  $region30: #{ppo_forward.11} parent=0 // pred_check
    _
  $region31: #{ppo_forward.11} parent=0 // pred_check_branch
    %2085 = sbr.rel (0) target = $region33
  $region32: #{ppo_forward.11} parent=0 // pred_region
    _
  $region33: #{ppo_forward.11} parent=0 // pred_fallthru
    _
  // Predicated region
  $region34: #{ppo_forward.11} parent=0 // pred_check
    _
  $region35: #{ppo_forward.11} parent=0 // pred_check_branch
    %2087 = sbr.rel (0) target = $region37
  $region36: #{ppo_forward.11} parent=0 // pred_region
    _
  $region37: #{ppo_forward.11} parent=0 // pred_fallthru
    _

</llo_original>
